<compile_context>
chip_gen: v5e
topology: v5e:2x2
jax: 0.10.0
libtpu: 0.0.40
codegen_flags: <defaults>
</compile_context>

<pallas_src>
import numpy as np
import jax
import jax.numpy as jnp
from jax import lax
from jax.experimental import pallas as pl
from jax.experimental.pallas import tpu as pltpu


# ----------------------------- Pallas kernel ------------------------------- #

def make_lstm_kernel(BB, T, E, H):
    H4 = 4 * H

    def gates(z, c):
        # z: (BB, 4H) pre-activation, PyTorch gate order i, f, g, o.
        sig = jax.nn.sigmoid(z)                 # full width (i, f, o used)
        i = sig[:, 0 * H:1 * H]
        f = sig[:, 1 * H:2 * H]
        o = sig[:, 3 * H:4 * H]
        g = jnp.tanh(z[:, 2 * H:3 * H])         # tanh only on the g quarter
        c_new = f * c + i * g
        h_new = o * jnp.tanh(c_new)
        return h_new, c_new

    def kernel(len_ref, emb_ref,
               w0ih_ref, b0_ref, w0fh_ref, w0rh_ref,
               w1ih_ref, b1_ref, w1fh_ref, w1rh_ref,
               fcwf_ref, fcwr_ref, fcb_ref,
               out_ref,
               xp0_ref, scr_ref, xp1_ref):
        # ---- hoisted loop invariants ----
        lens = len_ref[...]                                   # (BB, 1) int32
        zeros = jnp.zeros((BB, H), jnp.float32)

        # ---- layer 0 input projection: one batched matmul, both directions ----
        x0 = emb_ref[...].reshape(T * BB, E)                  # layout-compatible
        xp0 = jnp.dot(x0, w0ih_ref[...],
                      preferred_element_type=jnp.float32) + b0_ref[...]
        xp0_ref[...] = xp0.reshape(T, BB, 2 * H4)             # (T, BB, 8H)

        w0fh = w0fh_ref[...]                                  # (H, 4H)
        w0rh = w0rh_ref[...]

        # ---- layer 0 recurrence: fwd (t) and rev (T-1-t) fused in one loop ----
        def body0(t, carry):
            hf, cf, hr, cr = carry
            tr = T - 1 - t
            zf = xp0_ref[t, :, pl.ds(0, H4)] + jnp.dot(
                hf, w0fh, preferred_element_type=jnp.float32)
            zr = xp0_ref[tr, :, pl.ds(H4, H4)] + jnp.dot(
                hr, w0rh, preferred_element_type=jnp.float32)
            hf_n, cf_n = gates(zf, cf)
            hr_n, cr_n = gates(zr, cr)
            mf = t < lens                                      # packed-seq masking
            mr = tr < lens
            hf = jnp.where(mf, hf_n, hf); cf = jnp.where(mf, cf_n, cf)
            hr = jnp.where(mr, hr_n, hr); cr = jnp.where(mr, cr_n, cr)
            scr_ref[t, :, pl.ds(0, H)] = hf                    # fwd half of layer-0 out
            scr_ref[tr, :, pl.ds(H, H)] = hr                   # rev half of layer-0 out
            return hf, cf, hr, cr

        lax.fori_loop(0, T, body0, (zeros, zeros, zeros, zeros), unroll=True)

        # ---- layer 1 input projection: batched over all T, both directions ----
        x1 = scr_ref[...].reshape(T * BB, 2 * H)
        xp1 = jnp.dot(x1, w1ih_ref[...],
                      preferred_element_type=jnp.float32) + b1_ref[...]
        xp1_ref[...] = xp1.reshape(T, BB, 2 * H4)

        w1fh = w1fh_ref[...]
        w1rh = w1rh_ref[...]

        # ---- layer 1 recurrence: only the final masked states are needed ----
        def body1(t, carry):
            hf, cf, hr, cr = carry
            tr = T - 1 - t
            zf = xp1_ref[t, :, pl.ds(0, H4)] + jnp.dot(
                hf, w1fh, preferred_element_type=jnp.float32)
            zr = xp1_ref[tr, :, pl.ds(H4, H4)] + jnp.dot(
                hr, w1rh, preferred_element_type=jnp.float32)
            hf_n, cf_n = gates(zf, cf)
            hr_n, cr_n = gates(zr, cr)
            mf = t < lens
            mr = tr < lens
            hf = jnp.where(mf, hf_n, hf); cf = jnp.where(mf, cf_n, cf)
            hr = jnp.where(mr, hr_n, hr); cr = jnp.where(mr, cr_n, cr)
            return hf, cf, hr, cr

        h1f, _, h1r, _ = lax.fori_loop(0, T, body1,
                                       (zeros, zeros, zeros, zeros), unroll=True)

        # out_forward (fwd hidden @ t=len-1) ++ out_reverse (rev hidden @ t=0),
        # FC as two narrow dots (no lane concat).
        # TODO(synk): nn.Dropout(p) is identity at inference time; no-op here.
        logit = (jnp.dot(h1f, fcwf_ref[...], preferred_element_type=jnp.float32)
                 + jnp.dot(h1r, fcwr_ref[...], preferred_element_type=jnp.float32)
                 + fcb_ref[...])
        out_ref[...] = jax.nn.sigmoid(logit)                   # (BB, 1)

    return kernel


# ------------------------------- wrapper ----------------------------------- #

def lstm_forward(tokens, text_len, params, H):
    """tokens: (B, T) int32 ; text_len: (B,) int32 -> (B,) float32 in (0, 1)."""
    B, T = tokens.shape
    emb_tbl = params["embedding"]                     # (V, E)
    E = emb_tbl.shape[1]

    # Pad batch to a multiple of 8 (sublane-full vregs); padded rows get len=0
    # so their state stays zero and is dropped on return.
    BB = 8                                            # per-grid-block batch
    BP = ((B + BB - 1) // BB) * BB
    pad = BP - B
    tok_p = jnp.pad(tokens, ((0, pad), (0, 0)))
    len_p = jnp.pad(text_len.astype(jnp.int32), (0, pad))

    # Embedding gather (glue) + time-major transpose for the kernel.
    emb = jnp.transpose(emb_tbl[tok_p], (1, 0, 2)).astype(jnp.float32)   # (T,BP,E)
    lens = len_p.reshape(BP, 1)

    # Param prep (done once, outside the kernel):
    #   * W_ih of fwd & rev stacked along the gate axis -> (in, 8H), bias (1, 8H)
    #   * W_hh kept per-direction -> (H, 4H)
    def stack_dirs(fwd, rev):
        w_ih = jnp.concatenate([fwd[0], rev[0]], axis=1).astype(jnp.float32)
        b = jnp.concatenate([fwd[2], rev[2]], axis=1).astype(jnp.float32)
        return w_ih, b, fwd[1].astype(jnp.float32), rev[1].astype(jnp.float32)

    w0ih, b0, w0fh, w0rh = stack_dirs(params["l0f"], params["l0r"])
    w1ih, b1, w1fh, w1rh = stack_dirs(params["l1f"], params["l1r"])
    fc_w = params["fc_w"].astype(jnp.float32)
    fc_wf, fc_wr = fc_w[:H], fc_w[H:]
    fc_b = params["fc_b"].astype(jnp.float32)

    def fullspec(shape):
        return pl.BlockSpec(shape, lambda b, _n=len(shape): (0,) * _n)

    in_arrays = (lens, emb,
                 w0ih, b0, w0fh, w0rh,
                 w1ih, b1, w1fh, w1rh,
                 fc_wf, fc_wr, fc_b)
    in_specs = [
        pl.BlockSpec((BB, 1), lambda b: (b, 0)),        # lens   (batch-blocked)
        pl.BlockSpec((T, BB, E), lambda b: (0, b, 0)),  # emb    (batch-blocked)
    ] + [fullspec(a.shape) for a in in_arrays[2:]]      # weights: full, replicated

    out = pl.pallas_call(
        make_lstm_kernel(BB, T, E, H),
        out_shape=jax.ShapeDtypeStruct((BP, 1), jnp.float32),
        grid=(BP // BB,),
        in_specs=in_specs,
        out_specs=pl.BlockSpec((BB, 1), lambda b: (b, 0)),
        scratch_shapes=[
            pltpu.VMEM((T, BB, 8 * H), jnp.float32),    # layer-0 x-projections
            pltpu.VMEM((T, BB, 2 * H), jnp.float32),    # layer-0 outputs
            pltpu.VMEM((T, BB, 8 * H), jnp.float32),    # layer-1 x-projections
        ],
        compiler_params=pltpu.CompilerParams(dimension_semantics=("parallel",)),
    )(*in_arrays)
    return out[:B, 0]                                  # drop pad rows, squeeze


# --------------------------- numpy reference -------------------------------- #

def _np_cell(x, h, c, w_ih, w_hh, b, H):
    z = x @ w_ih + h @ w_hh + b
    sig = lambda v: 1.0 / (1.0 + np.exp(-v))
    i, f = sig(z[:, :H]), sig(z[:, H:2 * H])
    g, o = np.tanh(z[:, 2 * H:3 * H]), sig(z[:, 3 * H:])
    c = f * c + i * g
    return o * np.tanh(c), c


def reference_forward(tokens, text_len, p, H):
    B, T = tokens.shape
    emb = p["embedding"][tokens]                     # (B, T, E)

    def run_dir(inp, prm, reverse):
        h = np.zeros((B, H), np.float32)
        c = np.zeros((B, H), np.float32)
        outs = np.zeros((B, T, H), np.float32)
        ts = range(T - 1, -1, -1) if reverse else range(T)
        for t in ts:
            hn, cn = _np_cell(inp[:, t], h, c, *prm, H)
            mask = (t < text_len)[:, None]
            h = np.where(mask, hn, h)
            c = np.where(mask, cn, c)
            outs[:, t] = h
        return outs, h

    f0, _ = run_dir(emb, p["l0f"], False)
    r0, _ = run_dir(emb, p["l0r"], True)
    x1 = np.concatenate([f0, r0], axis=-1)
    _, h1f = run_dir(x1, p["l1f"], False)
    _, h1r = run_dir(x1, p["l1r"], True)
    feat = np.concatenate([h1f, h1r], axis=-1)
    logit = feat @ p["fc_w"] + p["fc_b"]
    return (1.0 / (1.0 + np.exp(-logit)))[:, 0]


# --------------------------------- main ------------------------------------- #

if __name__ == "__main__":
    B, T, V, E, H = 4, 8, 64, 16, 32

    key = jax.random.PRNGKey(0)
    keys = jax.random.split(key, 20)
    k_lstm = 1.0 / np.sqrt(H)
    k_fc = 1.0 / np.sqrt(2 * H)

    def uinit(k, shape, bound):
        return jax.random.uniform(k, shape, jnp.float32, -bound, bound)

    def cell_params(kw, kh, kb, in_dim):
        # (W_ih^T, W_hh^T, b_ih + b_hh) -- combined bias, pre-transposed weights
        return (uinit(kw, (in_dim, 4 * H), k_lstm),
                uinit(kh, (H, 4 * H), k_lstm),
                uinit(kb, (1, 4 * H), k_lstm))

    params = {
        "embedding": jax.random.normal(keys[0], (V, E), jnp.float32),
        "l0f": cell_params(keys[1], keys[2], keys[3], E),
        "l0r": cell_params(keys[4], keys[5], keys[6], E),
        "l1f": cell_params(keys[7], keys[8], keys[9], 2 * H),
        "l1r": cell_params(keys[10], keys[11], keys[12], 2 * H),
        "fc_w": uinit(keys[13], (2 * H, 1), k_fc),
        "fc_b": uinit(keys[14], (1, 1), k_fc),
    }

    tokens = jax.random.randint(keys[15], (B, T), 0, V, jnp.int32)
    text_len = jnp.array([T, 5, 3, 7], jnp.int32)   # variable lengths, max == T

    out = lstm_forward(tokens, text_len, params, H)
    out = jax.block_until_ready(out)

    ref = reference_forward(np.array(tokens), np.array(text_len),
                            jax.tree_util.tree_map(np.asarray, params), H)
    np.testing.assert_allclose(np.asarray(out), ref, rtol=5e-3, atol=5e-3)

    print("KERNEL_OK")
</pallas_src>

<mosaic_0001>
module attributes {stable_mosaic.version = 11 : i64} {
  func.func @kernel(%arg0: i32, %arg1: memref<8x1xi32, #tpu.memory_space<vmem>>, %arg2: memref<8x8x16xf32, #tpu.memory_space<vmem>>, %arg3: memref<16x256xf32, #tpu.memory_space<vmem>>, %arg4: memref<1x256xf32, #tpu.memory_space<vmem>>, %arg5: memref<32x128xf32, #tpu.memory_space<vmem>>, %arg6: memref<32x128xf32, #tpu.memory_space<vmem>>, %arg7: memref<64x256xf32, #tpu.memory_space<vmem>>, %arg8: memref<1x256xf32, #tpu.memory_space<vmem>>, %arg9: memref<32x128xf32, #tpu.memory_space<vmem>>, %arg10: memref<32x128xf32, #tpu.memory_space<vmem>>, %arg11: memref<32x1xf32, #tpu.memory_space<vmem>>, %arg12: memref<32x1xf32, #tpu.memory_space<vmem>>, %arg13: memref<1x1xf32, #tpu.memory_space<vmem>>, %arg14: memref<8x1xf32, #tpu.memory_space<vmem>>, %arg15: memref<8x8x256xf32, #tpu.memory_space<vmem>>, %arg16: memref<8x8x64xf32, #tpu.memory_space<vmem>>, %arg17: memref<8x8x256xf32, #tpu.memory_space<vmem>>) attributes {dimension_semantics = [#tpu.dimension_semantics<parallel>], iteration_bounds = array<i64: 1>, scalar_prefetch = 0 : i64, scratch_operands = 3 : i64, tpu.core_type = #tpu.core_type<tc>, window_params = [{transform_indices = @transform_0, window_bounds = array<i64: 8, 1>}, {transform_indices = @transform_1, window_bounds = array<i64: 8, 8, 16>}, {pipeline_mode = #tpu.pipeline_mode<synchronous>, transform_indices = @transform_2, window_bounds = array<i64: 16, 256>}, {pipeline_mode = #tpu.pipeline_mode<synchronous>, transform_indices = @transform_3, window_bounds = array<i64: 1, 256>}, {pipeline_mode = #tpu.pipeline_mode<synchronous>, transform_indices = @transform_4, window_bounds = array<i64: 32, 128>}, {pipeline_mode = #tpu.pipeline_mode<synchronous>, transform_indices = @transform_5, window_bounds = array<i64: 32, 128>}, {pipeline_mode = #tpu.pipeline_mode<synchronous>, transform_indices = @transform_6, window_bounds = array<i64: 64, 256>}, {pipeline_mode = #tpu.pipeline_mode<synchronous>, transform_indices = @transform_7, window_bounds = array<i64: 1, 256>}, {pipeline_mode = #tpu.pipeline_mode<synchronous>, transform_indices = @transform_8, window_bounds = array<i64: 32, 128>}, {pipeline_mode = #tpu.pipeline_mode<synchronous>, transform_indices = @transform_9, window_bounds = array<i64: 32, 128>}, {pipeline_mode = #tpu.pipeline_mode<synchronous>, transform_indices = @transform_10, window_bounds = array<i64: 32, 1>}, {pipeline_mode = #tpu.pipeline_mode<synchronous>, transform_indices = @transform_11, window_bounds = array<i64: 32, 1>}, {pipeline_mode = #tpu.pipeline_mode<synchronous>, transform_indices = @transform_12, window_bounds = array<i64: 1, 1>}, {transform_indices = @transform_13, window_bounds = array<i64: 8, 1>}]} {
    %c0 = arith.constant 0 : index
    %c0_0 = arith.constant 0 : index
    %0 = vector.load %arg1[%c0, %c0_0] : memref<8x1xi32, #tpu.memory_space<vmem>>, vector<8x1xi32>
    %cst = arith.constant 0.000000e+00 : f32
    %1 = vector.broadcast %cst : f32 to vector<8x32xf32>
    %c0_1 = arith.constant 0 : index
    %c0_2 = arith.constant 0 : index
    %c0_3 = arith.constant 0 : index
    %2 = vector.load %arg2[%c0_1, %c0_2, %c0_3] : memref<8x8x16xf32, #tpu.memory_space<vmem>>, vector<8x8x16xf32>
    %3 = vector.shape_cast %2 : vector<8x8x16xf32> to vector<64x16xf32>
    %c0_4 = arith.constant 0 : index
    %c0_5 = arith.constant 0 : index
    %4 = vector.load %arg3[%c0_4, %c0_5] : memref<16x256xf32, #tpu.memory_space<vmem>>, vector<16x256xf32>
    %cst_6 = arith.constant dense<0.000000e+00> : vector<64x256xf32>
    %5 = tpu.matmul %3, %4, %cst_6 {dimension_numbers = #tpu.dot_dimension_numbers<[1], [0], [0], [1], [0, 0, 1, 1], [], []>} : vector<64x16xf32>, vector<16x256xf32>, vector<64x256xf32> -> vector<64x256xf32>
    %c0_7 = arith.constant 0 : index
    %c0_8 = arith.constant 0 : index
    %6 = vector.load %arg4[%c0_7, %c0_8] : memref<1x256xf32, #tpu.memory_space<vmem>>, vector<1x256xf32>
    %7 = vector.broadcast %6 : vector<1x256xf32> to vector<64x256xf32>
    %8 = arith.addf %5, %7 : vector<64x256xf32>
    %9 = vector.shape_cast %8 : vector<64x256xf32> to vector<8x8x256xf32>
    %c0_9 = arith.constant 0 : index
    %c0_10 = arith.constant 0 : index
    %c0_11 = arith.constant 0 : index
    %10 = vector.load %arg15[%c0_9, %c0_10, %c0_11] : memref<8x8x256xf32, #tpu.memory_space<vmem>>, vector<8x8x256xf32>
    tpu.vector_store %arg15[%c0_9, %c0_10, %c0_11], %9 {strides = array<i32>} : memref<8x8x256xf32, #tpu.memory_space<vmem>>, vector<8x8x256xf32>,
    %c0_12 = arith.constant 0 : index
    %c0_13 = arith.constant 0 : index
    %11 = vector.load %arg5[%c0_12, %c0_13] : memref<32x128xf32, #tpu.memory_space<vmem>>, vector<32x128xf32>
    %c0_14 = arith.constant 0 : index
    %c0_15 = arith.constant 0 : index
    %12 = vector.load %arg6[%c0_14, %c0_15] : memref<32x128xf32, #tpu.memory_space<vmem>>, vector<32x128xf32>
    %c0_i32 = arith.constant 0 : i32
    %c7_i32 = arith.constant 7 : i32
    %13 = arith.subi %c7_i32, %c0_i32 : i32
    %14 = arith.index_cast %c0_i32 : i32 to index
    %c0_16 = arith.constant 0 : index
    %c0_17 = arith.constant 0 : index
    %15 = vector.load %arg15[%14, %c0_16, %c0_17] : memref<8x8x256xf32, #tpu.memory_space<vmem>>, vector<1x8x128xf32>
    %16 = vector.shape_cast %15 : vector<1x8x128xf32> to vector<8x128xf32>
    %cst_18 = arith.constant dense<0.000000e+00> : vector<8x128xf32>
    %17 = tpu.matmul %1, %11, %cst_18 {dimension_numbers = #tpu.dot_dimension_numbers<[1], [0], [0], [1], [0, 0, 1, 1], [], []>} : vector<8x32xf32>, vector<32x128xf32>, vector<8x128xf32> -> vector<8x128xf32>
    %18 = arith.addf %16, %17 : vector<8x128xf32>
    %19 = arith.index_cast %13 : i32 to index
    %c0_19 = arith.constant 0 : index
    %c128 = arith.constant 128 : index
    %20 = vector.load %arg15[%19, %c0_19, %c128] : memref<8x8x256xf32, #tpu.memory_space<vmem>>, vector<1x8x128xf32>
    %21 = vector.shape_cast %20 : vector<1x8x128xf32> to vector<8x128xf32>
    %cst_20 = arith.constant dense<0.000000e+00> : vector<8x128xf32>
    %22 = tpu.matmul %1, %12, %cst_20 {dimension_numbers = #tpu.dot_dimension_numbers<[1], [0], [0], [1], [0, 0, 1, 1], [], []>} : vector<8x32xf32>, vector<32x128xf32>, vector<8x128xf32> -> vector<8x128xf32>
    %23 = arith.addf %21, %22 : vector<8x128xf32>
    %24 = arith.negf %18 : vector<8x128xf32>
    %25 = math.exp %24 : vector<8x128xf32>
    %cst_21 = arith.constant 1.000000e+00 : f32
    %26 = vector.broadcast %cst_21 : f32 to vector<8x128xf32>
    %27 = arith.addf %26, %25 : vector<8x128xf32>
    %28 = arith.divf %26, %27 : vector<8x128xf32>
    %29 = vector.extract_strided_slice %28 {offsets = [0, 0], sizes = [8, 32], strides = [1, 1]} : vector<8x128xf32> to vector<8x32xf32>
    %30 = vector.extract_strided_slice %28 {offsets = [0, 32], sizes = [8, 32], strides = [1, 1]} : vector<8x128xf32> to vector<8x32xf32>
    %31 = vector.extract_strided_slice %28 {offsets = [0, 96], sizes = [8, 32], strides = [1, 1]} : vector<8x128xf32> to vector<8x32xf32>
    %32 = vector.extract_strided_slice %18 {offsets = [0, 64], sizes = [8, 32], strides = [1, 1]} : vector<8x128xf32> to vector<8x32xf32>
    %33 = math.tanh %32 : vector<8x32xf32>
    %34 = arith.mulf %30, %1 : vector<8x32xf32>
    %35 = arith.mulf %29, %33 : vector<8x32xf32>
    %36 = arith.addf %34, %35 : vector<8x32xf32>
    %37 = math.tanh %36 : vector<8x32xf32>
    %38 = arith.mulf %31, %37 : vector<8x32xf32>
    %39 = arith.negf %23 : vector<8x128xf32>
    %40 = math.exp %39 : vector<8x128xf32>
    %cst_22 = arith.constant 1.000000e+00 : f32
    %41 = vector.broadcast %cst_22 : f32 to vector<8x128xf32>
    %42 = arith.addf %41, %40 : vector<8x128xf32>
    %43 = arith.divf %41, %42 : vector<8x128xf32>
    %44 = vector.extract_strided_slice %43 {offsets = [0, 0], sizes = [8, 32], strides = [1, 1]} : vector<8x128xf32> to vector<8x32xf32>
    %45 = vector.extract_strided_slice %43 {offsets = [0, 32], sizes = [8, 32], strides = [1, 1]} : vector<8x128xf32> to vector<8x32xf32>
    %46 = vector.extract_strided_slice %43 {offsets = [0, 96], sizes = [8, 32], strides = [1, 1]} : vector<8x128xf32> to vector<8x32xf32>
    %47 = vector.extract_strided_slice %23 {offsets = [0, 64], sizes = [8, 32], strides = [1, 1]} : vector<8x128xf32> to vector<8x32xf32>
    %48 = math.tanh %47 : vector<8x32xf32>
    %49 = arith.mulf %45, %1 : vector<8x32xf32>
    %50 = arith.mulf %44, %48 : vector<8x32xf32>
    %51 = arith.addf %49, %50 : vector<8x32xf32>
    %52 = math.tanh %51 : vector<8x32xf32>
    %53 = arith.mulf %46, %52 : vector<8x32xf32>
    %54 = vector.broadcast %c0_i32 : i32 to vector<8x1xi32>
    %55 = arith.cmpi slt, %54, %0 : vector<8x1xi32>
    %56 = vector.broadcast %13 : i32 to vector<8x1xi32>
    %57 = arith.cmpi slt, %56, %0 : vector<8x1xi32>
    %58 = vector.shape_cast %55 : vector<8x1xi1> to vector<8x1xi1>
    %59 = vector.broadcast %58 : vector<8x1xi1> to vector<8x32xi1>
    %60 = arith.select %59, %38, %1 : vector<8x32xi1>, vector<8x32xf32>
    %61 = vector.shape_cast %55 : vector<8x1xi1> to vector<8x1xi1>
    %62 = vector.broadcast %61 : vector<8x1xi1> to vector<8x32xi1>
    %63 = arith.select %62, %36, %1 : vector<8x32xi1>, vector<8x32xf32>
    %64 = vector.shape_cast %57 : vector<8x1xi1> to vector<8x1xi1>
    %65 = vector.broadcast %64 : vector<8x1xi1> to vector<8x32xi1>
    %66 = arith.select %65, %53, %1 : vector<8x32xi1>, vector<8x32xf32>
    %67 = vector.shape_cast %57 : vector<8x1xi1> to vector<8x1xi1>
    %68 = vector.broadcast %67 : vector<8x1xi1> to vector<8x32xi1>
    %69 = arith.select %68, %51, %1 : vector<8x32xi1>, vector<8x32xf32>
    %70 = arith.index_cast %c0_i32 : i32 to index
    %c0_23 = arith.constant 0 : index
    %c0_24 = arith.constant 0 : index
    %71 = vector.load %arg16[%70, %c0_23, %c0_24] : memref<8x8x64xf32, #tpu.memory_space<vmem>>, vector<1x8x32xf32>
    %72 = vector.shape_cast %71 : vector<1x8x32xf32> to vector<8x32xf32>
    %73 = vector.shape_cast %60 : vector<8x32xf32> to vector<1x8x32xf32>
    tpu.vector_store %arg16[%70, %c0_23, %c0_24], %73 {strides = array<i32>} : memref<8x8x64xf32, #tpu.memory_space<vmem>>, vector<1x8x32xf32>,
    %74 = arith.index_cast %13 : i32 to index
    %c0_25 = arith.constant 0 : index
    %c32 = arith.constant 32 : index
    %75 = vector.load %arg16[%74, %c0_25, %c32] : memref<8x8x64xf32, #tpu.memory_space<vmem>>, vector<1x8x32xf32>
    %76 = vector.shape_cast %75 : vector<1x8x32xf32> to vector<8x32xf32>
    %77 = vector.shape_cast %66 : vector<8x32xf32> to vector<1x8x32xf32>
    tpu.vector_store %arg16[%74, %c0_25, %c32], %77 {strides = array<i32>} : memref<8x8x64xf32, #tpu.memory_space<vmem>>, vector<1x8x32xf32>,
    %c1_i32 = arith.constant 1 : i32
    %c7_i32_26 = arith.constant 7 : i32
    %78 = arith.subi %c7_i32_26, %c1_i32 : i32
    %79 = arith.index_cast %c1_i32 : i32 to index
    %c0_27 = arith.constant 0 : index
    %c0_28 = arith.constant 0 : index
    %80 = vector.load %arg15[%79, %c0_27, %c0_28] : memref<8x8x256xf32, #tpu.memory_space<vmem>>, vector<1x8x128xf32>
    %81 = vector.shape_cast %80 : vector<1x8x128xf32> to vector<8x128xf32>
    %cst_29 = arith.constant dense<0.000000e+00> : vector<8x128xf32>
    %82 = tpu.matmul %60, %11, %cst_29 {dimension_numbers = #tpu.dot_dimension_numbers<[1], [0], [0], [1], [0, 0, 1, 1], [], []>} : vector<8x32xf32>, vector<32x128xf32>, vector<8x128xf32> -> vector<8x128xf32>
    %83 = arith.addf %81, %82 : vector<8x128xf32>
    %84 = arith.index_cast %78 : i32 to index
    %c0_30 = arith.constant 0 : index
    %c128_31 = arith.constant 128 : index
    %85 = vector.load %arg15[%84, %c0_30, %c128_31] : memref<8x8x256xf32, #tpu.memory_space<vmem>>, vector<1x8x128xf32>
    %86 = vector.shape_cast %85 : vector<1x8x128xf32> to vector<8x128xf32>
    %cst_32 = arith.constant dense<0.000000e+00> : vector<8x128xf32>
    %87 = tpu.matmul %66, %12, %cst_32 {dimension_numbers = #tpu.dot_dimension_numbers<[1], [0], [0], [1], [0, 0, 1, 1], [], []>} : vector<8x32xf32>, vector<32x128xf32>, vector<8x128xf32> -> vector<8x128xf32>
    %88 = arith.addf %86, %87 : vector<8x128xf32>
    %89 = arith.negf %83 : vector<8x128xf32>
    %90 = math.exp %89 : vector<8x128xf32>
    %cst_33 = arith.constant 1.000000e+00 : f32
    %91 = vector.broadcast %cst_33 : f32 to vector<8x128xf32>
    %92 = arith.addf %91, %90 : vector<8x128xf32>
    %93 = arith.divf %91, %92 : vector<8x128xf32>
    %94 = vector.extract_strided_slice %93 {offsets = [0, 0], sizes = [8, 32], strides = [1, 1]} : vector<8x128xf32> to vector<8x32xf32>
    %95 = vector.extract_strided_slice %93 {offsets = [0, 32], sizes = [8, 32], strides = [1, 1]} : vector<8x128xf32> to vector<8x32xf32>
    %96 = vector.extract_strided_slice %93 {offsets = [0, 96], sizes = [8, 32], strides = [1, 1]} : vector<8x128xf32> to vector<8x32xf32>
    %97 = vector.extract_strided_slice %83 {offsets = [0, 64], sizes = [8, 32], strides = [1, 1]} : vector<8x128xf32> to vector<8x32xf32>
    %98 = math.tanh %97 : vector<8x32xf32>
    %99 = arith.mulf %95, %63 : vector<8x32xf32>
    %100 = arith.mulf %94, %98 : vector<8x32xf32>
    %101 = arith.addf %99, %100 : vector<8x32xf32>
    %102 = math.tanh %101 : vector<8x32xf32>
    %103 = arith.mulf %96, %102 : vector<8x32xf32>
    %104 = arith.negf %88 : vector<8x128xf32>
    %105 = math.exp %104 : vector<8x128xf32>
    %cst_34 = arith.constant 1.000000e+00 : f32
    %106 = vector.broadcast %cst_34 : f32 to vector<8x128xf32>
    %107 = arith.addf %106, %105 : vector<8x128xf32>
    %108 = arith.divf %106, %107 : vector<8x128xf32>
    %109 = vector.extract_strided_slice %108 {offsets = [0, 0], sizes = [8, 32], strides = [1, 1]} : vector<8x128xf32> to vector<8x32xf32>
    %110 = vector.extract_strided_slice %108 {offsets = [0, 32], sizes = [8, 32], strides = [1, 1]} : vector<8x128xf32> to vector<8x32xf32>
    %111 = vector.extract_strided_slice %108 {offsets = [0, 96], sizes = [8, 32], strides = [1, 1]} : vector<8x128xf32> to vector<8x32xf32>
    %112 = vector.extract_strided_slice %88 {offsets = [0, 64], sizes = [8, 32], strides = [1, 1]} : vector<8x128xf32> to vector<8x32xf32>
    %113 = math.tanh %112 : vector<8x32xf32>
    %114 = arith.mulf %110, %69 : vector<8x32xf32>
    %115 = arith.mulf %109, %113 : vector<8x32xf32>
    %116 = arith.addf %114, %115 : vector<8x32xf32>
    %117 = math.tanh %116 : vector<8x32xf32>
    %118 = arith.mulf %111, %117 : vector<8x32xf32>
    %119 = vector.broadcast %c1_i32 : i32 to vector<8x1xi32>
    %120 = arith.cmpi slt, %119, %0 : vector<8x1xi32>
    %121 = vector.broadcast %78 : i32 to vector<8x1xi32>
    %122 = arith.cmpi slt, %121, %0 : vector<8x1xi32>
    %123 = vector.shape_cast %120 : vector<8x1xi1> to vector<8x1xi1>
    %124 = vector.broadcast %123 : vector<8x1xi1> to vector<8x32xi1>
    %125 = arith.select %124, %103, %60 : vector<8x32xi1>, vector<8x32xf32>
    %126 = vector.shape_cast %120 : vector<8x1xi1> to vector<8x1xi1>
    %127 = vector.broadcast %126 : vector<8x1xi1> to vector<8x32xi1>
    %128 = arith.select %127, %101, %63 : vector<8x32xi1>, vector<8x32xf32>
    %129 = vector.shape_cast %122 : vector<8x1xi1> to vector<8x1xi1>
    %130 = vector.broadcast %129 : vector<8x1xi1> to vector<8x32xi1>
    %131 = arith.select %130, %118, %66 : vector<8x32xi1>, vector<8x32xf32>
    %132 = vector.shape_cast %122 : vector<8x1xi1> to vector<8x1xi1>
    %133 = vector.broadcast %132 : vector<8x1xi1> to vector<8x32xi1>
    %134 = arith.select %133, %116, %69 : vector<8x32xi1>, vector<8x32xf32>
    %135 = arith.index_cast %c1_i32 : i32 to index
    %c0_35 = arith.constant 0 : index
    %c0_36 = arith.constant 0 : index
    %136 = vector.load %arg16[%135, %c0_35, %c0_36] : memref<8x8x64xf32, #tpu.memory_space<vmem>>, vector<1x8x32xf32>
    %137 = vector.shape_cast %136 : vector<1x8x32xf32> to vector<8x32xf32>
    %138 = vector.shape_cast %125 : vector<8x32xf32> to vector<1x8x32xf32>
    tpu.vector_store %arg16[%135, %c0_35, %c0_36], %138 {strides = array<i32>} : memref<8x8x64xf32, #tpu.memory_space<vmem>>, vector<1x8x32xf32>,
    %139 = arith.index_cast %78 : i32 to index
    %c0_37 = arith.constant 0 : index
    %c32_38 = arith.constant 32 : index
    %140 = vector.load %arg16[%139, %c0_37, %c32_38] : memref<8x8x64xf32, #tpu.memory_space<vmem>>, vector<1x8x32xf32>
    %141 = vector.shape_cast %140 : vector<1x8x32xf32> to vector<8x32xf32>
    %142 = vector.shape_cast %131 : vector<8x32xf32> to vector<1x8x32xf32>
    tpu.vector_store %arg16[%139, %c0_37, %c32_38], %142 {strides = array<i32>} : memref<8x8x64xf32, #tpu.memory_space<vmem>>, vector<1x8x32xf32>,
    %c2_i32 = arith.constant 2 : i32
    %c7_i32_39 = arith.constant 7 : i32
    %143 = arith.subi %c7_i32_39, %c2_i32 : i32
    %144 = arith.index_cast %c2_i32 : i32 to index
    %c0_40 = arith.constant 0 : index
    %c0_41 = arith.constant 0 : index
    %145 = vector.load %arg15[%144, %c0_40, %c0_41] : memref<8x8x256xf32, #tpu.memory_space<vmem>>, vector<1x8x128xf32>
    %146 = vector.shape_cast %145 : vector<1x8x128xf32> to vector<8x128xf32>
    %cst_42 = arith.constant dense<0.000000e+00> : vector<8x128xf32>
    %147 = tpu.matmul %125, %11, %cst_42 {dimension_numbers = #tpu.dot_dimension_numbers<[1], [0], [0], [1], [0, 0, 1, 1], [], []>} : vector<8x32xf32>, vector<32x128xf32>, vector<8x128xf32> -> vector<8x128xf32>
    %148 = arith.addf %146, %147 : vector<8x128xf32>
    %149 = arith.index_cast %143 : i32 to index
    %c0_43 = arith.constant 0 : index
    %c128_44 = arith.constant 128 : index
    %150 = vector.load %arg15[%149, %c0_43, %c128_44] : memref<8x8x256xf32, #tpu.memory_space<vmem>>, vector<1x8x128xf32>
    %151 = vector.shape_cast %150 : vector<1x8x128xf32> to vector<8x128xf32>
    %cst_45 = arith.constant dense<0.000000e+00> : vector<8x128xf32>
    %152 = tpu.matmul %131, %12, %cst_45 {dimension_numbers = #tpu.dot_dimension_numbers<[1], [0], [0], [1], [0, 0, 1, 1], [], []>} : vector<8x32xf32>, vector<32x128xf32>, vector<8x128xf32> -> vector<8x128xf32>
    %153 = arith.addf %151, %152 : vector<8x128xf32>
    %154 = arith.negf %148 : vector<8x128xf32>
    %155 = math.exp %154 : vector<8x128xf32>
    %cst_46 = arith.constant 1.000000e+00 : f32
    %156 = vector.broadcast %cst_46 : f32 to vector<8x128xf32>
    %157 = arith.addf %156, %155 : vector<8x128xf32>
    %158 = arith.divf %156, %157 : vector<8x128xf32>
    %159 = vector.extract_strided_slice %158 {offsets = [0, 0], sizes = [8, 32], strides = [1, 1]} : vector<8x128xf32> to vector<8x32xf32>
    %160 = vector.extract_strided_slice %158 {offsets = [0, 32], sizes = [8, 32], strides = [1, 1]} : vector<8x128xf32> to vector<8x32xf32>
    %161 = vector.extract_strided_slice %158 {offsets = [0, 96], sizes = [8, 32], strides = [1, 1]} : vector<8x128xf32> to vector<8x32xf32>
    %162 = vector.extract_strided_slice %148 {offsets = [0, 64], sizes = [8, 32], strides = [1, 1]} : vector<8x128xf32> to vector<8x32xf32>
    %163 = math.tanh %162 : vector<8x32xf32>
    %164 = arith.mulf %160, %128 : vector<8x32xf32>
    %165 = arith.mulf %159, %163 : vector<8x32xf32>
    %166 = arith.addf %164, %165 : vector<8x32xf32>
    %167 = math.tanh %166 : vector<8x32xf32>
    %168 = arith.mulf %161, %167 : vector<8x32xf32>
    %169 = arith.negf %153 : vector<8x128xf32>
    %170 = math.exp %169 : vector<8x128xf32>
    %cst_47 = arith.constant 1.000000e+00 : f32
    %171 = vector.broadcast %cst_47 : f32 to vector<8x128xf32>
    %172 = arith.addf %171, %170 : vector<8x128xf32>
    %173 = arith.divf %171, %172 : vector<8x128xf32>
    %174 = vector.extract_strided_slice %173 {offsets = [0, 0], sizes = [8, 32], strides = [1, 1]} : vector<8x128xf32> to vector<8x32xf32>
    %175 = vector.extract_strided_slice %173 {offsets = [0, 32], sizes = [8, 32], strides = [1, 1]} : vector<8x128xf32> to vector<8x32xf32>
    %176 = vector.extract_strided_slice %173 {offsets = [0, 96], sizes = [8, 32], strides = [1, 1]} : vector<8x128xf32> to vector<8x32xf32>
    %177 = vector.extract_strided_slice %153 {offsets = [0, 64], sizes = [8, 32], strides = [1, 1]} : vector<8x128xf32> to vector<8x32xf32>
    %178 = math.tanh %177 : vector<8x32xf32>
    %179 = arith.mulf %175, %134 : vector<8x32xf32>
    %180 = arith.mulf %174, %178 : vector<8x32xf32>
    %181 = arith.addf %179, %180 : vector<8x32xf32>
    %182 = math.tanh %181 : vector<8x32xf32>
    %183 = arith.mulf %176, %182 : vector<8x32xf32>
    %184 = vector.broadcast %c2_i32 : i32 to vector<8x1xi32>
    %185 = arith.cmpi slt, %184, %0 : vector<8x1xi32>
    %186 = vector.broadcast %143 : i32 to vector<8x1xi32>
    %187 = arith.cmpi slt, %186, %0 : vector<8x1xi32>
    %188 = vector.shape_cast %185 : vector<8x1xi1> to vector<8x1xi1>
    %189 = vector.broadcast %188 : vector<8x1xi1> to vector<8x32xi1>
    %190 = arith.select %189, %168, %125 : vector<8x32xi1>, vector<8x32xf32>
    %191 = vector.shape_cast %185 : vector<8x1xi1> to vector<8x1xi1>
    %192 = vector.broadcast %191 : vector<8x1xi1> to vector<8x32xi1>
    %193 = arith.select %192, %166, %128 : vector<8x32xi1>, vector<8x32xf32>
    %194 = vector.shape_cast %187 : vector<8x1xi1> to vector<8x1xi1>
    %195 = vector.broadcast %194 : vector<8x1xi1> to vector<8x32xi1>
    %196 = arith.select %195, %183, %131 : vector<8x32xi1>, vector<8x32xf32>
    %197 = vector.shape_cast %187 : vector<8x1xi1> to vector<8x1xi1>
    %198 = vector.broadcast %197 : vector<8x1xi1> to vector<8x32xi1>
    %199 = arith.select %198, %181, %134 : vector<8x32xi1>, vector<8x32xf32>
    %200 = arith.index_cast %c2_i32 : i32 to index
    %c0_48 = arith.constant 0 : index
    %c0_49 = arith.constant 0 : index
    %201 = vector.load %arg16[%200, %c0_48, %c0_49] : memref<8x8x64xf32, #tpu.memory_space<vmem>>, vector<1x8x32xf32>
    %202 = vector.shape_cast %201 : vector<1x8x32xf32> to vector<8x32xf32>
    %203 = vector.shape_cast %190 : vector<8x32xf32> to vector<1x8x32xf32>
    tpu.vector_store %arg16[%200, %c0_48, %c0_49], %203 {strides = array<i32>} : memref<8x8x64xf32, #tpu.memory_space<vmem>>, vector<1x8x32xf32>,
    %204 = arith.index_cast %143 : i32 to index
    %c0_50 = arith.constant 0 : index
    %c32_51 = arith.constant 32 : index
    %205 = vector.load %arg16[%204, %c0_50, %c32_51] : memref<8x8x64xf32, #tpu.memory_space<vmem>>, vector<1x8x32xf32>
    %206 = vector.shape_cast %205 : vector<1x8x32xf32> to vector<8x32xf32>
    %207 = vector.shape_cast %196 : vector<8x32xf32> to vector<1x8x32xf32>
    tpu.vector_store %arg16[%204, %c0_50, %c32_51], %207 {strides = array<i32>} : memref<8x8x64xf32, #tpu.memory_space<vmem>>, vector<1x8x32xf32>,
    %c3_i32 = arith.constant 3 : i32
    %c7_i32_52 = arith.constant 7 : i32
    %208 = arith.subi %c7_i32_52, %c3_i32 : i32
    %209 = arith.index_cast %c3_i32 : i32 to index
    %c0_53 = arith.constant 0 : index
    %c0_54 = arith.constant 0 : index
    %210 = vector.load %arg15[%209, %c0_53, %c0_54] : memref<8x8x256xf32, #tpu.memory_space<vmem>>, vector<1x8x128xf32>
    %211 = vector.shape_cast %210 : vector<1x8x128xf32> to vector<8x128xf32>
    %cst_55 = arith.constant dense<0.000000e+00> : vector<8x128xf32>
    %212 = tpu.matmul %190, %11, %cst_55 {dimension_numbers = #tpu.dot_dimension_numbers<[1], [0], [0], [1], [0, 0, 1, 1], [], []>} : vector<8x32xf32>, vector<32x128xf32>, vector<8x128xf32> -> vector<8x128xf32>
    %213 = arith.addf %211, %212 : vector<8x128xf32>
    %214 = arith.index_cast %208 : i32 to index
    %c0_56 = arith.constant 0 : index
    %c128_57 = arith.constant 128 : index
    %215 = vector.load %arg15[%214, %c0_56, %c128_57] : memref<8x8x256xf32, #tpu.memory_space<vmem>>, vector<1x8x128xf32>
    %216 = vector.shape_cast %215 : vector<1x8x128xf32> to vector<8x128xf32>
    %cst_58 = arith.constant dense<0.000000e+00> : vector<8x128xf32>
    %217 = tpu.matmul %196, %12, %cst_58 {dimension_numbers = #tpu.dot_dimension_numbers<[1], [0], [0], [1], [0, 0, 1, 1], [], []>} : vector<8x32xf32>, vector<32x128xf32>, vector<8x128xf32> -> vector<8x128xf32>
    %218 = arith.addf %216, %217 : vector<8x128xf32>
    %219 = arith.negf %213 : vector<8x128xf32>
    %220 = math.exp %219 : vector<8x128xf32>
    %cst_59 = arith.constant 1.000000e+00 : f32
    %221 = vector.broadcast %cst_59 : f32 to vector<8x128xf32>
    %222 = arith.addf %221, %220 : vector<8x128xf32>
    %223 = arith.divf %221, %222 : vector<8x128xf32>
    %224 = vector.extract_strided_slice %223 {offsets = [0, 0], sizes = [8, 32], strides = [1, 1]} : vector<8x128xf32> to vector<8x32xf32>
    %225 = vector.extract_strided_slice %223 {offsets = [0, 32], sizes = [8, 32], strides = [1, 1]} : vector<8x128xf32> to vector<8x32xf32>
    %226 = vector.extract_strided_slice %223 {offsets = [0, 96], sizes = [8, 32], strides = [1, 1]} : vector<8x128xf32> to vector<8x32xf32>
    %227 = vector.extract_strided_slice %213 {offsets = [0, 64], sizes = [8, 32], strides = [1, 1]} : vector<8x128xf32> to vector<8x32xf32>
    %228 = math.tanh %227 : vector<8x32xf32>
    %229 = arith.mulf %225, %193 : vector<8x32xf32>
    %230 = arith.mulf %224, %228 : vector<8x32xf32>
    %231 = arith.addf %229, %230 : vector<8x32xf32>
    %232 = math.tanh %231 : vector<8x32xf32>
    %233 = arith.mulf %226, %232 : vector<8x32xf32>
    %234 = arith.negf %218 : vector<8x128xf32>
    %235 = math.exp %234 : vector<8x128xf32>
    %cst_60 = arith.constant 1.000000e+00 : f32
    %236 = vector.broadcast %cst_60 : f32 to vector<8x128xf32>
    %237 = arith.addf %236, %235 : vector<8x128xf32>
    %238 = arith.divf %236, %237 : vector<8x128xf32>
    %239 = vector.extract_strided_slice %238 {offsets = [0, 0], sizes = [8, 32], strides = [1, 1]} : vector<8x128xf32> to vector<8x32xf32>
    %240 = vector.extract_strided_slice %238 {offsets = [0, 32], sizes = [8, 32], strides = [1, 1]} : vector<8x128xf32> to vector<8x32xf32>
    %241 = vector.extract_strided_slice %238 {offsets = [0, 96], sizes = [8, 32], strides = [1, 1]} : vector<8x128xf32> to vector<8x32xf32>
    %242 = vector.extract_strided_slice %218 {offsets = [0, 64], sizes = [8, 32], strides = [1, 1]} : vector<8x128xf32> to vector<8x32xf32>
    %243 = math.tanh %242 : vector<8x32xf32>
    %244 = arith.mulf %240, %199 : vector<8x32xf32>
    %245 = arith.mulf %239, %243 : vector<8x32xf32>
    %246 = arith.addf %244, %245 : vector<8x32xf32>
    %247 = math.tanh %246 : vector<8x32xf32>
    %248 = arith.mulf %241, %247 : vector<8x32xf32>
    %249 = vector.broadcast %c3_i32 : i32 to vector<8x1xi32>
    %250 = arith.cmpi slt, %249, %0 : vector<8x1xi32>
    %251 = vector.broadcast %208 : i32 to vector<8x1xi32>
    %252 = arith.cmpi slt, %251, %0 : vector<8x1xi32>
    %253 = vector.shape_cast %250 : vector<8x1xi1> to vector<8x1xi1>
    %254 = vector.broadcast %253 : vector<8x1xi1> to vector<8x32xi1>
    %255 = arith.select %254, %233, %190 : vector<8x32xi1>, vector<8x32xf32>
    %256 = vector.shape_cast %250 : vector<8x1xi1> to vector<8x1xi1>
    %257 = vector.broadcast %256 : vector<8x1xi1> to vector<8x32xi1>
    %258 = arith.select %257, %231, %193 : vector<8x32xi1>, vector<8x32xf32>
    %259 = vector.shape_cast %252 : vector<8x1xi1> to vector<8x1xi1>
    %260 = vector.broadcast %259 : vector<8x1xi1> to vector<8x32xi1>
    %261 = arith.select %260, %248, %196 : vector<8x32xi1>, vector<8x32xf32>
    %262 = vector.shape_cast %252 : vector<8x1xi1> to vector<8x1xi1>
    %263 = vector.broadcast %262 : vector<8x1xi1> to vector<8x32xi1>
    %264 = arith.select %263, %246, %199 : vector<8x32xi1>, vector<8x32xf32>
    %265 = arith.index_cast %c3_i32 : i32 to index
    %c0_61 = arith.constant 0 : index
    %c0_62 = arith.constant 0 : index
    %266 = vector.load %arg16[%265, %c0_61, %c0_62] : memref<8x8x64xf32, #tpu.memory_space<vmem>>, vector<1x8x32xf32>
    %267 = vector.shape_cast %266 : vector<1x8x32xf32> to vector<8x32xf32>
    %268 = vector.shape_cast %255 : vector<8x32xf32> to vector<1x8x32xf32>
    tpu.vector_store %arg16[%265, %c0_61, %c0_62], %268 {strides = array<i32>} : memref<8x8x64xf32, #tpu.memory_space<vmem>>, vector<1x8x32xf32>,
    %269 = arith.index_cast %208 : i32 to index
    %c0_63 = arith.constant 0 : index
    %c32_64 = arith.constant 32 : index
    %270 = vector.load %arg16[%269, %c0_63, %c32_64] : memref<8x8x64xf32, #tpu.memory_space<vmem>>, vector<1x8x32xf32>
    %271 = vector.shape_cast %270 : vector<1x8x32xf32> to vector<8x32xf32>
    %272 = vector.shape_cast %261 : vector<8x32xf32> to vector<1x8x32xf32>
    tpu.vector_store %arg16[%269, %c0_63, %c32_64], %272 {strides = array<i32>} : memref<8x8x64xf32, #tpu.memory_space<vmem>>, vector<1x8x32xf32>,
    %c4_i32 = arith.constant 4 : i32
    %c7_i32_65 = arith.constant 7 : i32
    %273 = arith.subi %c7_i32_65, %c4_i32 : i32
    %274 = arith.index_cast %c4_i32 : i32 to index
    %c0_66 = arith.constant 0 : index
    %c0_67 = arith.constant 0 : index
    %275 = vector.load %arg15[%274, %c0_66, %c0_67] : memref<8x8x256xf32, #tpu.memory_space<vmem>>, vector<1x8x128xf32>
    %276 = vector.shape_cast %275 : vector<1x8x128xf32> to vector<8x128xf32>
    %cst_68 = arith.constant dense<0.000000e+00> : vector<8x128xf32>
    %277 = tpu.matmul %255, %11, %cst_68 {dimension_numbers = #tpu.dot_dimension_numbers<[1], [0], [0], [1], [0, 0, 1, 1], [], []>} : vector<8x32xf32>, vector<32x128xf32>, vector<8x128xf32> -> vector<8x128xf32>
    %278 = arith.addf %276, %277 : vector<8x128xf32>
    %279 = arith.index_cast %273 : i32 to index
    %c0_69 = arith.constant 0 : index
    %c128_70 = arith.constant 128 : index
    %280 = vector.load %arg15[%279, %c0_69, %c128_70] : memref<8x8x256xf32, #tpu.memory_space<vmem>>, vector<1x8x128xf32>
    %281 = vector.shape_cast %280 : vector<1x8x128xf32> to vector<8x128xf32>
    %cst_71 = arith.constant dense<0.000000e+00> : vector<8x128xf32>
    %282 = tpu.matmul %261, %12, %cst_71 {dimension_numbers = #tpu.dot_dimension_numbers<[1], [0], [0], [1], [0, 0, 1, 1], [], []>} : vector<8x32xf32>, vector<32x128xf32>, vector<8x128xf32> -> vector<8x128xf32>
    %283 = arith.addf %281, %282 : vector<8x128xf32>
    %284 = arith.negf %278 : vector<8x128xf32>
    %285 = math.exp %284 : vector<8x128xf32>
    %cst_72 = arith.constant 1.000000e+00 : f32
    %286 = vector.broadcast %cst_72 : f32 to vector<8x128xf32>
    %287 = arith.addf %286, %285 : vector<8x128xf32>
    %288 = arith.divf %286, %287 : vector<8x128xf32>
    %289 = vector.extract_strided_slice %288 {offsets = [0, 0], sizes = [8, 32], strides = [1, 1]} : vector<8x128xf32> to vector<8x32xf32>
    %290 = vector.extract_strided_slice %288 {offsets = [0, 32], sizes = [8, 32], strides = [1, 1]} : vector<8x128xf32> to vector<8x32xf32>
    %291 = vector.extract_strided_slice %288 {offsets = [0, 96], sizes = [8, 32], strides = [1, 1]} : vector<8x128xf32> to vector<8x32xf32>
    %292 = vector.extract_strided_slice %278 {offsets = [0, 64], sizes = [8, 32], strides = [1, 1]} : vector<8x128xf32> to vector<8x32xf32>
    %293 = math.tanh %292 : vector<8x32xf32>
    %294 = arith.mulf %290, %258 : vector<8x32xf32>
    %295 = arith.mulf %289, %293 : vector<8x32xf32>
    %296 = arith.addf %294, %295 : vector<8x32xf32>
    %297 = math.tanh %296 : vector<8x32xf32>
    %298 = arith.mulf %291, %297 : vector<8x32xf32>
    %299 = arith.negf %283 : vector<8x128xf32>
    %300 = math.exp %299 : vector<8x128xf32>
    %cst_73 = arith.constant 1.000000e+00 : f32
    %301 = vector.broadcast %cst_73 : f32 to vector<8x128xf32>
    %302 = arith.addf %301, %300 : vector<8x128xf32>
    %303 = arith.divf %301, %302 : vector<8x128xf32>
    %304 = vector.extract_strided_slice %303 {offsets = [0, 0], sizes = [8, 32], strides = [1, 1]} : vector<8x128xf32> to vector<8x32xf32>
    %305 = vector.extract_strided_slice %303 {offsets = [0, 32], sizes = [8, 32], strides = [1, 1]} : vector<8x128xf32> to vector<8x32xf32>
    %306 = vector.extract_strided_slice %303 {offsets = [0, 96], sizes = [8, 32], strides = [1, 1]} : vector<8x128xf32> to vector<8x32xf32>
    %307 = vector.extract_strided_slice %283 {offsets = [0, 64], sizes = [8, 32], strides = [1, 1]} : vector<8x128xf32> to vector<8x32xf32>
    %308 = math.tanh %307 : vector<8x32xf32>
    %309 = arith.mulf %305, %264 : vector<8x32xf32>
    %310 = arith.mulf %304, %308 : vector<8x32xf32>
    %311 = arith.addf %309, %310 : vector<8x32xf32>
    %312 = math.tanh %311 : vector<8x32xf32>
    %313 = arith.mulf %306, %312 : vector<8x32xf32>
    %314 = vector.broadcast %c4_i32 : i32 to vector<8x1xi32>
    %315 = arith.cmpi slt, %314, %0 : vector<8x1xi32>
    %316 = vector.broadcast %273 : i32 to vector<8x1xi32>
    %317 = arith.cmpi slt, %316, %0 : vector<8x1xi32>
    %318 = vector.shape_cast %315 : vector<8x1xi1> to vector<8x1xi1>
    %319 = vector.broadcast %318 : vector<8x1xi1> to vector<8x32xi1>
    %320 = arith.select %319, %298, %255 : vector<8x32xi1>, vector<8x32xf32>
    %321 = vector.shape_cast %315 : vector<8x1xi1> to vector<8x1xi1>
    %322 = vector.broadcast %321 : vector<8x1xi1> to vector<8x32xi1>
    %323 = arith.select %322, %296, %258 : vector<8x32xi1>, vector<8x32xf32>
    %324 = vector.shape_cast %317 : vector<8x1xi1> to vector<8x1xi1>
    %325 = vector.broadcast %324 : vector<8x1xi1> to vector<8x32xi1>
    %326 = arith.select %325, %313, %261 : vector<8x32xi1>, vector<8x32xf32>
    %327 = vector.shape_cast %317 : vector<8x1xi1> to vector<8x1xi1>
    %328 = vector.broadcast %327 : vector<8x1xi1> to vector<8x32xi1>
    %329 = arith.select %328, %311, %264 : vector<8x32xi1>, vector<8x32xf32>
    %330 = arith.index_cast %c4_i32 : i32 to index
    %c0_74 = arith.constant 0 : index
    %c0_75 = arith.constant 0 : index
    %331 = vector.load %arg16[%330, %c0_74, %c0_75] : memref<8x8x64xf32, #tpu.memory_space<vmem>>, vector<1x8x32xf32>
    %332 = vector.shape_cast %331 : vector<1x8x32xf32> to vector<8x32xf32>
    %333 = vector.shape_cast %320 : vector<8x32xf32> to vector<1x8x32xf32>
    tpu.vector_store %arg16[%330, %c0_74, %c0_75], %333 {strides = array<i32>} : memref<8x8x64xf32, #tpu.memory_space<vmem>>, vector<1x8x32xf32>,
    %334 = arith.index_cast %273 : i32 to index
    %c0_76 = arith.constant 0 : index
    %c32_77 = arith.constant 32 : index
    %335 = vector.load %arg16[%334, %c0_76, %c32_77] : memref<8x8x64xf32, #tpu.memory_space<vmem>>, vector<1x8x32xf32>
    %336 = vector.shape_cast %335 : vector<1x8x32xf32> to vector<8x32xf32>
    %337 = vector.shape_cast %326 : vector<8x32xf32> to vector<1x8x32xf32>
    tpu.vector_store %arg16[%334, %c0_76, %c32_77], %337 {strides = array<i32>} : memref<8x8x64xf32, #tpu.memory_space<vmem>>, vector<1x8x32xf32>,
    %c5_i32 = arith.constant 5 : i32
    %c7_i32_78 = arith.constant 7 : i32
    %338 = arith.subi %c7_i32_78, %c5_i32 : i32
    %339 = arith.index_cast %c5_i32 : i32 to index
    %c0_79 = arith.constant 0 : index
    %c0_80 = arith.constant 0 : index
    %340 = vector.load %arg15[%339, %c0_79, %c0_80] : memref<8x8x256xf32, #tpu.memory_space<vmem>>, vector<1x8x128xf32>
    %341 = vector.shape_cast %340 : vector<1x8x128xf32> to vector<8x128xf32>
    %cst_81 = arith.constant dense<0.000000e+00> : vector<8x128xf32>
    %342 = tpu.matmul %320, %11, %cst_81 {dimension_numbers = #tpu.dot_dimension_numbers<[1], [0], [0], [1], [0, 0, 1, 1], [], []>} : vector<8x32xf32>, vector<32x128xf32>, vector<8x128xf32> -> vector<8x128xf32>
    %343 = arith.addf %341, %342 : vector<8x128xf32>
    %344 = arith.index_cast %338 : i32 to index
    %c0_82 = arith.constant 0 : index
    %c128_83 = arith.constant 128 : index
    %345 = vector.load %arg15[%344, %c0_82, %c128_83] : memref<8x8x256xf32, #tpu.memory_space<vmem>>, vector<1x8x128xf32>
    %346 = vector.shape_cast %345 : vector<1x8x128xf32> to vector<8x128xf32>
    %cst_84 = arith.constant dense<0.000000e+00> : vector<8x128xf32>
    %347 = tpu.matmul %326, %12, %cst_84 {dimension_numbers = #tpu.dot_dimension_numbers<[1], [0], [0], [1], [0, 0, 1, 1], [], []>} : vector<8x32xf32>, vector<32x128xf32>, vector<8x128xf32> -> vector<8x128xf32>
    %348 = arith.addf %346, %347 : vector<8x128xf32>
    %349 = arith.negf %343 : vector<8x128xf32>
    %350 = math.exp %349 : vector<8x128xf32>
    %cst_85 = arith.constant 1.000000e+00 : f32
    %351 = vector.broadcast %cst_85 : f32 to vector<8x128xf32>
    %352 = arith.addf %351, %350 : vector<8x128xf32>
    %353 = arith.divf %351, %352 : vector<8x128xf32>
    %354 = vector.extract_strided_slice %353 {offsets = [0, 0], sizes = [8, 32], strides = [1, 1]} : vector<8x128xf32> to vector<8x32xf32>
    %355 = vector.extract_strided_slice %353 {offsets = [0, 32], sizes = [8, 32], strides = [1, 1]} : vector<8x128xf32> to vector<8x32xf32>
    %356 = vector.extract_strided_slice %353 {offsets = [0, 96], sizes = [8, 32], strides = [1, 1]} : vector<8x128xf32> to vector<8x32xf32>
    %357 = vector.extract_strided_slice %343 {offsets = [0, 64], sizes = [8, 32], strides = [1, 1]} : vector<8x128xf32> to vector<8x32xf32>
    %358 = math.tanh %357 : vector<8x32xf32>
    %359 = arith.mulf %355, %323 : vector<8x32xf32>
    %360 = arith.mulf %354, %358 : vector<8x32xf32>
    %361 = arith.addf %359, %360 : vector<8x32xf32>
    %362 = math.tanh %361 : vector<8x32xf32>
    %363 = arith.mulf %356, %362 : vector<8x32xf32>
    %364 = arith.negf %348 : vector<8x128xf32>
    %365 = math.exp %364 : vector<8x128xf32>
    %cst_86 = arith.constant 1.000000e+00 : f32
    %366 = vector.broadcast %cst_86 : f32 to vector<8x128xf32>
    %367 = arith.addf %366, %365 : vector<8x128xf32>
    %368 = arith.divf %366, %367 : vector<8x128xf32>
    %369 = vector.extract_strided_slice %368 {offsets = [0, 0], sizes = [8, 32], strides = [1, 1]} : vector<8x128xf32> to vector<8x32xf32>
    %370 = vector.extract_strided_slice %368 {offsets = [0, 32], sizes = [8, 32], strides = [1, 1]} : vector<8x128xf32> to vector<8x32xf32>
    %371 = vector.extract_strided_slice %368 {offsets = [0, 96], sizes = [8, 32], strides = [1, 1]} : vector<8x128xf32> to vector<8x32xf32>
    %372 = vector.extract_strided_slice %348 {offsets = [0, 64], sizes = [8, 32], strides = [1, 1]} : vector<8x128xf32> to vector<8x32xf32>
    %373 = math.tanh %372 : vector<8x32xf32>
    %374 = arith.mulf %370, %329 : vector<8x32xf32>
    %375 = arith.mulf %369, %373 : vector<8x32xf32>
    %376 = arith.addf %374, %375 : vector<8x32xf32>
    %377 = math.tanh %376 : vector<8x32xf32>
    %378 = arith.mulf %371, %377 : vector<8x32xf32>
    %379 = vector.broadcast %c5_i32 : i32 to vector<8x1xi32>
    %380 = arith.cmpi slt, %379, %0 : vector<8x1xi32>
    %381 = vector.broadcast %338 : i32 to vector<8x1xi32>
    %382 = arith.cmpi slt, %381, %0 : vector<8x1xi32>
    %383 = vector.shape_cast %380 : vector<8x1xi1> to vector<8x1xi1>
    %384 = vector.broadcast %383 : vector<8x1xi1> to vector<8x32xi1>
    %385 = arith.select %384, %363, %320 : vector<8x32xi1>, vector<8x32xf32>
    %386 = vector.shape_cast %380 : vector<8x1xi1> to vector<8x1xi1>
    %387 = vector.broadcast %386 : vector<8x1xi1> to vector<8x32xi1>
    %388 = arith.select %387, %361, %323 : vector<8x32xi1>, vector<8x32xf32>
    %389 = vector.shape_cast %382 : vector<8x1xi1> to vector<8x1xi1>
    %390 = vector.broadcast %389 : vector<8x1xi1> to vector<8x32xi1>
    %391 = arith.select %390, %378, %326 : vector<8x32xi1>, vector<8x32xf32>
    %392 = vector.shape_cast %382 : vector<8x1xi1> to vector<8x1xi1>
    %393 = vector.broadcast %392 : vector<8x1xi1> to vector<8x32xi1>
    %394 = arith.select %393, %376, %329 : vector<8x32xi1>, vector<8x32xf32>
    %395 = arith.index_cast %c5_i32 : i32 to index
    %c0_87 = arith.constant 0 : index
    %c0_88 = arith.constant 0 : index
    %396 = vector.load %arg16[%395, %c0_87, %c0_88] : memref<8x8x64xf32, #tpu.memory_space<vmem>>, vector<1x8x32xf32>
    %397 = vector.shape_cast %396 : vector<1x8x32xf32> to vector<8x32xf32>
    %398 = vector.shape_cast %385 : vector<8x32xf32> to vector<1x8x32xf32>
    tpu.vector_store %arg16[%395, %c0_87, %c0_88], %398 {strides = array<i32>} : memref<8x8x64xf32, #tpu.memory_space<vmem>>, vector<1x8x32xf32>,
    %399 = arith.index_cast %338 : i32 to index
    %c0_89 = arith.constant 0 : index
    %c32_90 = arith.constant 32 : index
    %400 = vector.load %arg16[%399, %c0_89, %c32_90] : memref<8x8x64xf32, #tpu.memory_space<vmem>>, vector<1x8x32xf32>
    %401 = vector.shape_cast %400 : vector<1x8x32xf32> to vector<8x32xf32>
    %402 = vector.shape_cast %391 : vector<8x32xf32> to vector<1x8x32xf32>
    tpu.vector_store %arg16[%399, %c0_89, %c32_90], %402 {strides = array<i32>} : memref<8x8x64xf32, #tpu.memory_space<vmem>>, vector<1x8x32xf32>,
    %c6_i32 = arith.constant 6 : i32
    %c7_i32_91 = arith.constant 7 : i32
    %403 = arith.subi %c7_i32_91, %c6_i32 : i32
    %404 = arith.index_cast %c6_i32 : i32 to index
    %c0_92 = arith.constant 0 : index
    %c0_93 = arith.constant 0 : index
    %405 = vector.load %arg15[%404, %c0_92, %c0_93] : memref<8x8x256xf32, #tpu.memory_space<vmem>>, vector<1x8x128xf32>
    %406 = vector.shape_cast %405 : vector<1x8x128xf32> to vector<8x128xf32>
    %cst_94 = arith.constant dense<0.000000e+00> : vector<8x128xf32>
    %407 = tpu.matmul %385, %11, %cst_94 {dimension_numbers = #tpu.dot_dimension_numbers<[1], [0], [0], [1], [0, 0, 1, 1], [], []>} : vector<8x32xf32>, vector<32x128xf32>, vector<8x128xf32> -> vector<8x128xf32>
    %408 = arith.addf %406, %407 : vector<8x128xf32>
    %409 = arith.index_cast %403 : i32 to index
    %c0_95 = arith.constant 0 : index
    %c128_96 = arith.constant 128 : index
    %410 = vector.load %arg15[%409, %c0_95, %c128_96] : memref<8x8x256xf32, #tpu.memory_space<vmem>>, vector<1x8x128xf32>
    %411 = vector.shape_cast %410 : vector<1x8x128xf32> to vector<8x128xf32>
    %cst_97 = arith.constant dense<0.000000e+00> : vector<8x128xf32>
    %412 = tpu.matmul %391, %12, %cst_97 {dimension_numbers = #tpu.dot_dimension_numbers<[1], [0], [0], [1], [0, 0, 1, 1], [], []>} : vector<8x32xf32>, vector<32x128xf32>, vector<8x128xf32> -> vector<8x128xf32>
    %413 = arith.addf %411, %412 : vector<8x128xf32>
    %414 = arith.negf %408 : vector<8x128xf32>
    %415 = math.exp %414 : vector<8x128xf32>
    %cst_98 = arith.constant 1.000000e+00 : f32
    %416 = vector.broadcast %cst_98 : f32 to vector<8x128xf32>
    %417 = arith.addf %416, %415 : vector<8x128xf32>
    %418 = arith.divf %416, %417 : vector<8x128xf32>
    %419 = vector.extract_strided_slice %418 {offsets = [0, 0], sizes = [8, 32], strides = [1, 1]} : vector<8x128xf32> to vector<8x32xf32>
    %420 = vector.extract_strided_slice %418 {offsets = [0, 32], sizes = [8, 32], strides = [1, 1]} : vector<8x128xf32> to vector<8x32xf32>
    %421 = vector.extract_strided_slice %418 {offsets = [0, 96], sizes = [8, 32], strides = [1, 1]} : vector<8x128xf32> to vector<8x32xf32>
    %422 = vector.extract_strided_slice %408 {offsets = [0, 64], sizes = [8, 32], strides = [1, 1]} : vector<8x128xf32> to vector<8x32xf32>
    %423 = math.tanh %422 : vector<8x32xf32>
    %424 = arith.mulf %420, %388 : vector<8x32xf32>
    %425 = arith.mulf %419, %423 : vector<8x32xf32>
    %426 = arith.addf %424, %425 : vector<8x32xf32>
    %427 = math.tanh %426 : vector<8x32xf32>
    %428 = arith.mulf %421, %427 : vector<8x32xf32>
    %429 = arith.negf %413 : vector<8x128xf32>
    %430 = math.exp %429 : vector<8x128xf32>
    %cst_99 = arith.constant 1.000000e+00 : f32
    %431 = vector.broadcast %cst_99 : f32 to vector<8x128xf32>
    %432 = arith.addf %431, %430 : vector<8x128xf32>
    %433 = arith.divf %431, %432 : vector<8x128xf32>
    %434 = vector.extract_strided_slice %433 {offsets = [0, 0], sizes = [8, 32], strides = [1, 1]} : vector<8x128xf32> to vector<8x32xf32>
    %435 = vector.extract_strided_slice %433 {offsets = [0, 32], sizes = [8, 32], strides = [1, 1]} : vector<8x128xf32> to vector<8x32xf32>
    %436 = vector.extract_strided_slice %433 {offsets = [0, 96], sizes = [8, 32], strides = [1, 1]} : vector<8x128xf32> to vector<8x32xf32>
    %437 = vector.extract_strided_slice %413 {offsets = [0, 64], sizes = [8, 32], strides = [1, 1]} : vector<8x128xf32> to vector<8x32xf32>
    %438 = math.tanh %437 : vector<8x32xf32>
    %439 = arith.mulf %435, %394 : vector<8x32xf32>
    %440 = arith.mulf %434, %438 : vector<8x32xf32>
    %441 = arith.addf %439, %440 : vector<8x32xf32>
    %442 = math.tanh %441 : vector<8x32xf32>
    %443 = arith.mulf %436, %442 : vector<8x32xf32>
    %444 = vector.broadcast %c6_i32 : i32 to vector<8x1xi32>
    %445 = arith.cmpi slt, %444, %0 : vector<8x1xi32>
    %446 = vector.broadcast %403 : i32 to vector<8x1xi32>
    %447 = arith.cmpi slt, %446, %0 : vector<8x1xi32>
    %448 = vector.shape_cast %445 : vector<8x1xi1> to vector<8x1xi1>
    %449 = vector.broadcast %448 : vector<8x1xi1> to vector<8x32xi1>
    %450 = arith.select %449, %428, %385 : vector<8x32xi1>, vector<8x32xf32>
    %451 = vector.shape_cast %445 : vector<8x1xi1> to vector<8x1xi1>
    %452 = vector.broadcast %451 : vector<8x1xi1> to vector<8x32xi1>
    %453 = arith.select %452, %426, %388 : vector<8x32xi1>, vector<8x32xf32>
    %454 = vector.shape_cast %447 : vector<8x1xi1> to vector<8x1xi1>
    %455 = vector.broadcast %454 : vector<8x1xi1> to vector<8x32xi1>
    %456 = arith.select %455, %443, %391 : vector<8x32xi1>, vector<8x32xf32>
    %457 = vector.shape_cast %447 : vector<8x1xi1> to vector<8x1xi1>
    %458 = vector.broadcast %457 : vector<8x1xi1> to vector<8x32xi1>
    %459 = arith.select %458, %441, %394 : vector<8x32xi1>, vector<8x32xf32>
    %460 = arith.index_cast %c6_i32 : i32 to index
    %c0_100 = arith.constant 0 : index
    %c0_101 = arith.constant 0 : index
    %461 = vector.load %arg16[%460, %c0_100, %c0_101] : memref<8x8x64xf32, #tpu.memory_space<vmem>>, vector<1x8x32xf32>
    %462 = vector.shape_cast %461 : vector<1x8x32xf32> to vector<8x32xf32>
    %463 = vector.shape_cast %450 : vector<8x32xf32> to vector<1x8x32xf32>
    tpu.vector_store %arg16[%460, %c0_100, %c0_101], %463 {strides = array<i32>} : memref<8x8x64xf32, #tpu.memory_space<vmem>>, vector<1x8x32xf32>,
    %464 = arith.index_cast %403 : i32 to index
    %c0_102 = arith.constant 0 : index
    %c32_103 = arith.constant 32 : index
    %465 = vector.load %arg16[%464, %c0_102, %c32_103] : memref<8x8x64xf32, #tpu.memory_space<vmem>>, vector<1x8x32xf32>
    %466 = vector.shape_cast %465 : vector<1x8x32xf32> to vector<8x32xf32>
    %467 = vector.shape_cast %456 : vector<8x32xf32> to vector<1x8x32xf32>
    tpu.vector_store %arg16[%464, %c0_102, %c32_103], %467 {strides = array<i32>} : memref<8x8x64xf32, #tpu.memory_space<vmem>>, vector<1x8x32xf32>,
    %c7_i32_104 = arith.constant 7 : i32
    %c7_i32_105 = arith.constant 7 : i32
    %468 = arith.subi %c7_i32_105, %c7_i32_104 : i32
    %469 = arith.index_cast %c7_i32_104 : i32 to index
    %c0_106 = arith.constant 0 : index
    %c0_107 = arith.constant 0 : index
    %470 = vector.load %arg15[%469, %c0_106, %c0_107] : memref<8x8x256xf32, #tpu.memory_space<vmem>>, vector<1x8x128xf32>
    %471 = vector.shape_cast %470 : vector<1x8x128xf32> to vector<8x128xf32>
    %cst_108 = arith.constant dense<0.000000e+00> : vector<8x128xf32>
    %472 = tpu.matmul %450, %11, %cst_108 {dimension_numbers = #tpu.dot_dimension_numbers<[1], [0], [0], [1], [0, 0, 1, 1], [], []>} : vector<8x32xf32>, vector<32x128xf32>, vector<8x128xf32> -> vector<8x128xf32>
    %473 = arith.addf %471, %472 : vector<8x128xf32>
    %474 = arith.index_cast %468 : i32 to index
    %c0_109 = arith.constant 0 : index
    %c128_110 = arith.constant 128 : index
    %475 = vector.load %arg15[%474, %c0_109, %c128_110] : memref<8x8x256xf32, #tpu.memory_space<vmem>>, vector<1x8x128xf32>
    %476 = vector.shape_cast %475 : vector<1x8x128xf32> to vector<8x128xf32>
    %cst_111 = arith.constant dense<0.000000e+00> : vector<8x128xf32>
    %477 = tpu.matmul %456, %12, %cst_111 {dimension_numbers = #tpu.dot_dimension_numbers<[1], [0], [0], [1], [0, 0, 1, 1], [], []>} : vector<8x32xf32>, vector<32x128xf32>, vector<8x128xf32> -> vector<8x128xf32>
    %478 = arith.addf %476, %477 : vector<8x128xf32>
    %479 = arith.negf %473 : vector<8x128xf32>
    %480 = math.exp %479 : vector<8x128xf32>
    %cst_112 = arith.constant 1.000000e+00 : f32
    %481 = vector.broadcast %cst_112 : f32 to vector<8x128xf32>
    %482 = arith.addf %481, %480 : vector<8x128xf32>
    %483 = arith.divf %481, %482 : vector<8x128xf32>
    %484 = vector.extract_strided_slice %483 {offsets = [0, 0], sizes = [8, 32], strides = [1, 1]} : vector<8x128xf32> to vector<8x32xf32>
    %485 = vector.extract_strided_slice %483 {offsets = [0, 32], sizes = [8, 32], strides = [1, 1]} : vector<8x128xf32> to vector<8x32xf32>
    %486 = vector.extract_strided_slice %483 {offsets = [0, 96], sizes = [8, 32], strides = [1, 1]} : vector<8x128xf32> to vector<8x32xf32>
    %487 = vector.extract_strided_slice %473 {offsets = [0, 64], sizes = [8, 32], strides = [1, 1]} : vector<8x128xf32> to vector<8x32xf32>
    %488 = math.tanh %487 : vector<8x32xf32>
    %489 = arith.mulf %485, %453 : vector<8x32xf32>
    %490 = arith.mulf %484, %488 : vector<8x32xf32>
    %491 = arith.addf %489, %490 : vector<8x32xf32>
    %492 = math.tanh %491 : vector<8x32xf32>
    %493 = arith.mulf %486, %492 : vector<8x32xf32>
    %494 = arith.negf %478 : vector<8x128xf32>
    %495 = math.exp %494 : vector<8x128xf32>
    %cst_113 = arith.constant 1.000000e+00 : f32
    %496 = vector.broadcast %cst_113 : f32 to vector<8x128xf32>
    %497 = arith.addf %496, %495 : vector<8x128xf32>
    %498 = arith.divf %496, %497 : vector<8x128xf32>
    %499 = vector.extract_strided_slice %498 {offsets = [0, 0], sizes = [8, 32], strides = [1, 1]} : vector<8x128xf32> to vector<8x32xf32>
    %500 = vector.extract_strided_slice %498 {offsets = [0, 32], sizes = [8, 32], strides = [1, 1]} : vector<8x128xf32> to vector<8x32xf32>
    %501 = vector.extract_strided_slice %498 {offsets = [0, 96], sizes = [8, 32], strides = [1, 1]} : vector<8x128xf32> to vector<8x32xf32>
    %502 = vector.extract_strided_slice %478 {offsets = [0, 64], sizes = [8, 32], strides = [1, 1]} : vector<8x128xf32> to vector<8x32xf32>
    %503 = math.tanh %502 : vector<8x32xf32>
    %504 = arith.mulf %500, %459 : vector<8x32xf32>
    %505 = arith.mulf %499, %503 : vector<8x32xf32>
    %506 = arith.addf %504, %505 : vector<8x32xf32>
    %507 = math.tanh %506 : vector<8x32xf32>
    %508 = arith.mulf %501, %507 : vector<8x32xf32>
    %509 = vector.broadcast %c7_i32_104 : i32 to vector<8x1xi32>
    %510 = arith.cmpi slt, %509, %0 : vector<8x1xi32>
    %511 = vector.broadcast %468 : i32 to vector<8x1xi32>
    %512 = arith.cmpi slt, %511, %0 : vector<8x1xi32>
    %513 = vector.shape_cast %510 : vector<8x1xi1> to vector<8x1xi1>
    %514 = vector.broadcast %513 : vector<8x1xi1> to vector<8x32xi1>
    %515 = arith.select %514, %493, %450 : vector<8x32xi1>, vector<8x32xf32>
    %516 = vector.shape_cast %510 : vector<8x1xi1> to vector<8x1xi1>
    %517 = vector.broadcast %516 : vector<8x1xi1> to vector<8x32xi1>
    %518 = arith.select %517, %491, %453 : vector<8x32xi1>, vector<8x32xf32>
    %519 = vector.shape_cast %512 : vector<8x1xi1> to vector<8x1xi1>
    %520 = vector.broadcast %519 : vector<8x1xi1> to vector<8x32xi1>
    %521 = arith.select %520, %508, %456 : vector<8x32xi1>, vector<8x32xf32>
    %522 = vector.shape_cast %512 : vector<8x1xi1> to vector<8x1xi1>
    %523 = vector.broadcast %522 : vector<8x1xi1> to vector<8x32xi1>
    %524 = arith.select %523, %506, %459 : vector<8x32xi1>, vector<8x32xf32>
    %525 = arith.index_cast %c7_i32_104 : i32 to index
    %c0_114 = arith.constant 0 : index
    %c0_115 = arith.constant 0 : index
    %526 = vector.load %arg16[%525, %c0_114, %c0_115] : memref<8x8x64xf32, #tpu.memory_space<vmem>>, vector<1x8x32xf32>
    %527 = vector.shape_cast %526 : vector<1x8x32xf32> to vector<8x32xf32>
    %528 = vector.shape_cast %515 : vector<8x32xf32> to vector<1x8x32xf32>
    tpu.vector_store %arg16[%525, %c0_114, %c0_115], %528 {strides = array<i32>} : memref<8x8x64xf32, #tpu.memory_space<vmem>>, vector<1x8x32xf32>,
    %529 = arith.index_cast %468 : i32 to index
    %c0_116 = arith.constant 0 : index
    %c32_117 = arith.constant 32 : index
    %530 = vector.load %arg16[%529, %c0_116, %c32_117] : memref<8x8x64xf32, #tpu.memory_space<vmem>>, vector<1x8x32xf32>
    %531 = vector.shape_cast %530 : vector<1x8x32xf32> to vector<8x32xf32>
    %532 = vector.shape_cast %521 : vector<8x32xf32> to vector<1x8x32xf32>
    tpu.vector_store %arg16[%529, %c0_116, %c32_117], %532 {strides = array<i32>} : memref<8x8x64xf32, #tpu.memory_space<vmem>>, vector<1x8x32xf32>,
    %c8_i32 = arith.constant 8 : i32
    %c0_118 = arith.constant 0 : index
    %c0_119 = arith.constant 0 : index
    %c0_120 = arith.constant 0 : index
    %533 = vector.load %arg16[%c0_118, %c0_119, %c0_120] : memref<8x8x64xf32, #tpu.memory_space<vmem>>, vector<8x8x64xf32>
    %534 = vector.shape_cast %533 : vector<8x8x64xf32> to vector<64x64xf32>
    %c0_121 = arith.constant 0 : index
    %c0_122 = arith.constant 0 : index
    %535 = vector.load %arg7[%c0_121, %c0_122] : memref<64x256xf32, #tpu.memory_space<vmem>>, vector<64x256xf32>
    %cst_123 = arith.constant dense<0.000000e+00> : vector<64x256xf32>
    %536 = tpu.matmul %534, %535, %cst_123 {dimension_numbers = #tpu.dot_dimension_numbers<[1], [0], [0], [1], [0, 0, 1, 1], [], []>} : vector<64x64xf32>, vector<64x256xf32>, vector<64x256xf32> -> vector<64x256xf32>
    %c0_124 = arith.constant 0 : index
    %c0_125 = arith.constant 0 : index
    %537 = vector.load %arg8[%c0_124, %c0_125] : memref<1x256xf32, #tpu.memory_space<vmem>>, vector<1x256xf32>
    %538 = vector.broadcast %537 : vector<1x256xf32> to vector<64x256xf32>
    %539 = arith.addf %536, %538 : vector<64x256xf32>
    %540 = vector.shape_cast %539 : vector<64x256xf32> to vector<8x8x256xf32>
    %c0_126 = arith.constant 0 : index
    %c0_127 = arith.constant 0 : index
    %c0_128 = arith.constant 0 : index
    %541 = vector.load %arg17[%c0_126, %c0_127, %c0_128] : memref<8x8x256xf32, #tpu.memory_space<vmem>>, vector<8x8x256xf32>
    tpu.vector_store %arg17[%c0_126, %c0_127, %c0_128], %540 {strides = array<i32>} : memref<8x8x256xf32, #tpu.memory_space<vmem>>, vector<8x8x256xf32>,
    %c0_129 = arith.constant 0 : index
    %c0_130 = arith.constant 0 : index
    %542 = vector.load %arg9[%c0_129, %c0_130] : memref<32x128xf32, #tpu.memory_space<vmem>>, vector<32x128xf32>
    %c0_131 = arith.constant 0 : index
    %c0_132 = arith.constant 0 : index
    %543 = vector.load %arg10[%c0_131, %c0_132] : memref<32x128xf32, #tpu.memory_space<vmem>>, vector<32x128xf32>
    %c0_i32_133 = arith.constant 0 : i32
    %c7_i32_134 = arith.constant 7 : i32
    %544 = arith.subi %c7_i32_134, %c0_i32_133 : i32
    %545 = arith.index_cast %c0_i32_133 : i32 to index
    %c0_135 = arith.constant 0 : index
    %c0_136 = arith.constant 0 : index
    %546 = vector.load %arg17[%545, %c0_135, %c0_136] : memref<8x8x256xf32, #tpu.memory_space<vmem>>, vector<1x8x128xf32>
    %547 = vector.shape_cast %546 : vector<1x8x128xf32> to vector<8x128xf32>
    %cst_137 = arith.constant dense<0.000000e+00> : vector<8x128xf32>
    %548 = tpu.matmul %1, %542, %cst_137 {dimension_numbers = #tpu.dot_dimension_numbers<[1], [0], [0], [1], [0, 0, 1, 1], [], []>} : vector<8x32xf32>, vector<32x128xf32>, vector<8x128xf32> -> vector<8x128xf32>
    %549 = arith.addf %547, %548 : vector<8x128xf32>
    %550 = arith.index_cast %544 : i32 to index
    %c0_138 = arith.constant 0 : index
    %c128_139 = arith.constant 128 : index
    %551 = vector.load %arg17[%550, %c0_138, %c128_139] : memref<8x8x256xf32, #tpu.memory_space<vmem>>, vector<1x8x128xf32>
    %552 = vector.shape_cast %551 : vector<1x8x128xf32> to vector<8x128xf32>
    %cst_140 = arith.constant dense<0.000000e+00> : vector<8x128xf32>
    %553 = tpu.matmul %1, %543, %cst_140 {dimension_numbers = #tpu.dot_dimension_numbers<[1], [0], [0], [1], [0, 0, 1, 1], [], []>} : vector<8x32xf32>, vector<32x128xf32>, vector<8x128xf32> -> vector<8x128xf32>
    %554 = arith.addf %552, %553 : vector<8x128xf32>
    %555 = arith.negf %549 : vector<8x128xf32>
    %556 = math.exp %555 : vector<8x128xf32>
    %cst_141 = arith.constant 1.000000e+00 : f32
    %557 = vector.broadcast %cst_141 : f32 to vector<8x128xf32>
    %558 = arith.addf %557, %556 : vector<8x128xf32>
    %559 = arith.divf %557, %558 : vector<8x128xf32>
    %560 = vector.extract_strided_slice %559 {offsets = [0, 0], sizes = [8, 32], strides = [1, 1]} : vector<8x128xf32> to vector<8x32xf32>
    %561 = vector.extract_strided_slice %559 {offsets = [0, 32], sizes = [8, 32], strides = [1, 1]} : vector<8x128xf32> to vector<8x32xf32>
    %562 = vector.extract_strided_slice %559 {offsets = [0, 96], sizes = [8, 32], strides = [1, 1]} : vector<8x128xf32> to vector<8x32xf32>
    %563 = vector.extract_strided_slice %549 {offsets = [0, 64], sizes = [8, 32], strides = [1, 1]} : vector<8x128xf32> to vector<8x32xf32>
    %564 = math.tanh %563 : vector<8x32xf32>
    %565 = arith.mulf %561, %1 : vector<8x32xf32>
    %566 = arith.mulf %560, %564 : vector<8x32xf32>
    %567 = arith.addf %565, %566 : vector<8x32xf32>
    %568 = math.tanh %567 : vector<8x32xf32>
    %569 = arith.mulf %562, %568 : vector<8x32xf32>
    %570 = arith.negf %554 : vector<8x128xf32>
    %571 = math.exp %570 : vector<8x128xf32>
    %cst_142 = arith.constant 1.000000e+00 : f32
    %572 = vector.broadcast %cst_142 : f32 to vector<8x128xf32>
    %573 = arith.addf %572, %571 : vector<8x128xf32>
    %574 = arith.divf %572, %573 : vector<8x128xf32>
    %575 = vector.extract_strided_slice %574 {offsets = [0, 0], sizes = [8, 32], strides = [1, 1]} : vector<8x128xf32> to vector<8x32xf32>
    %576 = vector.extract_strided_slice %574 {offsets = [0, 32], sizes = [8, 32], strides = [1, 1]} : vector<8x128xf32> to vector<8x32xf32>
    %577 = vector.extract_strided_slice %574 {offsets = [0, 96], sizes = [8, 32], strides = [1, 1]} : vector<8x128xf32> to vector<8x32xf32>
    %578 = vector.extract_strided_slice %554 {offsets = [0, 64], sizes = [8, 32], strides = [1, 1]} : vector<8x128xf32> to vector<8x32xf32>
    %579 = math.tanh %578 : vector<8x32xf32>
    %580 = arith.mulf %576, %1 : vector<8x32xf32>
    %581 = arith.mulf %575, %579 : vector<8x32xf32>
    %582 = arith.addf %580, %581 : vector<8x32xf32>
    %583 = math.tanh %582 : vector<8x32xf32>
    %584 = arith.mulf %577, %583 : vector<8x32xf32>
    %585 = vector.broadcast %c0_i32_133 : i32 to vector<8x1xi32>
    %586 = arith.cmpi slt, %585, %0 : vector<8x1xi32>
    %587 = vector.broadcast %544 : i32 to vector<8x1xi32>
    %588 = arith.cmpi slt, %587, %0 : vector<8x1xi32>
    %589 = vector.shape_cast %586 : vector<8x1xi1> to vector<8x1xi1>
    %590 = vector.broadcast %589 : vector<8x1xi1> to vector<8x32xi1>
    %591 = arith.select %590, %569, %1 : vector<8x32xi1>, vector<8x32xf32>
    %592 = vector.shape_cast %586 : vector<8x1xi1> to vector<8x1xi1>
    %593 = vector.broadcast %592 : vector<8x1xi1> to vector<8x32xi1>
    %594 = arith.select %593, %567, %1 : vector<8x32xi1>, vector<8x32xf32>
    %595 = vector.shape_cast %588 : vector<8x1xi1> to vector<8x1xi1>
    %596 = vector.broadcast %595 : vector<8x1xi1> to vector<8x32xi1>
    %597 = arith.select %596, %584, %1 : vector<8x32xi1>, vector<8x32xf32>
    %598 = vector.shape_cast %588 : vector<8x1xi1> to vector<8x1xi1>
    %599 = vector.broadcast %598 : vector<8x1xi1> to vector<8x32xi1>
    %600 = arith.select %599, %582, %1 : vector<8x32xi1>, vector<8x32xf32>
    %c1_i32_143 = arith.constant 1 : i32
    %c7_i32_144 = arith.constant 7 : i32
    %601 = arith.subi %c7_i32_144, %c1_i32_143 : i32
    %602 = arith.index_cast %c1_i32_143 : i32 to index
    %c0_145 = arith.constant 0 : index
    %c0_146 = arith.constant 0 : index
    %603 = vector.load %arg17[%602, %c0_145, %c0_146] : memref<8x8x256xf32, #tpu.memory_space<vmem>>, vector<1x8x128xf32>
    %604 = vector.shape_cast %603 : vector<1x8x128xf32> to vector<8x128xf32>
    %cst_147 = arith.constant dense<0.000000e+00> : vector<8x128xf32>
    %605 = tpu.matmul %591, %542, %cst_147 {dimension_numbers = #tpu.dot_dimension_numbers<[1], [0], [0], [1], [0, 0, 1, 1], [], []>} : vector<8x32xf32>, vector<32x128xf32>, vector<8x128xf32> -> vector<8x128xf32>
    %606 = arith.addf %604, %605 : vector<8x128xf32>
    %607 = arith.index_cast %601 : i32 to index
    %c0_148 = arith.constant 0 : index
    %c128_149 = arith.constant 128 : index
    %608 = vector.load %arg17[%607, %c0_148, %c128_149] : memref<8x8x256xf32, #tpu.memory_space<vmem>>, vector<1x8x128xf32>
    %609 = vector.shape_cast %608 : vector<1x8x128xf32> to vector<8x128xf32>
    %cst_150 = arith.constant dense<0.000000e+00> : vector<8x128xf32>
    %610 = tpu.matmul %597, %543, %cst_150 {dimension_numbers = #tpu.dot_dimension_numbers<[1], [0], [0], [1], [0, 0, 1, 1], [], []>} : vector<8x32xf32>, vector<32x128xf32>, vector<8x128xf32> -> vector<8x128xf32>
    %611 = arith.addf %609, %610 : vector<8x128xf32>
    %612 = arith.negf %606 : vector<8x128xf32>
    %613 = math.exp %612 : vector<8x128xf32>
    %cst_151 = arith.constant 1.000000e+00 : f32
    %614 = vector.broadcast %cst_151 : f32 to vector<8x128xf32>
    %615 = arith.addf %614, %613 : vector<8x128xf32>
    %616 = arith.divf %614, %615 : vector<8x128xf32>
    %617 = vector.extract_strided_slice %616 {offsets = [0, 0], sizes = [8, 32], strides = [1, 1]} : vector<8x128xf32> to vector<8x32xf32>
    %618 = vector.extract_strided_slice %616 {offsets = [0, 32], sizes = [8, 32], strides = [1, 1]} : vector<8x128xf32> to vector<8x32xf32>
    %619 = vector.extract_strided_slice %616 {offsets = [0, 96], sizes = [8, 32], strides = [1, 1]} : vector<8x128xf32> to vector<8x32xf32>
    %620 = vector.extract_strided_slice %606 {offsets = [0, 64], sizes = [8, 32], strides = [1, 1]} : vector<8x128xf32> to vector<8x32xf32>
    %621 = math.tanh %620 : vector<8x32xf32>
    %622 = arith.mulf %618, %594 : vector<8x32xf32>
    %623 = arith.mulf %617, %621 : vector<8x32xf32>
    %624 = arith.addf %622, %623 : vector<8x32xf32>
    %625 = math.tanh %624 : vector<8x32xf32>
    %626 = arith.mulf %619, %625 : vector<8x32xf32>
    %627 = arith.negf %611 : vector<8x128xf32>
    %628 = math.exp %627 : vector<8x128xf32>
    %cst_152 = arith.constant 1.000000e+00 : f32
    %629 = vector.broadcast %cst_152 : f32 to vector<8x128xf32>
    %630 = arith.addf %629, %628 : vector<8x128xf32>
    %631 = arith.divf %629, %630 : vector<8x128xf32>
    %632 = vector.extract_strided_slice %631 {offsets = [0, 0], sizes = [8, 32], strides = [1, 1]} : vector<8x128xf32> to vector<8x32xf32>
    %633 = vector.extract_strided_slice %631 {offsets = [0, 32], sizes = [8, 32], strides = [1, 1]} : vector<8x128xf32> to vector<8x32xf32>
    %634 = vector.extract_strided_slice %631 {offsets = [0, 96], sizes = [8, 32], strides = [1, 1]} : vector<8x128xf32> to vector<8x32xf32>
    %635 = vector.extract_strided_slice %611 {offsets = [0, 64], sizes = [8, 32], strides = [1, 1]} : vector<8x128xf32> to vector<8x32xf32>
    %636 = math.tanh %635 : vector<8x32xf32>
    %637 = arith.mulf %633, %600 : vector<8x32xf32>
    %638 = arith.mulf %632, %636 : vector<8x32xf32>
    %639 = arith.addf %637, %638 : vector<8x32xf32>
    %640 = math.tanh %639 : vector<8x32xf32>
    %641 = arith.mulf %634, %640 : vector<8x32xf32>
    %642 = vector.broadcast %c1_i32_143 : i32 to vector<8x1xi32>
    %643 = arith.cmpi slt, %642, %0 : vector<8x1xi32>
    %644 = vector.broadcast %601 : i32 to vector<8x1xi32>
    %645 = arith.cmpi slt, %644, %0 : vector<8x1xi32>
    %646 = vector.shape_cast %643 : vector<8x1xi1> to vector<8x1xi1>
    %647 = vector.broadcast %646 : vector<8x1xi1> to vector<8x32xi1>
    %648 = arith.select %647, %626, %591 : vector<8x32xi1>, vector<8x32xf32>
    %649 = vector.shape_cast %643 : vector<8x1xi1> to vector<8x1xi1>
    %650 = vector.broadcast %649 : vector<8x1xi1> to vector<8x32xi1>
    %651 = arith.select %650, %624, %594 : vector<8x32xi1>, vector<8x32xf32>
    %652 = vector.shape_cast %645 : vector<8x1xi1> to vector<8x1xi1>
    %653 = vector.broadcast %652 : vector<8x1xi1> to vector<8x32xi1>
    %654 = arith.select %653, %641, %597 : vector<8x32xi1>, vector<8x32xf32>
    %655 = vector.shape_cast %645 : vector<8x1xi1> to vector<8x1xi1>
    %656 = vector.broadcast %655 : vector<8x1xi1> to vector<8x32xi1>
    %657 = arith.select %656, %639, %600 : vector<8x32xi1>, vector<8x32xf32>
    %c2_i32_153 = arith.constant 2 : i32
    %c7_i32_154 = arith.constant 7 : i32
    %658 = arith.subi %c7_i32_154, %c2_i32_153 : i32
    %659 = arith.index_cast %c2_i32_153 : i32 to index
    %c0_155 = arith.constant 0 : index
    %c0_156 = arith.constant 0 : index
    %660 = vector.load %arg17[%659, %c0_155, %c0_156] : memref<8x8x256xf32, #tpu.memory_space<vmem>>, vector<1x8x128xf32>
    %661 = vector.shape_cast %660 : vector<1x8x128xf32> to vector<8x128xf32>
    %cst_157 = arith.constant dense<0.000000e+00> : vector<8x128xf32>
    %662 = tpu.matmul %648, %542, %cst_157 {dimension_numbers = #tpu.dot_dimension_numbers<[1], [0], [0], [1], [0, 0, 1, 1], [], []>} : vector<8x32xf32>, vector<32x128xf32>, vector<8x128xf32> -> vector<8x128xf32>
    %663 = arith.addf %661, %662 : vector<8x128xf32>
    %664 = arith.index_cast %658 : i32 to index
    %c0_158 = arith.constant 0 : index
    %c128_159 = arith.constant 128 : index
    %665 = vector.load %arg17[%664, %c0_158, %c128_159] : memref<8x8x256xf32, #tpu.memory_space<vmem>>, vector<1x8x128xf32>
    %666 = vector.shape_cast %665 : vector<1x8x128xf32> to vector<8x128xf32>
    %cst_160 = arith.constant dense<0.000000e+00> : vector<8x128xf32>
    %667 = tpu.matmul %654, %543, %cst_160 {dimension_numbers = #tpu.dot_dimension_numbers<[1], [0], [0], [1], [0, 0, 1, 1], [], []>} : vector<8x32xf32>, vector<32x128xf32>, vector<8x128xf32> -> vector<8x128xf32>
    %668 = arith.addf %666, %667 : vector<8x128xf32>
    %669 = arith.negf %663 : vector<8x128xf32>
    %670 = math.exp %669 : vector<8x128xf32>
    %cst_161 = arith.constant 1.000000e+00 : f32
    %671 = vector.broadcast %cst_161 : f32 to vector<8x128xf32>
    %672 = arith.addf %671, %670 : vector<8x128xf32>
    %673 = arith.divf %671, %672 : vector<8x128xf32>
    %674 = vector.extract_strided_slice %673 {offsets = [0, 0], sizes = [8, 32], strides = [1, 1]} : vector<8x128xf32> to vector<8x32xf32>
    %675 = vector.extract_strided_slice %673 {offsets = [0, 32], sizes = [8, 32], strides = [1, 1]} : vector<8x128xf32> to vector<8x32xf32>
    %676 = vector.extract_strided_slice %673 {offsets = [0, 96], sizes = [8, 32], strides = [1, 1]} : vector<8x128xf32> to vector<8x32xf32>
    %677 = vector.extract_strided_slice %663 {offsets = [0, 64], sizes = [8, 32], strides = [1, 1]} : vector<8x128xf32> to vector<8x32xf32>
    %678 = math.tanh %677 : vector<8x32xf32>
    %679 = arith.mulf %675, %651 : vector<8x32xf32>
    %680 = arith.mulf %674, %678 : vector<8x32xf32>
    %681 = arith.addf %679, %680 : vector<8x32xf32>
    %682 = math.tanh %681 : vector<8x32xf32>
    %683 = arith.mulf %676, %682 : vector<8x32xf32>
    %684 = arith.negf %668 : vector<8x128xf32>
    %685 = math.exp %684 : vector<8x128xf32>
    %cst_162 = arith.constant 1.000000e+00 : f32
    %686 = vector.broadcast %cst_162 : f32 to vector<8x128xf32>
    %687 = arith.addf %686, %685 : vector<8x128xf32>
    %688 = arith.divf %686, %687 : vector<8x128xf32>
    %689 = vector.extract_strided_slice %688 {offsets = [0, 0], sizes = [8, 32], strides = [1, 1]} : vector<8x128xf32> to vector<8x32xf32>
    %690 = vector.extract_strided_slice %688 {offsets = [0, 32], sizes = [8, 32], strides = [1, 1]} : vector<8x128xf32> to vector<8x32xf32>
    %691 = vector.extract_strided_slice %688 {offsets = [0, 96], sizes = [8, 32], strides = [1, 1]} : vector<8x128xf32> to vector<8x32xf32>
    %692 = vector.extract_strided_slice %668 {offsets = [0, 64], sizes = [8, 32], strides = [1, 1]} : vector<8x128xf32> to vector<8x32xf32>
    %693 = math.tanh %692 : vector<8x32xf32>
    %694 = arith.mulf %690, %657 : vector<8x32xf32>
    %695 = arith.mulf %689, %693 : vector<8x32xf32>
    %696 = arith.addf %694, %695 : vector<8x32xf32>
    %697 = math.tanh %696 : vector<8x32xf32>
    %698 = arith.mulf %691, %697 : vector<8x32xf32>
    %699 = vector.broadcast %c2_i32_153 : i32 to vector<8x1xi32>
    %700 = arith.cmpi slt, %699, %0 : vector<8x1xi32>
    %701 = vector.broadcast %658 : i32 to vector<8x1xi32>
    %702 = arith.cmpi slt, %701, %0 : vector<8x1xi32>
    %703 = vector.shape_cast %700 : vector<8x1xi1> to vector<8x1xi1>
    %704 = vector.broadcast %703 : vector<8x1xi1> to vector<8x32xi1>
    %705 = arith.select %704, %683, %648 : vector<8x32xi1>, vector<8x32xf32>
    %706 = vector.shape_cast %700 : vector<8x1xi1> to vector<8x1xi1>
    %707 = vector.broadcast %706 : vector<8x1xi1> to vector<8x32xi1>
    %708 = arith.select %707, %681, %651 : vector<8x32xi1>, vector<8x32xf32>
    %709 = vector.shape_cast %702 : vector<8x1xi1> to vector<8x1xi1>
    %710 = vector.broadcast %709 : vector<8x1xi1> to vector<8x32xi1>
    %711 = arith.select %710, %698, %654 : vector<8x32xi1>, vector<8x32xf32>
    %712 = vector.shape_cast %702 : vector<8x1xi1> to vector<8x1xi1>
    %713 = vector.broadcast %712 : vector<8x1xi1> to vector<8x32xi1>
    %714 = arith.select %713, %696, %657 : vector<8x32xi1>, vector<8x32xf32>
    %c3_i32_163 = arith.constant 3 : i32
    %c7_i32_164 = arith.constant 7 : i32
    %715 = arith.subi %c7_i32_164, %c3_i32_163 : i32
    %716 = arith.index_cast %c3_i32_163 : i32 to index
    %c0_165 = arith.constant 0 : index
    %c0_166 = arith.constant 0 : index
    %717 = vector.load %arg17[%716, %c0_165, %c0_166] : memref<8x8x256xf32, #tpu.memory_space<vmem>>, vector<1x8x128xf32>
    %718 = vector.shape_cast %717 : vector<1x8x128xf32> to vector<8x128xf32>
    %cst_167 = arith.constant dense<0.000000e+00> : vector<8x128xf32>
    %719 = tpu.matmul %705, %542, %cst_167 {dimension_numbers = #tpu.dot_dimension_numbers<[1], [0], [0], [1], [0, 0, 1, 1], [], []>} : vector<8x32xf32>, vector<32x128xf32>, vector<8x128xf32> -> vector<8x128xf32>
    %720 = arith.addf %718, %719 : vector<8x128xf32>
    %721 = arith.index_cast %715 : i32 to index
    %c0_168 = arith.constant 0 : index
    %c128_169 = arith.constant 128 : index
    %722 = vector.load %arg17[%721, %c0_168, %c128_169] : memref<8x8x256xf32, #tpu.memory_space<vmem>>, vector<1x8x128xf32>
    %723 = vector.shape_cast %722 : vector<1x8x128xf32> to vector<8x128xf32>
    %cst_170 = arith.constant dense<0.000000e+00> : vector<8x128xf32>
    %724 = tpu.matmul %711, %543, %cst_170 {dimension_numbers = #tpu.dot_dimension_numbers<[1], [0], [0], [1], [0, 0, 1, 1], [], []>} : vector<8x32xf32>, vector<32x128xf32>, vector<8x128xf32> -> vector<8x128xf32>
    %725 = arith.addf %723, %724 : vector<8x128xf32>
    %726 = arith.negf %720 : vector<8x128xf32>
    %727 = math.exp %726 : vector<8x128xf32>
    %cst_171 = arith.constant 1.000000e+00 : f32
    %728 = vector.broadcast %cst_171 : f32 to vector<8x128xf32>
    %729 = arith.addf %728, %727 : vector<8x128xf32>
    %730 = arith.divf %728, %729 : vector<8x128xf32>
    %731 = vector.extract_strided_slice %730 {offsets = [0, 0], sizes = [8, 32], strides = [1, 1]} : vector<8x128xf32> to vector<8x32xf32>
    %732 = vector.extract_strided_slice %730 {offsets = [0, 32], sizes = [8, 32], strides = [1, 1]} : vector<8x128xf32> to vector<8x32xf32>
    %733 = vector.extract_strided_slice %730 {offsets = [0, 96], sizes = [8, 32], strides = [1, 1]} : vector<8x128xf32> to vector<8x32xf32>
    %734 = vector.extract_strided_slice %720 {offsets = [0, 64], sizes = [8, 32], strides = [1, 1]} : vector<8x128xf32> to vector<8x32xf32>
    %735 = math.tanh %734 : vector<8x32xf32>
    %736 = arith.mulf %732, %708 : vector<8x32xf32>
    %737 = arith.mulf %731, %735 : vector<8x32xf32>
    %738 = arith.addf %736, %737 : vector<8x32xf32>
    %739 = math.tanh %738 : vector<8x32xf32>
    %740 = arith.mulf %733, %739 : vector<8x32xf32>
    %741 = arith.negf %725 : vector<8x128xf32>
    %742 = math.exp %741 : vector<8x128xf32>
    %cst_172 = arith.constant 1.000000e+00 : f32
    %743 = vector.broadcast %cst_172 : f32 to vector<8x128xf32>
    %744 = arith.addf %743, %742 : vector<8x128xf32>
    %745 = arith.divf %743, %744 : vector<8x128xf32>
    %746 = vector.extract_strided_slice %745 {offsets = [0, 0], sizes = [8, 32], strides = [1, 1]} : vector<8x128xf32> to vector<8x32xf32>
    %747 = vector.extract_strided_slice %745 {offsets = [0, 32], sizes = [8, 32], strides = [1, 1]} : vector<8x128xf32> to vector<8x32xf32>
    %748 = vector.extract_strided_slice %745 {offsets = [0, 96], sizes = [8, 32], strides = [1, 1]} : vector<8x128xf32> to vector<8x32xf32>
    %749 = vector.extract_strided_slice %725 {offsets = [0, 64], sizes = [8, 32], strides = [1, 1]} : vector<8x128xf32> to vector<8x32xf32>
    %750 = math.tanh %749 : vector<8x32xf32>
    %751 = arith.mulf %747, %714 : vector<8x32xf32>
    %752 = arith.mulf %746, %750 : vector<8x32xf32>
    %753 = arith.addf %751, %752 : vector<8x32xf32>
    %754 = math.tanh %753 : vector<8x32xf32>
    %755 = arith.mulf %748, %754 : vector<8x32xf32>
    %756 = vector.broadcast %c3_i32_163 : i32 to vector<8x1xi32>
    %757 = arith.cmpi slt, %756, %0 : vector<8x1xi32>
    %758 = vector.broadcast %715 : i32 to vector<8x1xi32>
    %759 = arith.cmpi slt, %758, %0 : vector<8x1xi32>
    %760 = vector.shape_cast %757 : vector<8x1xi1> to vector<8x1xi1>
    %761 = vector.broadcast %760 : vector<8x1xi1> to vector<8x32xi1>
    %762 = arith.select %761, %740, %705 : vector<8x32xi1>, vector<8x32xf32>
    %763 = vector.shape_cast %757 : vector<8x1xi1> to vector<8x1xi1>
    %764 = vector.broadcast %763 : vector<8x1xi1> to vector<8x32xi1>
    %765 = arith.select %764, %738, %708 : vector<8x32xi1>, vector<8x32xf32>
    %766 = vector.shape_cast %759 : vector<8x1xi1> to vector<8x1xi1>
    %767 = vector.broadcast %766 : vector<8x1xi1> to vector<8x32xi1>
    %768 = arith.select %767, %755, %711 : vector<8x32xi1>, vector<8x32xf32>
    %769 = vector.shape_cast %759 : vector<8x1xi1> to vector<8x1xi1>
    %770 = vector.broadcast %769 : vector<8x1xi1> to vector<8x32xi1>
    %771 = arith.select %770, %753, %714 : vector<8x32xi1>, vector<8x32xf32>
    %c4_i32_173 = arith.constant 4 : i32
    %c7_i32_174 = arith.constant 7 : i32
    %772 = arith.subi %c7_i32_174, %c4_i32_173 : i32
    %773 = arith.index_cast %c4_i32_173 : i32 to index
    %c0_175 = arith.constant 0 : index
    %c0_176 = arith.constant 0 : index
    %774 = vector.load %arg17[%773, %c0_175, %c0_176] : memref<8x8x256xf32, #tpu.memory_space<vmem>>, vector<1x8x128xf32>
    %775 = vector.shape_cast %774 : vector<1x8x128xf32> to vector<8x128xf32>
    %cst_177 = arith.constant dense<0.000000e+00> : vector<8x128xf32>
    %776 = tpu.matmul %762, %542, %cst_177 {dimension_numbers = #tpu.dot_dimension_numbers<[1], [0], [0], [1], [0, 0, 1, 1], [], []>} : vector<8x32xf32>, vector<32x128xf32>, vector<8x128xf32> -> vector<8x128xf32>
    %777 = arith.addf %775, %776 : vector<8x128xf32>
    %778 = arith.index_cast %772 : i32 to index
    %c0_178 = arith.constant 0 : index
    %c128_179 = arith.constant 128 : index
    %779 = vector.load %arg17[%778, %c0_178, %c128_179] : memref<8x8x256xf32, #tpu.memory_space<vmem>>, vector<1x8x128xf32>
    %780 = vector.shape_cast %779 : vector<1x8x128xf32> to vector<8x128xf32>
    %cst_180 = arith.constant dense<0.000000e+00> : vector<8x128xf32>
    %781 = tpu.matmul %768, %543, %cst_180 {dimension_numbers = #tpu.dot_dimension_numbers<[1], [0], [0], [1], [0, 0, 1, 1], [], []>} : vector<8x32xf32>, vector<32x128xf32>, vector<8x128xf32> -> vector<8x128xf32>
    %782 = arith.addf %780, %781 : vector<8x128xf32>
    %783 = arith.negf %777 : vector<8x128xf32>
    %784 = math.exp %783 : vector<8x128xf32>
    %cst_181 = arith.constant 1.000000e+00 : f32
    %785 = vector.broadcast %cst_181 : f32 to vector<8x128xf32>
    %786 = arith.addf %785, %784 : vector<8x128xf32>
    %787 = arith.divf %785, %786 : vector<8x128xf32>
    %788 = vector.extract_strided_slice %787 {offsets = [0, 0], sizes = [8, 32], strides = [1, 1]} : vector<8x128xf32> to vector<8x32xf32>
    %789 = vector.extract_strided_slice %787 {offsets = [0, 32], sizes = [8, 32], strides = [1, 1]} : vector<8x128xf32> to vector<8x32xf32>
    %790 = vector.extract_strided_slice %787 {offsets = [0, 96], sizes = [8, 32], strides = [1, 1]} : vector<8x128xf32> to vector<8x32xf32>
    %791 = vector.extract_strided_slice %777 {offsets = [0, 64], sizes = [8, 32], strides = [1, 1]} : vector<8x128xf32> to vector<8x32xf32>
    %792 = math.tanh %791 : vector<8x32xf32>
    %793 = arith.mulf %789, %765 : vector<8x32xf32>
    %794 = arith.mulf %788, %792 : vector<8x32xf32>
    %795 = arith.addf %793, %794 : vector<8x32xf32>
    %796 = math.tanh %795 : vector<8x32xf32>
    %797 = arith.mulf %790, %796 : vector<8x32xf32>
    %798 = arith.negf %782 : vector<8x128xf32>
    %799 = math.exp %798 : vector<8x128xf32>
    %cst_182 = arith.constant 1.000000e+00 : f32
    %800 = vector.broadcast %cst_182 : f32 to vector<8x128xf32>
    %801 = arith.addf %800, %799 : vector<8x128xf32>
    %802 = arith.divf %800, %801 : vector<8x128xf32>
    %803 = vector.extract_strided_slice %802 {offsets = [0, 0], sizes = [8, 32], strides = [1, 1]} : vector<8x128xf32> to vector<8x32xf32>
    %804 = vector.extract_strided_slice %802 {offsets = [0, 32], sizes = [8, 32], strides = [1, 1]} : vector<8x128xf32> to vector<8x32xf32>
    %805 = vector.extract_strided_slice %802 {offsets = [0, 96], sizes = [8, 32], strides = [1, 1]} : vector<8x128xf32> to vector<8x32xf32>
    %806 = vector.extract_strided_slice %782 {offsets = [0, 64], sizes = [8, 32], strides = [1, 1]} : vector<8x128xf32> to vector<8x32xf32>
    %807 = math.tanh %806 : vector<8x32xf32>
    %808 = arith.mulf %804, %771 : vector<8x32xf32>
    %809 = arith.mulf %803, %807 : vector<8x32xf32>
    %810 = arith.addf %808, %809 : vector<8x32xf32>
    %811 = math.tanh %810 : vector<8x32xf32>
    %812 = arith.mulf %805, %811 : vector<8x32xf32>
    %813 = vector.broadcast %c4_i32_173 : i32 to vector<8x1xi32>
    %814 = arith.cmpi slt, %813, %0 : vector<8x1xi32>
    %815 = vector.broadcast %772 : i32 to vector<8x1xi32>
    %816 = arith.cmpi slt, %815, %0 : vector<8x1xi32>
    %817 = vector.shape_cast %814 : vector<8x1xi1> to vector<8x1xi1>
    %818 = vector.broadcast %817 : vector<8x1xi1> to vector<8x32xi1>
    %819 = arith.select %818, %797, %762 : vector<8x32xi1>, vector<8x32xf32>
    %820 = vector.shape_cast %814 : vector<8x1xi1> to vector<8x1xi1>
    %821 = vector.broadcast %820 : vector<8x1xi1> to vector<8x32xi1>
    %822 = arith.select %821, %795, %765 : vector<8x32xi1>, vector<8x32xf32>
    %823 = vector.shape_cast %816 : vector<8x1xi1> to vector<8x1xi1>
    %824 = vector.broadcast %823 : vector<8x1xi1> to vector<8x32xi1>
    %825 = arith.select %824, %812, %768 : vector<8x32xi1>, vector<8x32xf32>
    %826 = vector.shape_cast %816 : vector<8x1xi1> to vector<8x1xi1>
    %827 = vector.broadcast %826 : vector<8x1xi1> to vector<8x32xi1>
    %828 = arith.select %827, %810, %771 : vector<8x32xi1>, vector<8x32xf32>
    %c5_i32_183 = arith.constant 5 : i32
    %c7_i32_184 = arith.constant 7 : i32
    %829 = arith.subi %c7_i32_184, %c5_i32_183 : i32
    %830 = arith.index_cast %c5_i32_183 : i32 to index
    %c0_185 = arith.constant 0 : index
    %c0_186 = arith.constant 0 : index
    %831 = vector.load %arg17[%830, %c0_185, %c0_186] : memref<8x8x256xf32, #tpu.memory_space<vmem>>, vector<1x8x128xf32>
    %832 = vector.shape_cast %831 : vector<1x8x128xf32> to vector<8x128xf32>
    %cst_187 = arith.constant dense<0.000000e+00> : vector<8x128xf32>
    %833 = tpu.matmul %819, %542, %cst_187 {dimension_numbers = #tpu.dot_dimension_numbers<[1], [0], [0], [1], [0, 0, 1, 1], [], []>} : vector<8x32xf32>, vector<32x128xf32>, vector<8x128xf32> -> vector<8x128xf32>
    %834 = arith.addf %832, %833 : vector<8x128xf32>
    %835 = arith.index_cast %829 : i32 to index
    %c0_188 = arith.constant 0 : index
    %c128_189 = arith.constant 128 : index
    %836 = vector.load %arg17[%835, %c0_188, %c128_189] : memref<8x8x256xf32, #tpu.memory_space<vmem>>, vector<1x8x128xf32>
    %837 = vector.shape_cast %836 : vector<1x8x128xf32> to vector<8x128xf32>
    %cst_190 = arith.constant dense<0.000000e+00> : vector<8x128xf32>
    %838 = tpu.matmul %825, %543, %cst_190 {dimension_numbers = #tpu.dot_dimension_numbers<[1], [0], [0], [1], [0, 0, 1, 1], [], []>} : vector<8x32xf32>, vector<32x128xf32>, vector<8x128xf32> -> vector<8x128xf32>
    %839 = arith.addf %837, %838 : vector<8x128xf32>
    %840 = arith.negf %834 : vector<8x128xf32>
    %841 = math.exp %840 : vector<8x128xf32>
    %cst_191 = arith.constant 1.000000e+00 : f32
    %842 = vector.broadcast %cst_191 : f32 to vector<8x128xf32>
    %843 = arith.addf %842, %841 : vector<8x128xf32>
    %844 = arith.divf %842, %843 : vector<8x128xf32>
    %845 = vector.extract_strided_slice %844 {offsets = [0, 0], sizes = [8, 32], strides = [1, 1]} : vector<8x128xf32> to vector<8x32xf32>
    %846 = vector.extract_strided_slice %844 {offsets = [0, 32], sizes = [8, 32], strides = [1, 1]} : vector<8x128xf32> to vector<8x32xf32>
    %847 = vector.extract_strided_slice %844 {offsets = [0, 96], sizes = [8, 32], strides = [1, 1]} : vector<8x128xf32> to vector<8x32xf32>
    %848 = vector.extract_strided_slice %834 {offsets = [0, 64], sizes = [8, 32], strides = [1, 1]} : vector<8x128xf32> to vector<8x32xf32>
    %849 = math.tanh %848 : vector<8x32xf32>
    %850 = arith.mulf %846, %822 : vector<8x32xf32>
    %851 = arith.mulf %845, %849 : vector<8x32xf32>
    %852 = arith.addf %850, %851 : vector<8x32xf32>
    %853 = math.tanh %852 : vector<8x32xf32>
    %854 = arith.mulf %847, %853 : vector<8x32xf32>
    %855 = arith.negf %839 : vector<8x128xf32>
    %856 = math.exp %855 : vector<8x128xf32>
    %cst_192 = arith.constant 1.000000e+00 : f32
    %857 = vector.broadcast %cst_192 : f32 to vector<8x128xf32>
    %858 = arith.addf %857, %856 : vector<8x128xf32>
    %859 = arith.divf %857, %858 : vector<8x128xf32>
    %860 = vector.extract_strided_slice %859 {offsets = [0, 0], sizes = [8, 32], strides = [1, 1]} : vector<8x128xf32> to vector<8x32xf32>
    %861 = vector.extract_strided_slice %859 {offsets = [0, 32], sizes = [8, 32], strides = [1, 1]} : vector<8x128xf32> to vector<8x32xf32>
    %862 = vector.extract_strided_slice %859 {offsets = [0, 96], sizes = [8, 32], strides = [1, 1]} : vector<8x128xf32> to vector<8x32xf32>
    %863 = vector.extract_strided_slice %839 {offsets = [0, 64], sizes = [8, 32], strides = [1, 1]} : vector<8x128xf32> to vector<8x32xf32>
    %864 = math.tanh %863 : vector<8x32xf32>
    %865 = arith.mulf %861, %828 : vector<8x32xf32>
    %866 = arith.mulf %860, %864 : vector<8x32xf32>
    %867 = arith.addf %865, %866 : vector<8x32xf32>
    %868 = math.tanh %867 : vector<8x32xf32>
    %869 = arith.mulf %862, %868 : vector<8x32xf32>
    %870 = vector.broadcast %c5_i32_183 : i32 to vector<8x1xi32>
    %871 = arith.cmpi slt, %870, %0 : vector<8x1xi32>
    %872 = vector.broadcast %829 : i32 to vector<8x1xi32>
    %873 = arith.cmpi slt, %872, %0 : vector<8x1xi32>
    %874 = vector.shape_cast %871 : vector<8x1xi1> to vector<8x1xi1>
    %875 = vector.broadcast %874 : vector<8x1xi1> to vector<8x32xi1>
    %876 = arith.select %875, %854, %819 : vector<8x32xi1>, vector<8x32xf32>
    %877 = vector.shape_cast %871 : vector<8x1xi1> to vector<8x1xi1>
    %878 = vector.broadcast %877 : vector<8x1xi1> to vector<8x32xi1>
    %879 = arith.select %878, %852, %822 : vector<8x32xi1>, vector<8x32xf32>
    %880 = vector.shape_cast %873 : vector<8x1xi1> to vector<8x1xi1>
    %881 = vector.broadcast %880 : vector<8x1xi1> to vector<8x32xi1>
    %882 = arith.select %881, %869, %825 : vector<8x32xi1>, vector<8x32xf32>
    %883 = vector.shape_cast %873 : vector<8x1xi1> to vector<8x1xi1>
    %884 = vector.broadcast %883 : vector<8x1xi1> to vector<8x32xi1>
    %885 = arith.select %884, %867, %828 : vector<8x32xi1>, vector<8x32xf32>
    %c6_i32_193 = arith.constant 6 : i32
    %c7_i32_194 = arith.constant 7 : i32
    %886 = arith.subi %c7_i32_194, %c6_i32_193 : i32
    %887 = arith.index_cast %c6_i32_193 : i32 to index
    %c0_195 = arith.constant 0 : index
    %c0_196 = arith.constant 0 : index
    %888 = vector.load %arg17[%887, %c0_195, %c0_196] : memref<8x8x256xf32, #tpu.memory_space<vmem>>, vector<1x8x128xf32>
    %889 = vector.shape_cast %888 : vector<1x8x128xf32> to vector<8x128xf32>
    %cst_197 = arith.constant dense<0.000000e+00> : vector<8x128xf32>
    %890 = tpu.matmul %876, %542, %cst_197 {dimension_numbers = #tpu.dot_dimension_numbers<[1], [0], [0], [1], [0, 0, 1, 1], [], []>} : vector<8x32xf32>, vector<32x128xf32>, vector<8x128xf32> -> vector<8x128xf32>
    %891 = arith.addf %889, %890 : vector<8x128xf32>
    %892 = arith.index_cast %886 : i32 to index
    %c0_198 = arith.constant 0 : index
    %c128_199 = arith.constant 128 : index
    %893 = vector.load %arg17[%892, %c0_198, %c128_199] : memref<8x8x256xf32, #tpu.memory_space<vmem>>, vector<1x8x128xf32>
    %894 = vector.shape_cast %893 : vector<1x8x128xf32> to vector<8x128xf32>
    %cst_200 = arith.constant dense<0.000000e+00> : vector<8x128xf32>
    %895 = tpu.matmul %882, %543, %cst_200 {dimension_numbers = #tpu.dot_dimension_numbers<[1], [0], [0], [1], [0, 0, 1, 1], [], []>} : vector<8x32xf32>, vector<32x128xf32>, vector<8x128xf32> -> vector<8x128xf32>
    %896 = arith.addf %894, %895 : vector<8x128xf32>
    %897 = arith.negf %891 : vector<8x128xf32>
    %898 = math.exp %897 : vector<8x128xf32>
    %cst_201 = arith.constant 1.000000e+00 : f32
    %899 = vector.broadcast %cst_201 : f32 to vector<8x128xf32>
    %900 = arith.addf %899, %898 : vector<8x128xf32>
    %901 = arith.divf %899, %900 : vector<8x128xf32>
    %902 = vector.extract_strided_slice %901 {offsets = [0, 0], sizes = [8, 32], strides = [1, 1]} : vector<8x128xf32> to vector<8x32xf32>
    %903 = vector.extract_strided_slice %901 {offsets = [0, 32], sizes = [8, 32], strides = [1, 1]} : vector<8x128xf32> to vector<8x32xf32>
    %904 = vector.extract_strided_slice %901 {offsets = [0, 96], sizes = [8, 32], strides = [1, 1]} : vector<8x128xf32> to vector<8x32xf32>
    %905 = vector.extract_strided_slice %891 {offsets = [0, 64], sizes = [8, 32], strides = [1, 1]} : vector<8x128xf32> to vector<8x32xf32>
    %906 = math.tanh %905 : vector<8x32xf32>
    %907 = arith.mulf %903, %879 : vector<8x32xf32>
    %908 = arith.mulf %902, %906 : vector<8x32xf32>
    %909 = arith.addf %907, %908 : vector<8x32xf32>
    %910 = math.tanh %909 : vector<8x32xf32>
    %911 = arith.mulf %904, %910 : vector<8x32xf32>
    %912 = arith.negf %896 : vector<8x128xf32>
    %913 = math.exp %912 : vector<8x128xf32>
    %cst_202 = arith.constant 1.000000e+00 : f32
    %914 = vector.broadcast %cst_202 : f32 to vector<8x128xf32>
    %915 = arith.addf %914, %913 : vector<8x128xf32>
    %916 = arith.divf %914, %915 : vector<8x128xf32>
    %917 = vector.extract_strided_slice %916 {offsets = [0, 0], sizes = [8, 32], strides = [1, 1]} : vector<8x128xf32> to vector<8x32xf32>
    %918 = vector.extract_strided_slice %916 {offsets = [0, 32], sizes = [8, 32], strides = [1, 1]} : vector<8x128xf32> to vector<8x32xf32>
    %919 = vector.extract_strided_slice %916 {offsets = [0, 96], sizes = [8, 32], strides = [1, 1]} : vector<8x128xf32> to vector<8x32xf32>
    %920 = vector.extract_strided_slice %896 {offsets = [0, 64], sizes = [8, 32], strides = [1, 1]} : vector<8x128xf32> to vector<8x32xf32>
    %921 = math.tanh %920 : vector<8x32xf32>
    %922 = arith.mulf %918, %885 : vector<8x32xf32>
    %923 = arith.mulf %917, %921 : vector<8x32xf32>
    %924 = arith.addf %922, %923 : vector<8x32xf32>
    %925 = math.tanh %924 : vector<8x32xf32>
    %926 = arith.mulf %919, %925 : vector<8x32xf32>
    %927 = vector.broadcast %c6_i32_193 : i32 to vector<8x1xi32>
    %928 = arith.cmpi slt, %927, %0 : vector<8x1xi32>
    %929 = vector.broadcast %886 : i32 to vector<8x1xi32>
    %930 = arith.cmpi slt, %929, %0 : vector<8x1xi32>
    %931 = vector.shape_cast %928 : vector<8x1xi1> to vector<8x1xi1>
    %932 = vector.broadcast %931 : vector<8x1xi1> to vector<8x32xi1>
    %933 = arith.select %932, %911, %876 : vector<8x32xi1>, vector<8x32xf32>
    %934 = vector.shape_cast %928 : vector<8x1xi1> to vector<8x1xi1>
    %935 = vector.broadcast %934 : vector<8x1xi1> to vector<8x32xi1>
    %936 = arith.select %935, %909, %879 : vector<8x32xi1>, vector<8x32xf32>
    %937 = vector.shape_cast %930 : vector<8x1xi1> to vector<8x1xi1>
    %938 = vector.broadcast %937 : vector<8x1xi1> to vector<8x32xi1>
    %939 = arith.select %938, %926, %882 : vector<8x32xi1>, vector<8x32xf32>
    %940 = vector.shape_cast %930 : vector<8x1xi1> to vector<8x1xi1>
    %941 = vector.broadcast %940 : vector<8x1xi1> to vector<8x32xi1>
    %942 = arith.select %941, %924, %885 : vector<8x32xi1>, vector<8x32xf32>
    %c7_i32_203 = arith.constant 7 : i32
    %c7_i32_204 = arith.constant 7 : i32
    %943 = arith.subi %c7_i32_204, %c7_i32_203 : i32
    %944 = arith.index_cast %c7_i32_203 : i32 to index
    %c0_205 = arith.constant 0 : index
    %c0_206 = arith.constant 0 : index
    %945 = vector.load %arg17[%944, %c0_205, %c0_206] : memref<8x8x256xf32, #tpu.memory_space<vmem>>, vector<1x8x128xf32>
    %946 = vector.shape_cast %945 : vector<1x8x128xf32> to vector<8x128xf32>
    %cst_207 = arith.constant dense<0.000000e+00> : vector<8x128xf32>
    %947 = tpu.matmul %933, %542, %cst_207 {dimension_numbers = #tpu.dot_dimension_numbers<[1], [0], [0], [1], [0, 0, 1, 1], [], []>} : vector<8x32xf32>, vector<32x128xf32>, vector<8x128xf32> -> vector<8x128xf32>
    %948 = arith.addf %946, %947 : vector<8x128xf32>
    %949 = arith.index_cast %943 : i32 to index
    %c0_208 = arith.constant 0 : index
    %c128_209 = arith.constant 128 : index
    %950 = vector.load %arg17[%949, %c0_208, %c128_209] : memref<8x8x256xf32, #tpu.memory_space<vmem>>, vector<1x8x128xf32>
    %951 = vector.shape_cast %950 : vector<1x8x128xf32> to vector<8x128xf32>
    %cst_210 = arith.constant dense<0.000000e+00> : vector<8x128xf32>
    %952 = tpu.matmul %939, %543, %cst_210 {dimension_numbers = #tpu.dot_dimension_numbers<[1], [0], [0], [1], [0, 0, 1, 1], [], []>} : vector<8x32xf32>, vector<32x128xf32>, vector<8x128xf32> -> vector<8x128xf32>
    %953 = arith.addf %951, %952 : vector<8x128xf32>
    %954 = arith.negf %948 : vector<8x128xf32>
    %955 = math.exp %954 : vector<8x128xf32>
    %cst_211 = arith.constant 1.000000e+00 : f32
    %956 = vector.broadcast %cst_211 : f32 to vector<8x128xf32>
    %957 = arith.addf %956, %955 : vector<8x128xf32>
    %958 = arith.divf %956, %957 : vector<8x128xf32>
    %959 = vector.extract_strided_slice %958 {offsets = [0, 0], sizes = [8, 32], strides = [1, 1]} : vector<8x128xf32> to vector<8x32xf32>
    %960 = vector.extract_strided_slice %958 {offsets = [0, 32], sizes = [8, 32], strides = [1, 1]} : vector<8x128xf32> to vector<8x32xf32>
    %961 = vector.extract_strided_slice %958 {offsets = [0, 96], sizes = [8, 32], strides = [1, 1]} : vector<8x128xf32> to vector<8x32xf32>
    %962 = vector.extract_strided_slice %948 {offsets = [0, 64], sizes = [8, 32], strides = [1, 1]} : vector<8x128xf32> to vector<8x32xf32>
    %963 = math.tanh %962 : vector<8x32xf32>
    %964 = arith.mulf %960, %936 : vector<8x32xf32>
    %965 = arith.mulf %959, %963 : vector<8x32xf32>
    %966 = arith.addf %964, %965 : vector<8x32xf32>
    %967 = math.tanh %966 : vector<8x32xf32>
    %968 = arith.mulf %961, %967 : vector<8x32xf32>
    %969 = arith.negf %953 : vector<8x128xf32>
    %970 = math.exp %969 : vector<8x128xf32>
    %cst_212 = arith.constant 1.000000e+00 : f32
    %971 = vector.broadcast %cst_212 : f32 to vector<8x128xf32>
    %972 = arith.addf %971, %970 : vector<8x128xf32>
    %973 = arith.divf %971, %972 : vector<8x128xf32>
    %974 = vector.extract_strided_slice %973 {offsets = [0, 0], sizes = [8, 32], strides = [1, 1]} : vector<8x128xf32> to vector<8x32xf32>
    %975 = vector.extract_strided_slice %973 {offsets = [0, 32], sizes = [8, 32], strides = [1, 1]} : vector<8x128xf32> to vector<8x32xf32>
    %976 = vector.extract_strided_slice %973 {offsets = [0, 96], sizes = [8, 32], strides = [1, 1]} : vector<8x128xf32> to vector<8x32xf32>
    %977 = vector.extract_strided_slice %953 {offsets = [0, 64], sizes = [8, 32], strides = [1, 1]} : vector<8x128xf32> to vector<8x32xf32>
    %978 = math.tanh %977 : vector<8x32xf32>
    %979 = arith.mulf %975, %942 : vector<8x32xf32>
    %980 = arith.mulf %974, %978 : vector<8x32xf32>
    %981 = arith.addf %979, %980 : vector<8x32xf32>
    %982 = math.tanh %981 : vector<8x32xf32>
    %983 = arith.mulf %976, %982 : vector<8x32xf32>
    %984 = vector.broadcast %c7_i32_203 : i32 to vector<8x1xi32>
    %985 = arith.cmpi slt, %984, %0 : vector<8x1xi32>
    %986 = vector.broadcast %943 : i32 to vector<8x1xi32>
    %987 = arith.cmpi slt, %986, %0 : vector<8x1xi32>
    %988 = vector.shape_cast %985 : vector<8x1xi1> to vector<8x1xi1>
    %989 = vector.broadcast %988 : vector<8x1xi1> to vector<8x32xi1>
    %990 = arith.select %989, %968, %933 : vector<8x32xi1>, vector<8x32xf32>
    %991 = vector.shape_cast %985 : vector<8x1xi1> to vector<8x1xi1>
    %992 = vector.broadcast %991 : vector<8x1xi1> to vector<8x32xi1>
    %993 = arith.select %992, %966, %936 : vector<8x32xi1>, vector<8x32xf32>
    %994 = vector.shape_cast %987 : vector<8x1xi1> to vector<8x1xi1>
    %995 = vector.broadcast %994 : vector<8x1xi1> to vector<8x32xi1>
    %996 = arith.select %995, %983, %939 : vector<8x32xi1>, vector<8x32xf32>
    %997 = vector.shape_cast %987 : vector<8x1xi1> to vector<8x1xi1>
    %998 = vector.broadcast %997 : vector<8x1xi1> to vector<8x32xi1>
    %999 = arith.select %998, %981, %942 : vector<8x32xi1>, vector<8x32xf32>
    %c8_i32_213 = arith.constant 8 : i32
    %c0_214 = arith.constant 0 : index
    %c0_215 = arith.constant 0 : index
    %1000 = vector.load %arg11[%c0_214, %c0_215] : memref<32x1xf32, #tpu.memory_space<vmem>>, vector<32x1xf32>
    %cst_216 = arith.constant dense<0.000000e+00> : vector<8x1xf32>
    %1001 = tpu.matmul %990, %1000, %cst_216 {dimension_numbers = #tpu.dot_dimension_numbers<[1], [0], [0], [1], [0, 0, 1, 1], [], []>} : vector<8x32xf32>, vector<32x1xf32>, vector<8x1xf32> -> vector<8x1xf32>
    %c0_217 = arith.constant 0 : index
    %c0_218 = arith.constant 0 : index
    %1002 = vector.load %arg12[%c0_217, %c0_218] : memref<32x1xf32, #tpu.memory_space<vmem>>, vector<32x1xf32>
    %cst_219 = arith.constant dense<0.000000e+00> : vector<8x1xf32>
    %1003 = tpu.matmul %996, %1002, %cst_219 {dimension_numbers = #tpu.dot_dimension_numbers<[1], [0], [0], [1], [0, 0, 1, 1], [], []>} : vector<8x32xf32>, vector<32x1xf32>, vector<8x1xf32> -> vector<8x1xf32>
    %1004 = arith.addf %1001, %1003 : vector<8x1xf32>
    %c0_220 = arith.constant 0 : index
    %c0_221 = arith.constant 0 : index
    %1005 = vector.load %arg13[%c0_220, %c0_221] : memref<1x1xf32, #tpu.memory_space<vmem>>, vector<1x1xf32>
    %1006 = vector.broadcast %1005 : vector<1x1xf32> to vector<8x1xf32>
    %1007 = arith.addf %1004, %1006 : vector<8x1xf32>
    %1008 = arith.negf %1007 : vector<8x1xf32>
    %1009 = math.exp %1008 : vector<8x1xf32>
    %cst_222 = arith.constant 1.000000e+00 : f32
    %1010 = vector.broadcast %cst_222 : f32 to vector<8x1xf32>
    %1011 = arith.addf %1010, %1009 : vector<8x1xf32>
    %1012 = arith.divf %1010, %1011 : vector<8x1xf32>
    %c0_223 = arith.constant 0 : index
    %c0_224 = arith.constant 0 : index
    %1013 = vector.load %arg14[%c0_223, %c0_224] : memref<8x1xf32, #tpu.memory_space<vmem>>, vector<8x1xf32>
    tpu.vector_store %arg14[%c0_223, %c0_224], %1012 {strides = array<i32>} : memref<8x1xf32, #tpu.memory_space<vmem>>, vector<8x1xf32>,
    return
  }
  func.func @transform_0(%arg0: i32) -> (i32, i32) {
    %c0_i32 = arith.constant 0 : i32
    %c0_i32_0 = arith.constant 0 : i32
    return %arg0, %c0_i32 : i32, i32
  }
  func.func @transform_1(%arg0: i32) -> (i32, i32, i32) {
    %c0_i32 = arith.constant 0 : i32
    %c0_i32_0 = arith.constant 0 : i32
    %c0_i32_1 = arith.constant 0 : i32
    return %c0_i32, %arg0, %c0_i32_0 : i32, i32, i32
  }
  func.func @transform_2(%arg0: i32) -> (i32, i32) {
    %c0_i32 = arith.constant 0 : i32
    %c0_i32_0 = arith.constant 0 : i32
    %c0_i32_1 = arith.constant 0 : i32
    return %c0_i32, %c0_i32_0 : i32, i32
  }
  func.func @transform_3(%arg0: i32) -> (i32, i32) {
    %c0_i32 = arith.constant 0 : i32
    %c0_i32_0 = arith.constant 0 : i32
    %c0_i32_1 = arith.constant 0 : i32
    return %c0_i32, %c0_i32_0 : i32, i32
  }
  func.func @transform_4(%arg0: i32) -> (i32, i32) {
    %c0_i32 = arith.constant 0 : i32
    %c0_i32_0 = arith.constant 0 : i32
    %c0_i32_1 = arith.constant 0 : i32
    return %c0_i32, %c0_i32_0 : i32, i32
  }
  func.func @transform_5(%arg0: i32) -> (i32, i32) {
    %c0_i32 = arith.constant 0 : i32
    %c0_i32_0 = arith.constant 0 : i32
    %c0_i32_1 = arith.constant 0 : i32
    return %c0_i32, %c0_i32_0 : i32, i32
  }
  func.func @transform_6(%arg0: i32) -> (i32, i32) {
    %c0_i32 = arith.constant 0 : i32
    %c0_i32_0 = arith.constant 0 : i32
    %c0_i32_1 = arith.constant 0 : i32
    return %c0_i32, %c0_i32_0 : i32, i32
  }
  func.func @transform_7(%arg0: i32) -> (i32, i32) {
    %c0_i32 = arith.constant 0 : i32
    %c0_i32_0 = arith.constant 0 : i32
    %c0_i32_1 = arith.constant 0 : i32
    return %c0_i32, %c0_i32_0 : i32, i32
  }
  func.func @transform_8(%arg0: i32) -> (i32, i32) {
    %c0_i32 = arith.constant 0 : i32
    %c0_i32_0 = arith.constant 0 : i32
    %c0_i32_1 = arith.constant 0 : i32
    return %c0_i32, %c0_i32_0 : i32, i32
  }
  func.func @transform_9(%arg0: i32) -> (i32, i32) {
    %c0_i32 = arith.constant 0 : i32
    %c0_i32_0 = arith.constant 0 : i32
    %c0_i32_1 = arith.constant 0 : i32
    return %c0_i32, %c0_i32_0 : i32, i32
  }
  func.func @transform_10(%arg0: i32) -> (i32, i32) {
    %c0_i32 = arith.constant 0 : i32
    %c0_i32_0 = arith.constant 0 : i32
    %c0_i32_1 = arith.constant 0 : i32
    return %c0_i32, %c0_i32_0 : i32, i32
  }
  func.func @transform_11(%arg0: i32) -> (i32, i32) {
    %c0_i32 = arith.constant 0 : i32
    %c0_i32_0 = arith.constant 0 : i32
    %c0_i32_1 = arith.constant 0 : i32
    return %c0_i32, %c0_i32_0 : i32, i32
  }
  func.func @transform_12(%arg0: i32) -> (i32, i32) {
    %c0_i32 = arith.constant 0 : i32
    %c0_i32_0 = arith.constant 0 : i32
    %c0_i32_1 = arith.constant 0 : i32
    return %c0_i32, %c0_i32_0 : i32, i32
  }
  func.func @transform_13(%arg0: i32) -> (i32, i32) {
    %c0_i32 = arith.constant 0 : i32
    %c0_i32_0 = arith.constant 0 : i32
    return %arg0, %c0_i32 : i32, i32
  }
}

</mosaic_0001>

<llo_original>
// kernel: tpu_custom_call.1
$region0: #{tpu_custom_call.1}
  #allocation0 [shape = 'u32[]', space=smem, size = 0x4, offset = 0x4, fixed_abs, tag = 'smem constant byte address 0x4 - core index']
  #allocation1 [shape = 'u32[72,128]{1,0:T(1,128)}', space=vmem, size = 0x9000, scoped, tag = 'internal scratch']
  #allocation2 [shape = 'f32[8,8,256]{2,1,0:T(8,128)}', space=vmem, size = 0x10000, scoped, tag = 'scratch operand']
  #allocation3 [shape = 'f32[8,8,64]{2,1,0:T(8,128)}', space=vmem, size = 0x8000, scoped, tag = 'scratch operand']
  #allocation4 [shape = 'f32[8,8,256]{2,1,0:T(8,128)}', space=vmem, size = 0x10000, scoped, tag = 'scratch operand']
  #allocation5 [shape = 'f32[1,1]{1,0:T(1,128)S(1)}', space=vmem, size = 0x200, scoped, tag = 'scoped memory for tpu_custom_call.1']
  %s0 = inlined_call_operand.vmem [shape: s32[8,1], index: 0, kind: input, shape index: {}]
  %s1 = inlined_call_operand.vmem [shape: f32[8,8,16], index: 1, kind: input, shape index: {}]
  %s2 = inlined_call_operand.hbm [shape: f32[16,256], index: 2, kind: input, shape index: {}]
  %s3 = inlined_call_operand.vmem [shape: f32[1,256], index: 3, kind: input, shape index: {}]
  %s4 = inlined_call_operand.hbm [shape: f32[32,128], index: 4, kind: input, shape index: {}]
  %s5 = inlined_call_operand.hbm [shape: f32[32,128], index: 5, kind: input, shape index: {}]
  %s6 = inlined_call_operand.hbm [shape: f32[64,256], index: 6, kind: input, shape index: {}]
  %s7 = inlined_call_operand.vmem [shape: f32[1,256], index: 7, kind: input, shape index: {}]
  %s8 = inlined_call_operand.hbm [shape: f32[32,128], index: 8, kind: input, shape index: {}]
  %s9 = inlined_call_operand.hbm [shape: f32[32,128], index: 9, kind: input, shape index: {}]
  %s10 = inlined_call_operand.vmem [shape: f32[32,1], index: 10, kind: input, shape index: {}]
  %s11 = inlined_call_operand.vmem [shape: f32[32,1], index: 11, kind: input, shape index: {}]
  %s12 = inlined_call_operand.<no memory space> [shape: f32[1,1], index: 12, kind: input, shape index: {}]
  %s13 = inlined_call_operand.vmem [shape: f32[8,1], index: 13, kind: output, shape index: {}]
  %s14 = sld [smem:[#allocation0]]
  $region86: #{tpu_custom_call.1} parent=0
    _
  %s16 = ssub.s32 1, %s14
  %s17 = scalar_select 0, %s16, %s14
  %v18 = vstv %s12
  %19 = vst [vmem:[#allocation5] sm:$0x1] %v18
  $region1: #{tpu_custom_call.1} parent=0
    #allocation6 [shape = 'u8[16384]{0}', space=vmem, size = 0x4000, scoped, tag = 'input window, operand 2, single buffered']
    #allocation7 [shape = 's32[1]{0}', space=sflag, size = 0x4, scoped, tag = 'scoped memory for tpu_custom_call.1']
    #allocation8 [shape = 'u8[16384]{0}', space=vmem, size = 0x4000, scoped, tag = 'input window, operand 4, single buffered']
    #allocation9 [shape = 's32[1]{0}', space=sflag, size = 0x4, scoped, tag = 'scoped memory for tpu_custom_call.1']
    #allocation10 [shape = 'u8[16384]{0}', space=vmem, size = 0x4000, scoped, tag = 'input window, operand 5, single buffered']
    #allocation11 [shape = 'u8[65536]{0}', space=vmem, size = 0x10000, scoped, tag = 'input window, operand 6, single buffered']
    #allocation12 [shape = 's32[1]{0}', space=sflag, size = 0x4, scoped, tag = 'scoped memory for tpu_custom_call.1']
    #allocation13 [shape = 'u8[16384]{0}', space=vmem, size = 0x4000, scoped, tag = 'input window, operand 8, single buffered']
    #allocation14 [shape = 'u8[16384]{0}', space=vmem, size = 0x4000, scoped, tag = 'input window, operand 9, single buffered']
    #allocation15 [shape = 's32[1]{0}', space=sflag, size = 0x4, scoped, tag = 'scoped memory for tpu_custom_call.1']
    %20 = vsyncpa [#allocation7], 0
    %21 = vsyncpa [#allocation9], 0
    %22 = vsyncpa [#allocation12], 0
    %23 = vsyncpa [#allocation15], 0
    // Predicated region
    $region2: #{tpu_custom_call.1} parent=1 // pred_check
      _
    $region3: #{tpu_custom_call.1} parent=1 // pred_check_branch
      %25 = sbr.rel (0) target = $region5
    $region4: #{tpu_custom_call.1} parent=1 // pred_region
      _
    $region5: #{tpu_custom_call.1} parent=1 // pred_fallthru
      _
    // Predicated region
    $region6: #{tpu_custom_call.1} parent=1 // pred_check
      _
    $region7: #{tpu_custom_call.1} parent=1 // pred_check_branch
      %27 = sbr.rel (0) target = $region9
    $region8: #{tpu_custom_call.1} parent=1 // pred_region
      _
    $region9: #{tpu_custom_call.1} parent=1 // pred_fallthru
      _
    // Predicated region
    $region10: #{tpu_custom_call.1} parent=1 // pred_check
      _
    $region11: #{tpu_custom_call.1} parent=1 // pred_check_branch
      %29 = sbr.rel (0) target = $region13
    $region12: #{tpu_custom_call.1} parent=1 // pred_region
      %31 = vsyncadd [#allocation7], 0
      %s32 = sshll.u32 %s2, 4
      %s33 = int_to_ptr.hbm [resolvable:$true] %s32
      %s34 = sshll.u32 [#allocation6], 4
      %s35 = int_to_ptr.vmem [resolvable:$true] %s34
      %40 = dma.hbm_to_vmem [thread:$0]  %s33, 512, %s35, [#allocation7], 256, 256, 16
    $region13: #{tpu_custom_call.1} parent=1 // pred_fallthru
      _
    // Predicated region
    $region14: #{tpu_custom_call.1} parent=1 // pred_check
      _
    $region15: #{tpu_custom_call.1} parent=1 // pred_check_branch
      %42 = sbr.rel (0) target = $region17
    $region16: #{tpu_custom_call.1} parent=1 // pred_region
      _
    $region17: #{tpu_custom_call.1} parent=1 // pred_fallthru
      _
    // Predicated region
    $region18: #{tpu_custom_call.1} parent=1 // pred_check
      _
    $region19: #{tpu_custom_call.1} parent=1 // pred_check_branch
      %44 = sbr.rel (0) target = $region21
    $region20: #{tpu_custom_call.1} parent=1 // pred_region
      %46 = vsyncadd [#allocation9], 0
      %s47 = sshll.u32 %s4, 4
      %s48 = int_to_ptr.hbm [resolvable:$true] %s47
      %s49 = sshll.u32 [#allocation8], 4
      %s50 = int_to_ptr.vmem [resolvable:$true] %s49
      %55 = dma.hbm_to_vmem [thread:$0]  %s48, 512, %s50, [#allocation9], 128, 128, 8
    $region21: #{tpu_custom_call.1} parent=1 // pred_fallthru
      _
    // Predicated region
    $region22: #{tpu_custom_call.1} parent=1 // pred_check
      _
    $region23: #{tpu_custom_call.1} parent=1 // pred_check_branch
      %57 = sbr.rel (0) target = $region25
    $region24: #{tpu_custom_call.1} parent=1 // pred_region
      %59 = vsyncadd [#allocation9], 0
      %s60 = sshll.u32 %s5, 4
      %s61 = int_to_ptr.hbm [resolvable:$true] %s60
      %s62 = sshll.u32 [#allocation10], 4
      %s63 = int_to_ptr.vmem [resolvable:$true] %s62
      %68 = dma.hbm_to_vmem [thread:$0]  %s61, 512, %s63, [#allocation9], 128, 128, 8
    $region25: #{tpu_custom_call.1} parent=1 // pred_fallthru
      _
    // Predicated region
    $region26: #{tpu_custom_call.1} parent=1 // pred_check
      _
    $region27: #{tpu_custom_call.1} parent=1 // pred_check_branch
      %70 = sbr.rel (0) target = $region29
    $region28: #{tpu_custom_call.1} parent=1 // pred_region
      %72 = vsyncadd [#allocation12], 0
      %s73 = sshll.u32 %s6, 4
      %s74 = int_to_ptr.hbm [resolvable:$true] %s73
      %s75 = sshll.u32 [#allocation11], 4
      %s76 = int_to_ptr.vmem [resolvable:$true] %s75
      %81 = dma.hbm_to_vmem [thread:$0]  %s74, 2048, %s76, [#allocation12], 256, 256, 16
    $region29: #{tpu_custom_call.1} parent=1 // pred_fallthru
      _
    // Predicated region
    $region30: #{tpu_custom_call.1} parent=1 // pred_check
      _
    $region31: #{tpu_custom_call.1} parent=1 // pred_check_branch
      %83 = sbr.rel (0) target = $region33
    $region32: #{tpu_custom_call.1} parent=1 // pred_region
      _
    $region33: #{tpu_custom_call.1} parent=1 // pred_fallthru
      _
    // Predicated region
    $region34: #{tpu_custom_call.1} parent=1 // pred_check
      _
    $region35: #{tpu_custom_call.1} parent=1 // pred_check_branch
      %85 = sbr.rel (0) target = $region37
    $region36: #{tpu_custom_call.1} parent=1 // pred_region
      %87 = vsyncadd [#allocation12], 0
      %s88 = sshll.u32 %s8, 4
      %s89 = int_to_ptr.hbm [resolvable:$true] %s88
      %s90 = sshll.u32 [#allocation13], 4
      %s91 = int_to_ptr.vmem [resolvable:$true] %s90
      %96 = dma.hbm_to_vmem [thread:$0]  %s89, 512, %s91, [#allocation12], 128, 128, 8
    $region37: #{tpu_custom_call.1} parent=1 // pred_fallthru
      _
    // Predicated region
    $region38: #{tpu_custom_call.1} parent=1 // pred_check
      _
    $region39: #{tpu_custom_call.1} parent=1 // pred_check_branch
      %98 = sbr.rel (0) target = $region41
    $region40: #{tpu_custom_call.1} parent=1 // pred_region
      %100 = vsyncadd [#allocation15], 0
      %s101 = sshll.u32 %s9, 4
      %s102 = int_to_ptr.hbm [resolvable:$true] %s101
      %s103 = sshll.u32 [#allocation14], 4
      %s104 = int_to_ptr.vmem [resolvable:$true] %s103
      %109 = dma.hbm_to_vmem [thread:$0]  %s102, 512, %s104, [#allocation15], 128, 128, 8
    $region41: #{tpu_custom_call.1} parent=1 // pred_fallthru
      _
    // Predicated region
    $region42: #{tpu_custom_call.1} parent=1 // pred_check
      _
    $region43: #{tpu_custom_call.1} parent=1 // pred_check_branch
      %111 = sbr.rel (0) target = $region45
    $region44: #{tpu_custom_call.1} parent=1 // pred_region
      _
    $region45: #{tpu_custom_call.1} parent=1 // pred_fallthru
      _
    // Predicated region
    $region46: #{tpu_custom_call.1} parent=1 // pred_check
      _
    $region47: #{tpu_custom_call.1} parent=1 // pred_check_branch
      %113 = sbr.rel (0) target = $region49
    $region48: #{tpu_custom_call.1} parent=1 // pred_region
      _
    $region49: #{tpu_custom_call.1} parent=1 // pred_fallthru
      _
    // Predicated region
    $region50: #{tpu_custom_call.1} parent=1 // pred_check
      _
    $region51: #{tpu_custom_call.1} parent=1 // pred_check_branch
      %115 = sbr.rel (0) target = $region53
    $region52: #{tpu_custom_call.1} parent=1 // pred_region
      _
    $region53: #{tpu_custom_call.1} parent=1 // pred_fallthru
      _
    // Predicated region
    $region54: #{tpu_custom_call.1} parent=1 // pred_check
      _
    $region55: #{tpu_custom_call.1} parent=1 // pred_check_branch
      %117 = sbr.rel (0) target = $region57
    $region56: #{tpu_custom_call.1} parent=1 // pred_region
      %119 = dma.done [#allocation7], 512
    $region57: #{tpu_custom_call.1} parent=1 // pred_fallthru
      _
    // Predicated region
    $region58: #{tpu_custom_call.1} parent=1 // pred_check
      _
    $region59: #{tpu_custom_call.1} parent=1 // pred_check_branch
      %121 = sbr.rel (0) target = $region61
    $region60: #{tpu_custom_call.1} parent=1 // pred_region
      %123 = dma.done [#allocation9], 512
    $region61: #{tpu_custom_call.1} parent=1 // pred_fallthru
      _
    // Predicated region
    $region62: #{tpu_custom_call.1} parent=1 // pred_check
      _
    $region63: #{tpu_custom_call.1} parent=1 // pred_check_branch
      %125 = sbr.rel (0) target = $region65
    $region64: #{tpu_custom_call.1} parent=1 // pred_region
      %127 = dma.done [#allocation9], 512
    $region65: #{tpu_custom_call.1} parent=1 // pred_fallthru
      _
    // Predicated region
    $region66: #{tpu_custom_call.1} parent=1 // pred_check
      _
    $region67: #{tpu_custom_call.1} parent=1 // pred_check_branch
      %129 = sbr.rel (0) target = $region69
    $region68: #{tpu_custom_call.1} parent=1 // pred_region
      %131 = dma.done [#allocation12], 2048
    $region69: #{tpu_custom_call.1} parent=1 // pred_fallthru
      _
    // Predicated region
    $region70: #{tpu_custom_call.1} parent=1 // pred_check
      _
    $region71: #{tpu_custom_call.1} parent=1 // pred_check_branch
      %133 = sbr.rel (0) target = $region73
    $region72: #{tpu_custom_call.1} parent=1 // pred_region
      %135 = dma.done [#allocation12], 512
    $region73: #{tpu_custom_call.1} parent=1 // pred_fallthru
      _
    // Predicated region
    $region74: #{tpu_custom_call.1} parent=1 // pred_check
      _
    $region75: #{tpu_custom_call.1} parent=1 // pred_check_branch
      %137 = sbr.rel (0) target = $region77
    $region76: #{tpu_custom_call.1} parent=1 // pred_region
      %139 = dma.done [#allocation15], 512
    $region77: #{tpu_custom_call.1} parent=1 // pred_fallthru
      _
    %v140 = vld [vmem:[%s0] sm:$0xff]
    %v141 = vld [vmem:[%s1] sm:$0xff]
    %v142 = vld [vmem:[%s1 + $0x8] sm:$0xff]
    %v143 = vld [vmem:[%s1 + $0x10] sm:$0xff]
    %v144 = vld [vmem:[%s1 + $0x18] sm:$0xff]
    %v145 = vld [vmem:[%s1 + $0x20] sm:$0xff]
    %v146 = vld [vmem:[%s1 + $0x28] sm:$0xff]
    %v147 = vld [vmem:[%s1 + $0x30] sm:$0xff]
    %v148 = vld [vmem:[%s1 + $0x38] sm:$0xff]
    %v149 = vld [vmem:[#allocation6] sm:$0xff]
    %v150 = vld [vmem:[#allocation6 + $0x8] sm:$0xff]
    %v151 = vld [vmem:[#allocation6 + $0x10] sm:$0xff]
    %v152 = vld [vmem:[#allocation6 + $0x18] sm:$0xff]
    %v153 = vld [vmem:[%s3] sm:$0x3]
    %v155 = vperm.slane %v153, 0
    %v156 = vperm.slane %v153, 1
    %vm159 = vcmask 130048
    %v161 = vsel %vm159, %v141, 0
    %v164 = vsel %vm159, %v142, 0
    %v167 = vsel %vm159, %v143, 0
    %v170 = vsel %vm159, %v144, 0
    %v173 = vsel %vm159, %v145, 0
    %v176 = vsel %vm159, %v146, 0
    %v179 = vsel %vm159, %v147, 0
    %v182 = vsel %vm159, %v148, 0
    %184 = vmatpush.msra.mxu0 0.0
    %185 = vmatpush.msra.mxu0 0.0
    %186 = vmatpush.msra.mxu0 0.0
    %187 = vmatpush.msra.mxu0 0.0
    %188 = vmatpush.msra.mxu0 0.0
    %189 = vmatpush.msra.mxu0 0.0
    %190 = vmatpush.msra.mxu0 0.0
    %191 = vmatpush.msra.mxu0 0.0
    %192 = vmatpush.msra.mxu0 0.0
    %193 = vmatpush.msra.mxu0 0.0
    %194 = vmatpush.msra.mxu0 0.0
    %195 = vmatpush.msra.mxu0 0.0
    %196 = vmatpush.msra.mxu0 0.0
    %197 = vmatpush.msra.mxu0 0.0
    %198 = vmatpush.msra.mxu0 %v151
    %199 = vmatpush.msra.mxu0 %v149
    %200 = vmatmul.f32.gmra.mxu0 %v161
    %v201 = vpop.f32.mrf.mxu0
    %v202 = vadd.f32 %v155, %v201
    %203 = vmatmul.f32.gmra.mxu0 %v164
    %v204 = vpop.f32.mrf.mxu0
    %v205 = vadd.f32 %v155, %v204
    %206 = vmatmul.f32.gmra.mxu0 %v167
    %v207 = vpop.f32.mrf.mxu0
    %v208 = vadd.f32 %v155, %v207
    %209 = vmatmul.f32.gmra.mxu0 %v170
    %v210 = vpop.f32.mrf.mxu0
    %v211 = vadd.f32 %v155, %v210
    %212 = vmatmul.f32.gmra.mxu0 %v173
    %v213 = vpop.f32.mrf.mxu0
    %v214 = vadd.f32 %v155, %v213
    %215 = vmatmul.f32.gmra.mxu0 %v176
    %v216 = vpop.f32.mrf.mxu0
    %v217 = vadd.f32 %v155, %v216
    %218 = vmatmul.f32.gmra.mxu0 %v179
    %v219 = vpop.f32.mrf.mxu0
    %v220 = vadd.f32 %v155, %v219
    %221 = vmatmul.f32.gmra.mxu0 %v182
    %v222 = vpop.f32.mrf.mxu0
    %v223 = vadd.f32 %v155, %v222
    %224 = vdwg.mxu0
    %225 = vmatpush.msra.mxu0 0.0
    %226 = vmatpush.msra.mxu0 0.0
    %227 = vmatpush.msra.mxu0 0.0
    %228 = vmatpush.msra.mxu0 0.0
    %229 = vmatpush.msra.mxu0 0.0
    %230 = vmatpush.msra.mxu0 0.0
    %231 = vmatpush.msra.mxu0 0.0
    %232 = vmatpush.msra.mxu0 0.0
    %233 = vmatpush.msra.mxu0 0.0
    %234 = vmatpush.msra.mxu0 0.0
    %235 = vmatpush.msra.mxu0 0.0
    %236 = vmatpush.msra.mxu0 0.0
    %237 = vmatpush.msra.mxu0 0.0
    %238 = vmatpush.msra.mxu0 0.0
    %239 = vmatpush.msra.mxu0 %v152
    %240 = vmatpush.msra.mxu0 %v150
    %241 = vmatmul.f32.gmra.mxu0 %v161
    %v242 = vpop.f32.mrf.mxu0
    %v243 = vadd.f32 %v156, %v242
    %244 = vmatmul.f32.gmra.mxu0 %v164
    %v245 = vpop.f32.mrf.mxu0
    %v246 = vadd.f32 %v156, %v245
    %247 = vmatmul.f32.gmra.mxu0 %v167
    %v248 = vpop.f32.mrf.mxu0
    %v249 = vadd.f32 %v156, %v248
    %250 = vmatmul.f32.gmra.mxu0 %v170
    %v251 = vpop.f32.mrf.mxu0
    %v252 = vadd.f32 %v156, %v251
    %253 = vmatmul.f32.gmra.mxu0 %v173
    %v254 = vpop.f32.mrf.mxu0
    %v255 = vadd.f32 %v156, %v254
    %256 = vmatmul.f32.gmra.mxu0 %v176
    %v257 = vpop.f32.mrf.mxu0
    %v258 = vadd.f32 %v156, %v257
    %259 = vmatmul.f32.gmra.mxu0 %v179
    %v260 = vpop.f32.mrf.mxu0
    %v261 = vadd.f32 %v156, %v260
    %262 = vmatmul.f32.gmra.mxu0 %v182
    %v263 = vpop.f32.mrf.mxu0
    %v264 = vadd.f32 %v156, %v263
    %265 = vdwg.mxu0
    %266 = vst [vmem:[#allocation2] sm:$0xff] %v202
    %267 = vst [vmem:[#allocation2 + $0x8] sm:$0xff] %v243
    %268 = vst [vmem:[#allocation2 + $0x10] sm:$0xff] %v205
    %269 = vst [vmem:[#allocation2 + $0x18] sm:$0xff] %v246
    %270 = vst [vmem:[#allocation2 + $0x20] sm:$0xff] %v208
    %271 = vst [vmem:[#allocation2 + $0x28] sm:$0xff] %v249
    %272 = vst [vmem:[#allocation2 + $0x30] sm:$0xff] %v211
    %273 = vst [vmem:[#allocation2 + $0x38] sm:$0xff] %v252
    %274 = vst [vmem:[#allocation2 + $0x40] sm:$0xff] %v214
    %275 = vst [vmem:[#allocation2 + $0x48] sm:$0xff] %v255
    %276 = vst [vmem:[#allocation2 + $0x50] sm:$0xff] %v217
    %277 = vst [vmem:[#allocation2 + $0x58] sm:$0xff] %v258
    %278 = vst [vmem:[#allocation2 + $0x60] sm:$0xff] %v220
    %279 = vst [vmem:[#allocation2 + $0x68] sm:$0xff] %v261
    %280 = vst [vmem:[#allocation2 + $0x70] sm:$0xff] %v223
    %281 = vst [vmem:[#allocation2 + $0x78] sm:$0xff] %v264
    %v282 = vld [vmem:[#allocation8] sm:$0xff]
    %v283 = vld [vmem:[#allocation8 + $0x8] sm:$0xff]
    %v284 = vld [vmem:[#allocation8 + $0x10] sm:$0xff]
    %v285 = vld [vmem:[#allocation8 + $0x18] sm:$0xff]
    %v286 = vld [vmem:[#allocation10] sm:$0xff]
    %v287 = vld [vmem:[#allocation10 + $0x8] sm:$0xff]
    %v288 = vld [vmem:[#allocation10 + $0x10] sm:$0xff]
    %v289 = vld [vmem:[#allocation10 + $0x18] sm:$0xff]
    %v290 = vld [vmem:[#allocation2] sm:$0xff]
    %vm291 = vcmask 261120
    %v293 = vsel %vm291, 0.0, 0
    %295 = vmatpush.msra.mxu0 0.0
    %296 = vmatpush.msra.mxu0 0.0
    %297 = vmatpush.msra.mxu0 0.0
    %298 = vmatpush.msra.mxu0 0.0
    %299 = vmatpush.msra.mxu0 0.0
    %300 = vmatpush.msra.mxu0 0.0
    %301 = vmatpush.msra.mxu0 0.0
    %302 = vmatpush.msra.mxu0 0.0
    %303 = vmatpush.msra.mxu0 0.0
    %304 = vmatpush.msra.mxu0 0.0
    %305 = vmatpush.msra.mxu0 0.0
    %306 = vmatpush.msra.mxu0 0.0
    %307 = vmatpush.msra.mxu0 %v285
    %308 = vmatpush.msra.mxu0 %v284
    %309 = vmatpush.msra.mxu0 %v283
    %310 = vmatpush.msra.mxu0 %v282
    %311 = vmatmul.f32.gmra.mxu0 %v293
    %v312 = vpop.f32.mrf.mxu0
    %v313 = vadd.f32 0.0, %v312
    %314 = vdwg.mxu0
    %v315 = vadd.f32 %v290, %v313
    %s316 = scalar_lea.vmem [#allocation2], 112
    %v317 = vld [vmem:[%s316 + $0x8] sm:$0xff]
    %318 = vmatpush.msra.mxu0 0.0
    %319 = vmatpush.msra.mxu0 0.0
    %320 = vmatpush.msra.mxu0 0.0
    %321 = vmatpush.msra.mxu0 0.0
    %322 = vmatpush.msra.mxu0 0.0
    %323 = vmatpush.msra.mxu0 0.0
    %324 = vmatpush.msra.mxu0 0.0
    %325 = vmatpush.msra.mxu0 0.0
    %326 = vmatpush.msra.mxu0 0.0
    %327 = vmatpush.msra.mxu0 0.0
    %328 = vmatpush.msra.mxu0 0.0
    %329 = vmatpush.msra.mxu0 0.0
    %330 = vmatpush.msra.mxu0 %v289
    %331 = vmatpush.msra.mxu0 %v288
    %332 = vmatpush.msra.mxu0 %v287
    %333 = vmatpush.msra.mxu0 %v286
    %334 = vmatmul.f32.gmra.mxu0 %v293
    %v335 = vpop.f32.mrf.mxu0
    %v336 = vadd.f32 0.0, %v335
    %337 = vdwg.mxu0
    %v338 = vadd.f32 %v317, %v336
    %v339 = vxor.u32 %v315, 2147483648
    %v340 = vmul.f32 %v339, 1.442695
    %v341 = vpow.pop %v340
    %v342 = vadd.f32 %v341, 1.0
    %v343 = vrcp.pop %v342
    %v344 = vmul.f32 %v342, %v343
    %v345 = vsub.f32 1.0, %v344
    %v346 = vmul.f32 %v343, %v345
    %v347 = vadd.f32 %v343, %v346
    %vm348 = vweird.f32 %v342
    %vm349 = vweird.f32 %v343
    %vm350 = vmor %vm348, %vm349
    %v351 = vsel %vm350, %v343, %v347
    %v352 = vand.u32 2147483647, %v342
    %vm353 = vcmp.eq.f32.partialorder %v352, 8.507059e+37
    %v354 = vand.u32 %v342, 2147483648
    %v355 = vor.u32 1.1754944e-38, %v354
    %v356 = vsel %vm353, %v355, %v351
    %v357 = vmul.f32 1.0, %v356
    %v358 = vtanh.pop %v315
    %v359 = vmul.f32 %v357, 0.0
    %361 = vrot.lane.b32.xlu0 %v358, 64
    %v362 = vpop.permute.xlu0 %361
    %v364 = vmul.f32 %v357, %v362
    %366 = vrot.lane.b32.xlu0 %v364, 32
    %v367 = vpop.permute.xlu0 %366
    %v369 = vadd.f32 %v359, %v367
    %v370 = vtanh.pop %v369
    %372 = vrot.lane.b32.xlu0 %v370, 64
    %v373 = vpop.permute.xlu0 %372
    %v375 = vmul.f32 %v357, %v373
    %v376 = vxor.u32 %v338, 2147483648
    %v377 = vmul.f32 %v376, 1.442695
    %v378 = vpow.pop %v377
    %v379 = vadd.f32 %v378, 1.0
    %v380 = vrcp.pop %v379
    %v381 = vmul.f32 %v379, %v380
    %v382 = vsub.f32 1.0, %v381
    %v383 = vmul.f32 %v380, %v382
    %v384 = vadd.f32 %v380, %v383
    %vm385 = vweird.f32 %v379
    %vm386 = vweird.f32 %v380
    %vm387 = vmor %vm385, %vm386
    %v388 = vsel %vm387, %v380, %v384
    %v389 = vand.u32 2147483647, %v379
    %vm390 = vcmp.eq.f32.partialorder %v389, 8.507059e+37
    %v391 = vand.u32 %v379, 2147483648
    %v392 = vor.u32 1.1754944e-38, %v391
    %v393 = vsel %vm390, %v392, %v388
    %v394 = vmul.f32 1.0, %v393
    %v395 = vtanh.pop %v338
    %v396 = vmul.f32 %v394, 0.0
    %398 = vrot.lane.b32.xlu0 %v395, 64
    %v399 = vpop.permute.xlu0 %398
    %v401 = vmul.f32 %v394, %v399
    %403 = vrot.lane.b32.xlu0 %v401, 32
    %v404 = vpop.permute.xlu0 %403
    %v406 = vadd.f32 %v396, %v404
    %v407 = vtanh.pop %v406
    %409 = vrot.lane.b32.xlu0 %v407, 64
    %v410 = vpop.permute.xlu0 %409
    %v412 = vmul.f32 %v394, %v410
    %vm413 = vcmp.gt.s32.totalorder %v140, 0
    %vm414 = vcmp.gt.s32.totalorder %v140, 7
    %v415 = vsel %vm413, 1, 0
    %416 = vset.pattern.permute.xlu0 0
    %417 = vperm.xlu0 %416, %v415
    %v418 = vpop.permute.xlu0 %417
    %vm419 = vcmp.eq.s32.totalorder %v418, 1
    %v420 = vsel %vm419, %v375, 0.0
    %v421 = vsel %vm419, %v369, 0.0
    %v422 = vsel %vm414, 1, 0
    %423 = vset.pattern.permute.xlu0 0
    %424 = vperm.xlu0 %423, %v422
    %v425 = vpop.permute.xlu0 %424
    %vm426 = vcmp.eq.s32.totalorder %v425, 1
    %v427 = vsel %vm426, %v412, 0.0
    %v428 = vsel %vm426, %v406, 0.0
    %430 = vrot.lane.b32.xlu0 %v420, 32
    %v431 = vpop.permute.xlu0 %430
    %433 = vst.msk [vmem:[#allocation3] sm:$0xff] %vm291, %v431
    %435 = vrot.lane.b32.xlu0 %v427, 64
    %v436 = vpop.permute.xlu0 %435
    %s438 = scalar_lea.vmem [#allocation3], 56
    %vm439 = vcmask 523520
    %440 = vst.msk [vmem:[%s438] sm:$0xff] %vm439, %v436
    %s441 = scalar_lea.vmem [#allocation2], 16
    %v442 = vld [vmem:[%s441] sm:$0xff]
    %v443 = vsel %vm291, %v431, 0
    %445 = vmatpush.msra.mxu0 0.0
    %446 = vmatpush.msra.mxu0 0.0
    %447 = vmatpush.msra.mxu0 0.0
    %448 = vmatpush.msra.mxu0 0.0
    %449 = vmatpush.msra.mxu0 0.0
    %450 = vmatpush.msra.mxu0 0.0
    %451 = vmatpush.msra.mxu0 0.0
    %452 = vmatpush.msra.mxu0 0.0
    %453 = vmatpush.msra.mxu0 0.0
    %454 = vmatpush.msra.mxu0 0.0
    %455 = vmatpush.msra.mxu0 0.0
    %456 = vmatpush.msra.mxu0 0.0
    %457 = vmatpush.msra.mxu0 %v285
    %458 = vmatpush.msra.mxu0 %v284
    %459 = vmatpush.msra.mxu0 %v283
    %460 = vmatpush.msra.mxu0 %v282
    %461 = vmatmul.f32.gmra.mxu0 %v443
    %v462 = vpop.f32.mrf.mxu0
    %v463 = vadd.f32 0.0, %v462
    %464 = vdwg.mxu0
    %v465 = vadd.f32 %v442, %v463
    %s466 = scalar_lea.vmem [#allocation2], 96
    %v467 = vld [vmem:[%s466 + $0x8] sm:$0xff]
    %468 = vrot.lane.b32.xlu0 %v427, 32
    %v469 = vpop.permute.xlu0 %468
    %v470 = vsel %vm291, %v469, 0
    %472 = vmatpush.msra.mxu0 0.0
    %473 = vmatpush.msra.mxu0 0.0
    %474 = vmatpush.msra.mxu0 0.0
    %475 = vmatpush.msra.mxu0 0.0
    %476 = vmatpush.msra.mxu0 0.0
    %477 = vmatpush.msra.mxu0 0.0
    %478 = vmatpush.msra.mxu0 0.0
    %479 = vmatpush.msra.mxu0 0.0
    %480 = vmatpush.msra.mxu0 0.0
    %481 = vmatpush.msra.mxu0 0.0
    %482 = vmatpush.msra.mxu0 0.0
    %483 = vmatpush.msra.mxu0 0.0
    %484 = vmatpush.msra.mxu0 %v289
    %485 = vmatpush.msra.mxu0 %v288
    %486 = vmatpush.msra.mxu0 %v287
    %487 = vmatpush.msra.mxu0 %v286
    %488 = vmatmul.f32.gmra.mxu0 %v470
    %v489 = vpop.f32.mrf.mxu0
    %v490 = vadd.f32 0.0, %v489
    %491 = vdwg.mxu0
    %v492 = vadd.f32 %v467, %v490
    %v493 = vxor.u32 %v465, 2147483648
    %v494 = vmul.f32 %v493, 1.442695
    %v495 = vpow.pop %v494
    %v496 = vadd.f32 %v495, 1.0
    %v497 = vrcp.pop %v496
    %v498 = vmul.f32 %v496, %v497
    %v499 = vsub.f32 1.0, %v498
    %v500 = vmul.f32 %v497, %v499
    %v501 = vadd.f32 %v497, %v500
    %vm502 = vweird.f32 %v496
    %vm503 = vweird.f32 %v497
    %vm504 = vmor %vm502, %vm503
    %v505 = vsel %vm504, %v497, %v501
    %v506 = vand.u32 2147483647, %v496
    %vm507 = vcmp.eq.f32.partialorder %v506, 8.507059e+37
    %v508 = vand.u32 %v496, 2147483648
    %v509 = vor.u32 1.1754944e-38, %v508
    %v510 = vsel %vm507, %v509, %v505
    %v511 = vmul.f32 1.0, %v510
    %v512 = vtanh.pop %v465
    %v513 = vmul.f32 %v511, %v421
    %515 = vrot.lane.b32.xlu0 %v512, 64
    %v516 = vpop.permute.xlu0 %515
    %v518 = vmul.f32 %v511, %v516
    %520 = vrot.lane.b32.xlu0 %v518, 32
    %v521 = vpop.permute.xlu0 %520
    %v523 = vadd.f32 %v513, %v521
    %v524 = vtanh.pop %v523
    %526 = vrot.lane.b32.xlu0 %v524, 64
    %v527 = vpop.permute.xlu0 %526
    %v529 = vmul.f32 %v511, %v527
    %v530 = vxor.u32 %v492, 2147483648
    %v531 = vmul.f32 %v530, 1.442695
    %v532 = vpow.pop %v531
    %v533 = vadd.f32 %v532, 1.0
    %v534 = vrcp.pop %v533
    %v535 = vmul.f32 %v533, %v534
    %v536 = vsub.f32 1.0, %v535
    %v537 = vmul.f32 %v534, %v536
    %v538 = vadd.f32 %v534, %v537
    %vm539 = vweird.f32 %v533
    %vm540 = vweird.f32 %v534
    %vm541 = vmor %vm539, %vm540
    %v542 = vsel %vm541, %v534, %v538
    %v543 = vand.u32 2147483647, %v533
    %vm544 = vcmp.eq.f32.partialorder %v543, 8.507059e+37
    %v545 = vand.u32 %v533, 2147483648
    %v546 = vor.u32 1.1754944e-38, %v545
    %v547 = vsel %vm544, %v546, %v542
    %v548 = vmul.f32 1.0, %v547
    %v549 = vtanh.pop %v492
    %v550 = vmul.f32 %v548, %v428
    %552 = vrot.lane.b32.xlu0 %v549, 64
    %v553 = vpop.permute.xlu0 %552
    %v555 = vmul.f32 %v548, %v553
    %557 = vrot.lane.b32.xlu0 %v555, 32
    %v558 = vpop.permute.xlu0 %557
    %v560 = vadd.f32 %v550, %v558
    %v561 = vtanh.pop %v560
    %563 = vrot.lane.b32.xlu0 %v561, 64
    %v564 = vpop.permute.xlu0 %563
    %v566 = vmul.f32 %v548, %v564
    %vm567 = vcmp.gt.s32.totalorder %v140, 1
    %vm568 = vcmp.gt.s32.totalorder %v140, 6
    %v569 = vsel %vm567, 1, 0
    %570 = vset.pattern.permute.xlu0 0
    %571 = vperm.xlu0 %570, %v569
    %v572 = vpop.permute.xlu0 %571
    %vm573 = vcmp.eq.s32.totalorder %v572, 1
    %v574 = vsel %vm573, %v529, %v420
    %v575 = vsel %vm573, %v523, %v421
    %v576 = vsel %vm568, 1, 0
    %577 = vset.pattern.permute.xlu0 0
    %578 = vperm.xlu0 %577, %v576
    %v579 = vpop.permute.xlu0 %578
    %vm580 = vcmp.eq.s32.totalorder %v579, 1
    %v581 = vsel %vm580, %v566, %v427
    %v582 = vsel %vm580, %v560, %v428
    %584 = vrot.lane.b32.xlu0 %v574, 32
    %v585 = vpop.permute.xlu0 %584
    %s587 = scalar_lea.vmem [#allocation3], 8
    %588 = vst.msk [vmem:[%s587] sm:$0xff] %vm291, %v585
    %590 = vrot.lane.b32.xlu0 %v581, 64
    %v591 = vpop.permute.xlu0 %590
    %s593 = scalar_lea.vmem [#allocation3], 48
    %594 = vst.msk [vmem:[%s593] sm:$0xff] %vm439, %v591
    %s595 = scalar_lea.vmem [#allocation2], 32
    %v596 = vld [vmem:[%s595] sm:$0xff]
    %v597 = vsel %vm291, %v585, 0
    %599 = vmatpush.msra.mxu0 0.0
    %600 = vmatpush.msra.mxu0 0.0
    %601 = vmatpush.msra.mxu0 0.0
    %602 = vmatpush.msra.mxu0 0.0
    %603 = vmatpush.msra.mxu0 0.0
    %604 = vmatpush.msra.mxu0 0.0
    %605 = vmatpush.msra.mxu0 0.0
    %606 = vmatpush.msra.mxu0 0.0
    %607 = vmatpush.msra.mxu0 0.0
    %608 = vmatpush.msra.mxu0 0.0
    %609 = vmatpush.msra.mxu0 0.0
    %610 = vmatpush.msra.mxu0 0.0
    %611 = vmatpush.msra.mxu0 %v285
    %612 = vmatpush.msra.mxu0 %v284
    %613 = vmatpush.msra.mxu0 %v283
    %614 = vmatpush.msra.mxu0 %v282
    %615 = vmatmul.f32.gmra.mxu0 %v597
    %v616 = vpop.f32.mrf.mxu0
    %v617 = vadd.f32 0.0, %v616
    %618 = vdwg.mxu0
    %v619 = vadd.f32 %v596, %v617
    %s620 = scalar_lea.vmem [#allocation2], 80
    %v621 = vld [vmem:[%s620 + $0x8] sm:$0xff]
    %622 = vrot.lane.b32.xlu0 %v581, 32
    %v623 = vpop.permute.xlu0 %622
    %v624 = vsel %vm291, %v623, 0
    %626 = vmatpush.msra.mxu0 0.0
    %627 = vmatpush.msra.mxu0 0.0
    %628 = vmatpush.msra.mxu0 0.0
    %629 = vmatpush.msra.mxu0 0.0
    %630 = vmatpush.msra.mxu0 0.0
    %631 = vmatpush.msra.mxu0 0.0
    %632 = vmatpush.msra.mxu0 0.0
    %633 = vmatpush.msra.mxu0 0.0
    %634 = vmatpush.msra.mxu0 0.0
    %635 = vmatpush.msra.mxu0 0.0
    %636 = vmatpush.msra.mxu0 0.0
    %637 = vmatpush.msra.mxu0 0.0
    %638 = vmatpush.msra.mxu0 %v289
    %639 = vmatpush.msra.mxu0 %v288
    %640 = vmatpush.msra.mxu0 %v287
    %641 = vmatpush.msra.mxu0 %v286
    %642 = vmatmul.f32.gmra.mxu0 %v624
    %v643 = vpop.f32.mrf.mxu0
    %v644 = vadd.f32 0.0, %v643
    %645 = vdwg.mxu0
    %v646 = vadd.f32 %v621, %v644
    %v647 = vxor.u32 %v619, 2147483648
    %v648 = vmul.f32 %v647, 1.442695
    %v649 = vpow.pop %v648
    %v650 = vadd.f32 %v649, 1.0
    %v651 = vrcp.pop %v650
    %v652 = vmul.f32 %v650, %v651
    %v653 = vsub.f32 1.0, %v652
    %v654 = vmul.f32 %v651, %v653
    %v655 = vadd.f32 %v651, %v654
    %vm656 = vweird.f32 %v650
    %vm657 = vweird.f32 %v651
    %vm658 = vmor %vm656, %vm657
    %v659 = vsel %vm658, %v651, %v655
    %v660 = vand.u32 2147483647, %v650
    %vm661 = vcmp.eq.f32.partialorder %v660, 8.507059e+37
    %v662 = vand.u32 %v650, 2147483648
    %v663 = vor.u32 1.1754944e-38, %v662
    %v664 = vsel %vm661, %v663, %v659
    %v665 = vmul.f32 1.0, %v664
    %v666 = vtanh.pop %v619
    %v667 = vmul.f32 %v665, %v575
    %669 = vrot.lane.b32.xlu0 %v666, 64
    %v670 = vpop.permute.xlu0 %669
    %v672 = vmul.f32 %v665, %v670
    %674 = vrot.lane.b32.xlu0 %v672, 32
    %v675 = vpop.permute.xlu0 %674
    %v677 = vadd.f32 %v667, %v675
    %v678 = vtanh.pop %v677
    %680 = vrot.lane.b32.xlu0 %v678, 64
    %v681 = vpop.permute.xlu0 %680
    %v683 = vmul.f32 %v665, %v681
    %v684 = vxor.u32 %v646, 2147483648
    %v685 = vmul.f32 %v684, 1.442695
    %v686 = vpow.pop %v685
    %v687 = vadd.f32 %v686, 1.0
    %v688 = vrcp.pop %v687
    %v689 = vmul.f32 %v687, %v688
    %v690 = vsub.f32 1.0, %v689
    %v691 = vmul.f32 %v688, %v690
    %v692 = vadd.f32 %v688, %v691
    %vm693 = vweird.f32 %v687
    %vm694 = vweird.f32 %v688
    %vm695 = vmor %vm693, %vm694
    %v696 = vsel %vm695, %v688, %v692
    %v697 = vand.u32 2147483647, %v687
    %vm698 = vcmp.eq.f32.partialorder %v697, 8.507059e+37
    %v699 = vand.u32 %v687, 2147483648
    %v700 = vor.u32 1.1754944e-38, %v699
    %v701 = vsel %vm698, %v700, %v696
    %v702 = vmul.f32 1.0, %v701
    %v703 = vtanh.pop %v646
    %v704 = vmul.f32 %v702, %v582
    %706 = vrot.lane.b32.xlu0 %v703, 64
    %v707 = vpop.permute.xlu0 %706
    %v709 = vmul.f32 %v702, %v707
    %711 = vrot.lane.b32.xlu0 %v709, 32
    %v712 = vpop.permute.xlu0 %711
    %v714 = vadd.f32 %v704, %v712
    %v715 = vtanh.pop %v714
    %717 = vrot.lane.b32.xlu0 %v715, 64
    %v718 = vpop.permute.xlu0 %717
    %v720 = vmul.f32 %v702, %v718
    %vm721 = vcmp.gt.s32.totalorder %v140, 2
    %vm722 = vcmp.gt.s32.totalorder %v140, 5
    %v723 = vsel %vm721, 1, 0
    %724 = vset.pattern.permute.xlu0 0
    %725 = vperm.xlu0 %724, %v723
    %v726 = vpop.permute.xlu0 %725
    %vm727 = vcmp.eq.s32.totalorder %v726, 1
    %v728 = vsel %vm727, %v683, %v574
    %v729 = vsel %vm727, %v677, %v575
    %v730 = vsel %vm722, 1, 0
    %731 = vset.pattern.permute.xlu0 0
    %732 = vperm.xlu0 %731, %v730
    %v733 = vpop.permute.xlu0 %732
    %vm734 = vcmp.eq.s32.totalorder %v733, 1
    %v735 = vsel %vm734, %v720, %v581
    %v736 = vsel %vm734, %v714, %v582
    %738 = vrot.lane.b32.xlu0 %v728, 32
    %v739 = vpop.permute.xlu0 %738
    %s741 = scalar_lea.vmem [#allocation3], 16
    %742 = vst.msk [vmem:[%s741] sm:$0xff] %vm291, %v739
    %744 = vrot.lane.b32.xlu0 %v735, 64
    %v745 = vpop.permute.xlu0 %744
    %s747 = scalar_lea.vmem [#allocation3], 40
    %748 = vst.msk [vmem:[%s747] sm:$0xff] %vm439, %v745
    %s749 = scalar_lea.vmem [#allocation2], 48
    %v750 = vld [vmem:[%s749] sm:$0xff]
    %v751 = vsel %vm291, %v739, 0
    %753 = vmatpush.msra.mxu0 0.0
    %754 = vmatpush.msra.mxu0 0.0
    %755 = vmatpush.msra.mxu0 0.0
    %756 = vmatpush.msra.mxu0 0.0
    %757 = vmatpush.msra.mxu0 0.0
    %758 = vmatpush.msra.mxu0 0.0
    %759 = vmatpush.msra.mxu0 0.0
    %760 = vmatpush.msra.mxu0 0.0
    %761 = vmatpush.msra.mxu0 0.0
    %762 = vmatpush.msra.mxu0 0.0
    %763 = vmatpush.msra.mxu0 0.0
    %764 = vmatpush.msra.mxu0 0.0
    %765 = vmatpush.msra.mxu0 %v285
    %766 = vmatpush.msra.mxu0 %v284
    %767 = vmatpush.msra.mxu0 %v283
    %768 = vmatpush.msra.mxu0 %v282
    %769 = vmatmul.f32.gmra.mxu0 %v751
    %v770 = vpop.f32.mrf.mxu0
    %v771 = vadd.f32 0.0, %v770
    %772 = vdwg.mxu0
    %v773 = vadd.f32 %v750, %v771
    %s774 = scalar_lea.vmem [#allocation2], 64
    %v775 = vld [vmem:[%s774 + $0x8] sm:$0xff]
    %776 = vrot.lane.b32.xlu0 %v735, 32
    %v777 = vpop.permute.xlu0 %776
    %v778 = vsel %vm291, %v777, 0
    %780 = vmatpush.msra.mxu0 0.0
    %781 = vmatpush.msra.mxu0 0.0
    %782 = vmatpush.msra.mxu0 0.0
    %783 = vmatpush.msra.mxu0 0.0
    %784 = vmatpush.msra.mxu0 0.0
    %785 = vmatpush.msra.mxu0 0.0
    %786 = vmatpush.msra.mxu0 0.0
    %787 = vmatpush.msra.mxu0 0.0
    %788 = vmatpush.msra.mxu0 0.0
    %789 = vmatpush.msra.mxu0 0.0
    %790 = vmatpush.msra.mxu0 0.0
    %791 = vmatpush.msra.mxu0 0.0
    %792 = vmatpush.msra.mxu0 %v289
    %793 = vmatpush.msra.mxu0 %v288
    %794 = vmatpush.msra.mxu0 %v287
    %795 = vmatpush.msra.mxu0 %v286
    %796 = vmatmul.f32.gmra.mxu0 %v778
    %v797 = vpop.f32.mrf.mxu0
    %v798 = vadd.f32 0.0, %v797
    %799 = vdwg.mxu0
    %v800 = vadd.f32 %v775, %v798
    %v801 = vxor.u32 %v773, 2147483648
    %v802 = vmul.f32 %v801, 1.442695
    %v803 = vpow.pop %v802
    %v804 = vadd.f32 %v803, 1.0
    %v805 = vrcp.pop %v804
    %v806 = vmul.f32 %v804, %v805
    %v807 = vsub.f32 1.0, %v806
    %v808 = vmul.f32 %v805, %v807
    %v809 = vadd.f32 %v805, %v808
    %vm810 = vweird.f32 %v804
    %vm811 = vweird.f32 %v805
    %vm812 = vmor %vm810, %vm811
    %v813 = vsel %vm812, %v805, %v809
    %v814 = vand.u32 2147483647, %v804
    %vm815 = vcmp.eq.f32.partialorder %v814, 8.507059e+37
    %v816 = vand.u32 %v804, 2147483648
    %v817 = vor.u32 1.1754944e-38, %v816
    %v818 = vsel %vm815, %v817, %v813
    %v819 = vmul.f32 1.0, %v818
    %v820 = vtanh.pop %v773
    %v821 = vmul.f32 %v819, %v729
    %823 = vrot.lane.b32.xlu0 %v820, 64
    %v824 = vpop.permute.xlu0 %823
    %v826 = vmul.f32 %v819, %v824
    %828 = vrot.lane.b32.xlu0 %v826, 32
    %v829 = vpop.permute.xlu0 %828
    %v831 = vadd.f32 %v821, %v829
    %v832 = vtanh.pop %v831
    %834 = vrot.lane.b32.xlu0 %v832, 64
    %v835 = vpop.permute.xlu0 %834
    %v837 = vmul.f32 %v819, %v835
    %v838 = vxor.u32 %v800, 2147483648
    %v839 = vmul.f32 %v838, 1.442695
    %v840 = vpow.pop %v839
    %v841 = vadd.f32 %v840, 1.0
    %v842 = vrcp.pop %v841
    %v843 = vmul.f32 %v841, %v842
    %v844 = vsub.f32 1.0, %v843
    %v845 = vmul.f32 %v842, %v844
    %v846 = vadd.f32 %v842, %v845
    %vm847 = vweird.f32 %v841
    %vm848 = vweird.f32 %v842
    %vm849 = vmor %vm847, %vm848
    %v850 = vsel %vm849, %v842, %v846
    %v851 = vand.u32 2147483647, %v841
    %vm852 = vcmp.eq.f32.partialorder %v851, 8.507059e+37
    %v853 = vand.u32 %v841, 2147483648
    %v854 = vor.u32 1.1754944e-38, %v853
    %v855 = vsel %vm852, %v854, %v850
    %v856 = vmul.f32 1.0, %v855
    %v857 = vtanh.pop %v800
    %v858 = vmul.f32 %v856, %v736
    %860 = vrot.lane.b32.xlu0 %v857, 64
    %v861 = vpop.permute.xlu0 %860
    %v863 = vmul.f32 %v856, %v861
    %865 = vrot.lane.b32.xlu0 %v863, 32
    %v866 = vpop.permute.xlu0 %865
    %v868 = vadd.f32 %v858, %v866
    %v869 = vtanh.pop %v868
    %871 = vrot.lane.b32.xlu0 %v869, 64
    %v872 = vpop.permute.xlu0 %871
    %v874 = vmul.f32 %v856, %v872
    %vm875 = vcmp.gt.s32.totalorder %v140, 3
    %vm876 = vcmp.gt.s32.totalorder %v140, 4
    %v877 = vsel %vm875, 1, 0
    %878 = vset.pattern.permute.xlu0 0
    %879 = vperm.xlu0 %878, %v877
    %v880 = vpop.permute.xlu0 %879
    %vm881 = vcmp.eq.s32.totalorder %v880, 1
    %v882 = vsel %vm881, %v837, %v728
    %v883 = vsel %vm881, %v831, %v729
    %v884 = vsel %vm876, 1, 0
    %885 = vset.pattern.permute.xlu0 0
    %886 = vperm.xlu0 %885, %v884
    %v887 = vpop.permute.xlu0 %886
    %vm888 = vcmp.eq.s32.totalorder %v887, 1
    %v889 = vsel %vm888, %v874, %v735
    %v890 = vsel %vm888, %v868, %v736
    %892 = vrot.lane.b32.xlu0 %v882, 32
    %v893 = vpop.permute.xlu0 %892
    %s895 = scalar_lea.vmem [#allocation3], 24
    %896 = vst.msk [vmem:[%s895] sm:$0xff] %vm291, %v893
    %898 = vrot.lane.b32.xlu0 %v889, 64
    %v899 = vpop.permute.xlu0 %898
    %s901 = scalar_lea.vmem [#allocation3], 32
    %902 = vst.msk [vmem:[%s901] sm:$0xff] %vm439, %v899
    %v903 = vld [vmem:[%s774] sm:$0xff]
    %v904 = vsel %vm291, %v893, 0
    %906 = vmatpush.msra.mxu0 0.0
    %907 = vmatpush.msra.mxu0 0.0
    %908 = vmatpush.msra.mxu0 0.0
    %909 = vmatpush.msra.mxu0 0.0
    %910 = vmatpush.msra.mxu0 0.0
    %911 = vmatpush.msra.mxu0 0.0
    %912 = vmatpush.msra.mxu0 0.0
    %913 = vmatpush.msra.mxu0 0.0
    %914 = vmatpush.msra.mxu0 0.0
    %915 = vmatpush.msra.mxu0 0.0
    %916 = vmatpush.msra.mxu0 0.0
    %917 = vmatpush.msra.mxu0 0.0
    %918 = vmatpush.msra.mxu0 %v285
    %919 = vmatpush.msra.mxu0 %v284
    %920 = vmatpush.msra.mxu0 %v283
    %921 = vmatpush.msra.mxu0 %v282
    %922 = vmatmul.f32.gmra.mxu0 %v904
    %v923 = vpop.f32.mrf.mxu0
    %v924 = vadd.f32 0.0, %v923
    %925 = vdwg.mxu0
    %v926 = vadd.f32 %v903, %v924
    %v927 = vld [vmem:[%s749 + $0x8] sm:$0xff]
    %928 = vrot.lane.b32.xlu0 %v889, 32
    %v929 = vpop.permute.xlu0 %928
    %v930 = vsel %vm291, %v929, 0
    %932 = vmatpush.msra.mxu0 0.0
    %933 = vmatpush.msra.mxu0 0.0
    %934 = vmatpush.msra.mxu0 0.0
    %935 = vmatpush.msra.mxu0 0.0
    %936 = vmatpush.msra.mxu0 0.0
    %937 = vmatpush.msra.mxu0 0.0
    %938 = vmatpush.msra.mxu0 0.0
    %939 = vmatpush.msra.mxu0 0.0
    %940 = vmatpush.msra.mxu0 0.0
    %941 = vmatpush.msra.mxu0 0.0
    %942 = vmatpush.msra.mxu0 0.0
    %943 = vmatpush.msra.mxu0 0.0
    %944 = vmatpush.msra.mxu0 %v289
    %945 = vmatpush.msra.mxu0 %v288
    %946 = vmatpush.msra.mxu0 %v287
    %947 = vmatpush.msra.mxu0 %v286
    %948 = vmatmul.f32.gmra.mxu0 %v930
    %v949 = vpop.f32.mrf.mxu0
    %v950 = vadd.f32 0.0, %v949
    %951 = vdwg.mxu0
    %v952 = vadd.f32 %v927, %v950
    %v953 = vxor.u32 %v926, 2147483648
    %v954 = vmul.f32 %v953, 1.442695
    %v955 = vpow.pop %v954
    %v956 = vadd.f32 %v955, 1.0
    %v957 = vrcp.pop %v956
    %v958 = vmul.f32 %v956, %v957
    %v959 = vsub.f32 1.0, %v958
    %v960 = vmul.f32 %v957, %v959
    %v961 = vadd.f32 %v957, %v960
    %vm962 = vweird.f32 %v956
    %vm963 = vweird.f32 %v957
    %vm964 = vmor %vm962, %vm963
    %v965 = vsel %vm964, %v957, %v961
    %v966 = vand.u32 2147483647, %v956
    %vm967 = vcmp.eq.f32.partialorder %v966, 8.507059e+37
    %v968 = vand.u32 %v956, 2147483648
    %v969 = vor.u32 1.1754944e-38, %v968
    %v970 = vsel %vm967, %v969, %v965
    %v971 = vmul.f32 1.0, %v970
    %v972 = vtanh.pop %v926
    %v973 = vmul.f32 %v971, %v883
    %975 = vrot.lane.b32.xlu0 %v972, 64
    %v976 = vpop.permute.xlu0 %975
    %v978 = vmul.f32 %v971, %v976
    %980 = vrot.lane.b32.xlu0 %v978, 32
    %v981 = vpop.permute.xlu0 %980
    %v983 = vadd.f32 %v973, %v981
    %v984 = vtanh.pop %v983
    %986 = vrot.lane.b32.xlu0 %v984, 64
    %v987 = vpop.permute.xlu0 %986
    %v989 = vmul.f32 %v971, %v987
    %v990 = vxor.u32 %v952, 2147483648
    %v991 = vmul.f32 %v990, 1.442695
    %v992 = vpow.pop %v991
    %v993 = vadd.f32 %v992, 1.0
    %v994 = vrcp.pop %v993
    %v995 = vmul.f32 %v993, %v994
    %v996 = vsub.f32 1.0, %v995
    %v997 = vmul.f32 %v994, %v996
    %v998 = vadd.f32 %v994, %v997
    %vm999 = vweird.f32 %v993
    %vm1000 = vweird.f32 %v994
    %vm1001 = vmor %vm999, %vm1000
    %v1002 = vsel %vm1001, %v994, %v998
    %v1003 = vand.u32 2147483647, %v993
    %vm1004 = vcmp.eq.f32.partialorder %v1003, 8.507059e+37
    %v1005 = vand.u32 %v993, 2147483648
    %v1006 = vor.u32 1.1754944e-38, %v1005
    %v1007 = vsel %vm1004, %v1006, %v1002
    %v1008 = vmul.f32 1.0, %v1007
    %v1009 = vtanh.pop %v952
    %v1010 = vmul.f32 %v1008, %v890
    %1012 = vrot.lane.b32.xlu0 %v1009, 64
    %v1013 = vpop.permute.xlu0 %1012
    %v1015 = vmul.f32 %v1008, %v1013
    %1017 = vrot.lane.b32.xlu0 %v1015, 32
    %v1018 = vpop.permute.xlu0 %1017
    %v1020 = vadd.f32 %v1010, %v1018
    %v1021 = vtanh.pop %v1020
    %1023 = vrot.lane.b32.xlu0 %v1021, 64
    %v1024 = vpop.permute.xlu0 %1023
    %v1026 = vmul.f32 %v1008, %v1024
    %v1027 = vsel %vm888, %v989, %v882
    %v1028 = vsel %vm888, %v983, %v883
    %v1029 = vsel %vm881, %v1026, %v889
    %v1030 = vsel %vm881, %v1020, %v890
    %1032 = vrot.lane.b32.xlu0 %v1027, 32
    %v1033 = vpop.permute.xlu0 %1032
    %1035 = vst.msk [vmem:[%s901] sm:$0xff] %vm291, %v1033
    %1037 = vrot.lane.b32.xlu0 %v1029, 64
    %v1038 = vpop.permute.xlu0 %1037
    %1040 = vst.msk [vmem:[%s895] sm:$0xff] %vm439, %v1038
    %v1041 = vld [vmem:[%s620] sm:$0xff]
    %v1042 = vsel %vm291, %v1033, 0
    %1044 = vmatpush.msra.mxu0 0.0
    %1045 = vmatpush.msra.mxu0 0.0
    %1046 = vmatpush.msra.mxu0 0.0
    %1047 = vmatpush.msra.mxu0 0.0
    %1048 = vmatpush.msra.mxu0 0.0
    %1049 = vmatpush.msra.mxu0 0.0
    %1050 = vmatpush.msra.mxu0 0.0
    %1051 = vmatpush.msra.mxu0 0.0
    %1052 = vmatpush.msra.mxu0 0.0
    %1053 = vmatpush.msra.mxu0 0.0
    %1054 = vmatpush.msra.mxu0 0.0
    %1055 = vmatpush.msra.mxu0 0.0
    %1056 = vmatpush.msra.mxu0 %v285
    %1057 = vmatpush.msra.mxu0 %v284
    %1058 = vmatpush.msra.mxu0 %v283
    %1059 = vmatpush.msra.mxu0 %v282
    %1060 = vmatmul.f32.gmra.mxu0 %v1042
    %v1061 = vpop.f32.mrf.mxu0
    %v1062 = vadd.f32 0.0, %v1061
    %1063 = vdwg.mxu0
    %v1064 = vadd.f32 %v1041, %v1062
    %v1065 = vld [vmem:[%s595 + $0x8] sm:$0xff]
    %1066 = vrot.lane.b32.xlu0 %v1029, 32
    %v1067 = vpop.permute.xlu0 %1066
    %v1068 = vsel %vm291, %v1067, 0
    %1070 = vmatpush.msra.mxu0 0.0
    %1071 = vmatpush.msra.mxu0 0.0
    %1072 = vmatpush.msra.mxu0 0.0
    %1073 = vmatpush.msra.mxu0 0.0
    %1074 = vmatpush.msra.mxu0 0.0
    %1075 = vmatpush.msra.mxu0 0.0
    %1076 = vmatpush.msra.mxu0 0.0
    %1077 = vmatpush.msra.mxu0 0.0
    %1078 = vmatpush.msra.mxu0 0.0
    %1079 = vmatpush.msra.mxu0 0.0
    %1080 = vmatpush.msra.mxu0 0.0
    %1081 = vmatpush.msra.mxu0 0.0
    %1082 = vmatpush.msra.mxu0 %v289
    %1083 = vmatpush.msra.mxu0 %v288
    %1084 = vmatpush.msra.mxu0 %v287
    %1085 = vmatpush.msra.mxu0 %v286
    %1086 = vmatmul.f32.gmra.mxu0 %v1068
    %v1087 = vpop.f32.mrf.mxu0
    %v1088 = vadd.f32 0.0, %v1087
    %1089 = vdwg.mxu0
    %v1090 = vadd.f32 %v1065, %v1088
    %v1091 = vxor.u32 %v1064, 2147483648
    %v1092 = vmul.f32 %v1091, 1.442695
    %v1093 = vpow.pop %v1092
    %v1094 = vadd.f32 %v1093, 1.0
    %v1095 = vrcp.pop %v1094
    %v1096 = vmul.f32 %v1094, %v1095
    %v1097 = vsub.f32 1.0, %v1096
    %v1098 = vmul.f32 %v1095, %v1097
    %v1099 = vadd.f32 %v1095, %v1098
    %vm1100 = vweird.f32 %v1094
    %vm1101 = vweird.f32 %v1095
    %vm1102 = vmor %vm1100, %vm1101
    %v1103 = vsel %vm1102, %v1095, %v1099
    %v1104 = vand.u32 2147483647, %v1094
    %vm1105 = vcmp.eq.f32.partialorder %v1104, 8.507059e+37
    %v1106 = vand.u32 %v1094, 2147483648
    %v1107 = vor.u32 1.1754944e-38, %v1106
    %v1108 = vsel %vm1105, %v1107, %v1103
    %v1109 = vmul.f32 1.0, %v1108
    %v1110 = vtanh.pop %v1064
    %v1111 = vmul.f32 %v1109, %v1028
    %1113 = vrot.lane.b32.xlu0 %v1110, 64
    %v1114 = vpop.permute.xlu0 %1113
    %v1116 = vmul.f32 %v1109, %v1114
    %1118 = vrot.lane.b32.xlu0 %v1116, 32
    %v1119 = vpop.permute.xlu0 %1118
    %v1121 = vadd.f32 %v1111, %v1119
    %v1122 = vtanh.pop %v1121
    %1124 = vrot.lane.b32.xlu0 %v1122, 64
    %v1125 = vpop.permute.xlu0 %1124
    %v1127 = vmul.f32 %v1109, %v1125
    %v1128 = vxor.u32 %v1090, 2147483648
    %v1129 = vmul.f32 %v1128, 1.442695
    %v1130 = vpow.pop %v1129
    %v1131 = vadd.f32 %v1130, 1.0
    %v1132 = vrcp.pop %v1131
    %v1133 = vmul.f32 %v1131, %v1132
    %v1134 = vsub.f32 1.0, %v1133
    %v1135 = vmul.f32 %v1132, %v1134
    %v1136 = vadd.f32 %v1132, %v1135
    %vm1137 = vweird.f32 %v1131
    %vm1138 = vweird.f32 %v1132
    %vm1139 = vmor %vm1137, %vm1138
    %v1140 = vsel %vm1139, %v1132, %v1136
    %v1141 = vand.u32 2147483647, %v1131
    %vm1142 = vcmp.eq.f32.partialorder %v1141, 8.507059e+37
    %v1143 = vand.u32 %v1131, 2147483648
    %v1144 = vor.u32 1.1754944e-38, %v1143
    %v1145 = vsel %vm1142, %v1144, %v1140
    %v1146 = vmul.f32 1.0, %v1145
    %v1147 = vtanh.pop %v1090
    %v1148 = vmul.f32 %v1146, %v1030
    %1150 = vrot.lane.b32.xlu0 %v1147, 64
    %v1151 = vpop.permute.xlu0 %1150
    %v1153 = vmul.f32 %v1146, %v1151
    %1155 = vrot.lane.b32.xlu0 %v1153, 32
    %v1156 = vpop.permute.xlu0 %1155
    %v1158 = vadd.f32 %v1148, %v1156
    %v1159 = vtanh.pop %v1158
    %1161 = vrot.lane.b32.xlu0 %v1159, 64
    %v1162 = vpop.permute.xlu0 %1161
    %v1164 = vmul.f32 %v1146, %v1162
    %v1165 = vsel %vm734, %v1127, %v1027
    %v1166 = vsel %vm734, %v1121, %v1028
    %v1167 = vsel %vm727, %v1164, %v1029
    %v1168 = vsel %vm727, %v1158, %v1030
    %1170 = vrot.lane.b32.xlu0 %v1165, 32
    %v1171 = vpop.permute.xlu0 %1170
    %1173 = vst.msk [vmem:[%s747] sm:$0xff] %vm291, %v1171
    %1175 = vrot.lane.b32.xlu0 %v1167, 64
    %v1176 = vpop.permute.xlu0 %1175
    %1178 = vst.msk [vmem:[%s741] sm:$0xff] %vm439, %v1176
    %v1179 = vld [vmem:[%s466] sm:$0xff]
    %v1180 = vsel %vm291, %v1171, 0
    %1182 = vmatpush.msra.mxu0 0.0
    %1183 = vmatpush.msra.mxu0 0.0
    %1184 = vmatpush.msra.mxu0 0.0
    %1185 = vmatpush.msra.mxu0 0.0
    %1186 = vmatpush.msra.mxu0 0.0
    %1187 = vmatpush.msra.mxu0 0.0
    %1188 = vmatpush.msra.mxu0 0.0
    %1189 = vmatpush.msra.mxu0 0.0
    %1190 = vmatpush.msra.mxu0 0.0
    %1191 = vmatpush.msra.mxu0 0.0
    %1192 = vmatpush.msra.mxu0 0.0
    %1193 = vmatpush.msra.mxu0 0.0
    %1194 = vmatpush.msra.mxu0 %v285
    %1195 = vmatpush.msra.mxu0 %v284
    %1196 = vmatpush.msra.mxu0 %v283
    %1197 = vmatpush.msra.mxu0 %v282
    %1198 = vmatmul.f32.gmra.mxu0 %v1180
    %v1199 = vpop.f32.mrf.mxu0
    %v1200 = vadd.f32 0.0, %v1199
    %1201 = vdwg.mxu0
    %v1202 = vadd.f32 %v1179, %v1200
    %v1203 = vld [vmem:[%s441 + $0x8] sm:$0xff]
    %1204 = vrot.lane.b32.xlu0 %v1167, 32
    %v1205 = vpop.permute.xlu0 %1204
    %v1206 = vsel %vm291, %v1205, 0
    %1208 = vmatpush.msra.mxu0 0.0
    %1209 = vmatpush.msra.mxu0 0.0
    %1210 = vmatpush.msra.mxu0 0.0
    %1211 = vmatpush.msra.mxu0 0.0
    %1212 = vmatpush.msra.mxu0 0.0
    %1213 = vmatpush.msra.mxu0 0.0
    %1214 = vmatpush.msra.mxu0 0.0
    %1215 = vmatpush.msra.mxu0 0.0
    %1216 = vmatpush.msra.mxu0 0.0
    %1217 = vmatpush.msra.mxu0 0.0
    %1218 = vmatpush.msra.mxu0 0.0
    %1219 = vmatpush.msra.mxu0 0.0
    %1220 = vmatpush.msra.mxu0 %v289
    %1221 = vmatpush.msra.mxu0 %v288
    %1222 = vmatpush.msra.mxu0 %v287
    %1223 = vmatpush.msra.mxu0 %v286
    %1224 = vmatmul.f32.gmra.mxu0 %v1206
    %v1225 = vpop.f32.mrf.mxu0
    %v1226 = vadd.f32 0.0, %v1225
    %1227 = vdwg.mxu0
    %v1228 = vadd.f32 %v1203, %v1226
    %v1229 = vxor.u32 %v1202, 2147483648
    %v1230 = vmul.f32 %v1229, 1.442695
    %v1231 = vpow.pop %v1230
    %v1232 = vadd.f32 %v1231, 1.0
    %v1233 = vrcp.pop %v1232
    %v1234 = vmul.f32 %v1232, %v1233
    %v1235 = vsub.f32 1.0, %v1234
    %v1236 = vmul.f32 %v1233, %v1235
    %v1237 = vadd.f32 %v1233, %v1236
    %vm1238 = vweird.f32 %v1232
    %vm1239 = vweird.f32 %v1233
    %vm1240 = vmor %vm1238, %vm1239
    %v1241 = vsel %vm1240, %v1233, %v1237
    %v1242 = vand.u32 2147483647, %v1232
    %vm1243 = vcmp.eq.f32.partialorder %v1242, 8.507059e+37
    %v1244 = vand.u32 %v1232, 2147483648
    %v1245 = vor.u32 1.1754944e-38, %v1244
    %v1246 = vsel %vm1243, %v1245, %v1241
    %v1247 = vmul.f32 1.0, %v1246
    %v1248 = vtanh.pop %v1202
    %v1249 = vmul.f32 %v1247, %v1166
    %1251 = vrot.lane.b32.xlu0 %v1248, 64
    %v1252 = vpop.permute.xlu0 %1251
    %v1254 = vmul.f32 %v1247, %v1252
    %1256 = vrot.lane.b32.xlu0 %v1254, 32
    %v1257 = vpop.permute.xlu0 %1256
    %v1259 = vadd.f32 %v1249, %v1257
    %v1260 = vtanh.pop %v1259
    %1262 = vrot.lane.b32.xlu0 %v1260, 64
    %v1263 = vpop.permute.xlu0 %1262
    %v1265 = vmul.f32 %v1247, %v1263
    %v1266 = vxor.u32 %v1228, 2147483648
    %v1267 = vmul.f32 %v1266, 1.442695
    %v1268 = vpow.pop %v1267
    %v1269 = vadd.f32 %v1268, 1.0
    %v1270 = vrcp.pop %v1269
    %v1271 = vmul.f32 %v1269, %v1270
    %v1272 = vsub.f32 1.0, %v1271
    %v1273 = vmul.f32 %v1270, %v1272
    %v1274 = vadd.f32 %v1270, %v1273
    %vm1275 = vweird.f32 %v1269
    %vm1276 = vweird.f32 %v1270
    %vm1277 = vmor %vm1275, %vm1276
    %v1278 = vsel %vm1277, %v1270, %v1274
    %v1279 = vand.u32 2147483647, %v1269
    %vm1280 = vcmp.eq.f32.partialorder %v1279, 8.507059e+37
    %v1281 = vand.u32 %v1269, 2147483648
    %v1282 = vor.u32 1.1754944e-38, %v1281
    %v1283 = vsel %vm1280, %v1282, %v1278
    %v1284 = vmul.f32 1.0, %v1283
    %v1285 = vtanh.pop %v1228
    %v1286 = vmul.f32 %v1284, %v1168
    %1288 = vrot.lane.b32.xlu0 %v1285, 64
    %v1289 = vpop.permute.xlu0 %1288
    %v1291 = vmul.f32 %v1284, %v1289
    %1293 = vrot.lane.b32.xlu0 %v1291, 32
    %v1294 = vpop.permute.xlu0 %1293
    %v1296 = vadd.f32 %v1286, %v1294
    %v1297 = vtanh.pop %v1296
    %1299 = vrot.lane.b32.xlu0 %v1297, 64
    %v1300 = vpop.permute.xlu0 %1299
    %v1302 = vmul.f32 %v1284, %v1300
    %v1303 = vsel %vm580, %v1265, %v1165
    %v1304 = vsel %vm580, %v1259, %v1166
    %v1305 = vsel %vm573, %v1302, %v1167
    %v1306 = vsel %vm573, %v1296, %v1168
    %1308 = vrot.lane.b32.xlu0 %v1303, 32
    %v1309 = vpop.permute.xlu0 %1308
    %1311 = vst.msk [vmem:[%s593] sm:$0xff] %vm291, %v1309
    %1313 = vrot.lane.b32.xlu0 %v1305, 64
    %v1314 = vpop.permute.xlu0 %1313
    %1316 = vst.msk [vmem:[%s587] sm:$0xff] %vm439, %v1314
    %v1317 = vld [vmem:[%s316] sm:$0xff]
    %v1318 = vsel %vm291, %v1309, 0
    %1320 = vmatpush.msra.mxu0 0.0
    %1321 = vmatpush.msra.mxu0 0.0
    %1322 = vmatpush.msra.mxu0 0.0
    %1323 = vmatpush.msra.mxu0 0.0
    %1324 = vmatpush.msra.mxu0 0.0
    %1325 = vmatpush.msra.mxu0 0.0
    %1326 = vmatpush.msra.mxu0 0.0
    %1327 = vmatpush.msra.mxu0 0.0
    %1328 = vmatpush.msra.mxu0 0.0
    %1329 = vmatpush.msra.mxu0 0.0
    %1330 = vmatpush.msra.mxu0 0.0
    %1331 = vmatpush.msra.mxu0 0.0
    %1332 = vmatpush.msra.mxu0 %v285
    %1333 = vmatpush.msra.mxu0 %v284
    %1334 = vmatpush.msra.mxu0 %v283
    %1335 = vmatpush.msra.mxu0 %v282
    %1336 = vmatmul.f32.gmra.mxu0 %v1318
    %v1337 = vpop.f32.mrf.mxu0
    %v1338 = vadd.f32 0.0, %v1337
    %1339 = vdwg.mxu0
    %v1340 = vadd.f32 %v1317, %v1338
    %v1341 = vld [vmem:[#allocation2 + $0x8] sm:$0xff]
    %1342 = vrot.lane.b32.xlu0 %v1305, 32
    %v1343 = vpop.permute.xlu0 %1342
    %v1344 = vsel %vm291, %v1343, 0
    %1346 = vmatpush.msra.mxu0 0.0
    %1347 = vmatpush.msra.mxu0 0.0
    %1348 = vmatpush.msra.mxu0 0.0
    %1349 = vmatpush.msra.mxu0 0.0
    %1350 = vmatpush.msra.mxu0 0.0
    %1351 = vmatpush.msra.mxu0 0.0
    %1352 = vmatpush.msra.mxu0 0.0
    %1353 = vmatpush.msra.mxu0 0.0
    %1354 = vmatpush.msra.mxu0 0.0
    %1355 = vmatpush.msra.mxu0 0.0
    %1356 = vmatpush.msra.mxu0 0.0
    %1357 = vmatpush.msra.mxu0 0.0
    %1358 = vmatpush.msra.mxu0 %v289
    %1359 = vmatpush.msra.mxu0 %v288
    %1360 = vmatpush.msra.mxu0 %v287
    %1361 = vmatpush.msra.mxu0 %v286
    %1362 = vmatmul.f32.gmra.mxu0 %v1344
    %v1363 = vpop.f32.mrf.mxu0
    %v1364 = vadd.f32 0.0, %v1363
    %1365 = vdwg.mxu0
    %v1366 = vadd.f32 %v1341, %v1364
    %v1367 = vxor.u32 %v1340, 2147483648
    %v1368 = vmul.f32 %v1367, 1.442695
    %v1369 = vpow.pop %v1368
    %v1370 = vadd.f32 %v1369, 1.0
    %v1371 = vrcp.pop %v1370
    %v1372 = vmul.f32 %v1370, %v1371
    %v1373 = vsub.f32 1.0, %v1372
    %v1374 = vmul.f32 %v1371, %v1373
    %v1375 = vadd.f32 %v1371, %v1374
    %vm1376 = vweird.f32 %v1370
    %vm1377 = vweird.f32 %v1371
    %vm1378 = vmor %vm1376, %vm1377
    %v1379 = vsel %vm1378, %v1371, %v1375
    %v1380 = vand.u32 2147483647, %v1370
    %vm1381 = vcmp.eq.f32.partialorder %v1380, 8.507059e+37
    %v1382 = vand.u32 %v1370, 2147483648
    %v1383 = vor.u32 1.1754944e-38, %v1382
    %v1384 = vsel %vm1381, %v1383, %v1379
    %v1385 = vmul.f32 1.0, %v1384
    %v1386 = vtanh.pop %v1340
    %v1387 = vmul.f32 %v1385, %v1304
    %1389 = vrot.lane.b32.xlu0 %v1386, 64
    %v1390 = vpop.permute.xlu0 %1389
    %v1392 = vmul.f32 %v1385, %v1390
    %1394 = vrot.lane.b32.xlu0 %v1392, 32
    %v1395 = vpop.permute.xlu0 %1394
    %v1397 = vadd.f32 %v1387, %v1395
    %v1398 = vtanh.pop %v1397
    %1400 = vrot.lane.b32.xlu0 %v1398, 64
    %v1401 = vpop.permute.xlu0 %1400
    %v1403 = vmul.f32 %v1385, %v1401
    %v1404 = vxor.u32 %v1366, 2147483648
    %v1405 = vmul.f32 %v1404, 1.442695
    %v1406 = vpow.pop %v1405
    %v1407 = vadd.f32 %v1406, 1.0
    %v1408 = vrcp.pop %v1407
    %v1409 = vmul.f32 %v1407, %v1408
    %v1410 = vsub.f32 1.0, %v1409
    %v1411 = vmul.f32 %v1408, %v1410
    %v1412 = vadd.f32 %v1408, %v1411
    %vm1413 = vweird.f32 %v1407
    %vm1414 = vweird.f32 %v1408
    %vm1415 = vmor %vm1413, %vm1414
    %v1416 = vsel %vm1415, %v1408, %v1412
    %v1417 = vand.u32 2147483647, %v1407
    %vm1418 = vcmp.eq.f32.partialorder %v1417, 8.507059e+37
    %v1419 = vand.u32 %v1407, 2147483648
    %v1420 = vor.u32 1.1754944e-38, %v1419
    %v1421 = vsel %vm1418, %v1420, %v1416
    %v1422 = vmul.f32 1.0, %v1421
    %v1423 = vtanh.pop %v1366
    %v1424 = vmul.f32 %v1422, %v1306
    %1426 = vrot.lane.b32.xlu0 %v1423, 64
    %v1427 = vpop.permute.xlu0 %1426
    %v1429 = vmul.f32 %v1422, %v1427
    %1431 = vrot.lane.b32.xlu0 %v1429, 32
    %v1432 = vpop.permute.xlu0 %1431
    %v1434 = vadd.f32 %v1424, %v1432
    %v1435 = vtanh.pop %v1434
    %1437 = vrot.lane.b32.xlu0 %v1435, 64
    %v1438 = vpop.permute.xlu0 %1437
    %v1440 = vmul.f32 %v1422, %v1438
    %v1441 = vsel %vm426, %v1403, %v1303
    %v1442 = vsel %vm419, %v1440, %v1305
    %1444 = vrot.lane.b32.xlu0 %v1441, 32
    %v1445 = vpop.permute.xlu0 %1444
    %1447 = vst.msk [vmem:[%s438] sm:$0xff] %vm291, %v1445
    %1449 = vrot.lane.b32.xlu0 %v1442, 64
    %v1450 = vpop.permute.xlu0 %1449
    %1452 = vst.msk [vmem:[#allocation3] sm:$0xff] %vm439, %v1450
    %v1453 = vld [vmem:[#allocation3] sm:$0xff]
    %v1454 = vld [vmem:[#allocation3 + $0x8] sm:$0xff]
    %v1455 = vld [vmem:[#allocation3 + $0x10] sm:$0xff]
    %v1456 = vld [vmem:[#allocation3 + $0x18] sm:$0xff]
    %v1457 = vld [vmem:[#allocation3 + $0x20] sm:$0xff]
    %v1458 = vld [vmem:[#allocation3 + $0x28] sm:$0xff]
    %v1459 = vld [vmem:[#allocation3 + $0x30] sm:$0xff]
    %v1460 = vld [vmem:[#allocation3 + $0x38] sm:$0xff]
    %v1461 = vld [vmem:[#allocation11] sm:$0xff]
    %v1462 = vld [vmem:[#allocation11 + $0x8] sm:$0xff]
    %v1463 = vld [vmem:[#allocation11 + $0x10] sm:$0xff]
    %v1464 = vld [vmem:[#allocation11 + $0x18] sm:$0xff]
    %v1465 = vld [vmem:[#allocation11 + $0x20] sm:$0xff]
    %v1466 = vld [vmem:[#allocation11 + $0x28] sm:$0xff]
    %v1467 = vld [vmem:[#allocation11 + $0x30] sm:$0xff]
    %v1468 = vld [vmem:[#allocation11 + $0x38] sm:$0xff]
    %v1469 = vld [vmem:[#allocation11 + $0x40] sm:$0xff]
    %v1470 = vld [vmem:[#allocation11 + $0x48] sm:$0xff]
    %v1471 = vld [vmem:[#allocation11 + $0x50] sm:$0xff]
    %v1472 = vld [vmem:[#allocation11 + $0x58] sm:$0xff]
    %v1473 = vld [vmem:[#allocation11 + $0x60] sm:$0xff]
    %v1474 = vld [vmem:[#allocation11 + $0x68] sm:$0xff]
    %v1475 = vld [vmem:[#allocation11 + $0x70] sm:$0xff]
    %v1476 = vld [vmem:[#allocation11 + $0x78] sm:$0xff]
    %v1477 = vld [vmem:[%s7] sm:$0x3]
    %v1479 = vperm.slane %v1477, 0
    %v1480 = vperm.slane %v1477, 1
    %vm1483 = vcmask 523264
    %v1485 = vsel %vm1483, %v1453, 0
    %v1488 = vsel %vm1483, %v1454, 0
    %v1491 = vsel %vm1483, %v1455, 0
    %v1494 = vsel %vm1483, %v1456, 0
    %v1497 = vsel %vm1483, %v1457, 0
    %v1500 = vsel %vm1483, %v1458, 0
    %v1503 = vsel %vm1483, %v1459, 0
    %v1506 = vsel %vm1483, %v1460, 0
    %1508 = vmatpush.msra.mxu0 0.0
    %1509 = vmatpush.msra.mxu0 0.0
    %1510 = vmatpush.msra.mxu0 0.0
    %1511 = vmatpush.msra.mxu0 0.0
    %1512 = vmatpush.msra.mxu0 0.0
    %1513 = vmatpush.msra.mxu0 0.0
    %1514 = vmatpush.msra.mxu0 0.0
    %1515 = vmatpush.msra.mxu0 0.0
    %1516 = vmatpush.msra.mxu0 %v1475
    %1517 = vmatpush.msra.mxu0 %v1473
    %1518 = vmatpush.msra.mxu0 %v1471
    %1519 = vmatpush.msra.mxu0 %v1469
    %1520 = vmatpush.msra.mxu0 %v1467
    %1521 = vmatpush.msra.mxu0 %v1465
    %1522 = vmatpush.msra.mxu0 %v1463
    %1523 = vmatpush.msra.mxu0 %v1461
    %1524 = vmatmul.f32.gmra.mxu0 %v1485
    %v1525 = vpop.f32.mrf.mxu0
    %v1526 = vadd.f32 %v1479, %v1525
    %1527 = vmatmul.f32.gmra.mxu0 %v1488
    %v1528 = vpop.f32.mrf.mxu0
    %v1529 = vadd.f32 %v1479, %v1528
    %1530 = vmatmul.f32.gmra.mxu0 %v1491
    %v1531 = vpop.f32.mrf.mxu0
    %v1532 = vadd.f32 %v1479, %v1531
    %1533 = vmatmul.f32.gmra.mxu0 %v1494
    %v1534 = vpop.f32.mrf.mxu0
    %v1535 = vadd.f32 %v1479, %v1534
    %1536 = vmatmul.f32.gmra.mxu0 %v1497
    %v1537 = vpop.f32.mrf.mxu0
    %v1538 = vadd.f32 %v1479, %v1537
    %1539 = vmatmul.f32.gmra.mxu0 %v1500
    %v1540 = vpop.f32.mrf.mxu0
    %v1541 = vadd.f32 %v1479, %v1540
    %1542 = vmatmul.f32.gmra.mxu0 %v1503
    %v1543 = vpop.f32.mrf.mxu0
    %v1544 = vadd.f32 %v1479, %v1543
    %1545 = vmatmul.f32.gmra.mxu0 %v1506
    %v1546 = vpop.f32.mrf.mxu0
    %v1547 = vadd.f32 %v1479, %v1546
    %1548 = vdwg.mxu0
    %1549 = vmatpush.msra.mxu0 0.0
    %1550 = vmatpush.msra.mxu0 0.0
    %1551 = vmatpush.msra.mxu0 0.0
    %1552 = vmatpush.msra.mxu0 0.0
    %1553 = vmatpush.msra.mxu0 0.0
    %1554 = vmatpush.msra.mxu0 0.0
    %1555 = vmatpush.msra.mxu0 0.0
    %1556 = vmatpush.msra.mxu0 0.0
    %1557 = vmatpush.msra.mxu0 %v1476
    %1558 = vmatpush.msra.mxu0 %v1474
    %1559 = vmatpush.msra.mxu0 %v1472
    %1560 = vmatpush.msra.mxu0 %v1470
    %1561 = vmatpush.msra.mxu0 %v1468
    %1562 = vmatpush.msra.mxu0 %v1466
    %1563 = vmatpush.msra.mxu0 %v1464
    %1564 = vmatpush.msra.mxu0 %v1462
    %1565 = vmatmul.f32.gmra.mxu0 %v1485
    %v1566 = vpop.f32.mrf.mxu0
    %v1567 = vadd.f32 %v1480, %v1566
    %1568 = vmatmul.f32.gmra.mxu0 %v1488
    %v1569 = vpop.f32.mrf.mxu0
    %v1570 = vadd.f32 %v1480, %v1569
    %1571 = vmatmul.f32.gmra.mxu0 %v1491
    %v1572 = vpop.f32.mrf.mxu0
    %v1573 = vadd.f32 %v1480, %v1572
    %1574 = vmatmul.f32.gmra.mxu0 %v1494
    %v1575 = vpop.f32.mrf.mxu0
    %v1576 = vadd.f32 %v1480, %v1575
    %1577 = vmatmul.f32.gmra.mxu0 %v1497
    %v1578 = vpop.f32.mrf.mxu0
    %v1579 = vadd.f32 %v1480, %v1578
    %1580 = vmatmul.f32.gmra.mxu0 %v1500
    %v1581 = vpop.f32.mrf.mxu0
    %v1582 = vadd.f32 %v1480, %v1581
    %1583 = vmatmul.f32.gmra.mxu0 %v1503
    %v1584 = vpop.f32.mrf.mxu0
    %v1585 = vadd.f32 %v1480, %v1584
    %1586 = vmatmul.f32.gmra.mxu0 %v1506
    %v1587 = vpop.f32.mrf.mxu0
    %v1588 = vadd.f32 %v1480, %v1587
    %1589 = vdwg.mxu0
    %1590 = vst [vmem:[#allocation4] sm:$0xff] %v1526
    %1591 = vst [vmem:[#allocation4 + $0x8] sm:$0xff] %v1567
    %1592 = vst [vmem:[#allocation4 + $0x10] sm:$0xff] %v1529
    %1593 = vst [vmem:[#allocation4 + $0x18] sm:$0xff] %v1570
    %1594 = vst [vmem:[#allocation4 + $0x20] sm:$0xff] %v1532
    %1595 = vst [vmem:[#allocation4 + $0x28] sm:$0xff] %v1573
    %1596 = vst [vmem:[#allocation4 + $0x30] sm:$0xff] %v1535
    %1597 = vst [vmem:[#allocation4 + $0x38] sm:$0xff] %v1576
    %1598 = vst [vmem:[#allocation4 + $0x40] sm:$0xff] %v1538
    %1599 = vst [vmem:[#allocation4 + $0x48] sm:$0xff] %v1579
    %1600 = vst [vmem:[#allocation4 + $0x50] sm:$0xff] %v1541
    %1601 = vst [vmem:[#allocation4 + $0x58] sm:$0xff] %v1582
    %1602 = vst [vmem:[#allocation4 + $0x60] sm:$0xff] %v1544
    %1603 = vst [vmem:[#allocation4 + $0x68] sm:$0xff] %v1585
    %1604 = vst [vmem:[#allocation4 + $0x70] sm:$0xff] %v1547
    %1605 = vst [vmem:[#allocation4 + $0x78] sm:$0xff] %v1588
    %v1606 = vld [vmem:[#allocation13] sm:$0xff]
    %v1607 = vld [vmem:[#allocation13 + $0x8] sm:$0xff]
    %v1608 = vld [vmem:[#allocation13 + $0x10] sm:$0xff]
    %v1609 = vld [vmem:[#allocation13 + $0x18] sm:$0xff]
    %v1610 = vld [vmem:[#allocation14] sm:$0xff]
    %v1611 = vld [vmem:[#allocation14 + $0x8] sm:$0xff]
    %v1612 = vld [vmem:[#allocation14 + $0x10] sm:$0xff]
    %v1613 = vld [vmem:[#allocation14 + $0x18] sm:$0xff]
    %v1614 = vld [vmem:[#allocation4] sm:$0xff]
    %1615 = vmatpush.msra.mxu0 0.0
    %1616 = vmatpush.msra.mxu0 0.0
    %1617 = vmatpush.msra.mxu0 0.0
    %1618 = vmatpush.msra.mxu0 0.0
    %1619 = vmatpush.msra.mxu0 0.0
    %1620 = vmatpush.msra.mxu0 0.0
    %1621 = vmatpush.msra.mxu0 0.0
    %1622 = vmatpush.msra.mxu0 0.0
    %1623 = vmatpush.msra.mxu0 0.0
    %1624 = vmatpush.msra.mxu0 0.0
    %1625 = vmatpush.msra.mxu0 0.0
    %1626 = vmatpush.msra.mxu0 0.0
    %1627 = vmatpush.msra.mxu0 %v1609
    %1628 = vmatpush.msra.mxu0 %v1608
    %1629 = vmatpush.msra.mxu0 %v1607
    %1630 = vmatpush.msra.mxu0 %v1606
    %1631 = vmatmul.f32.gmra.mxu0 %v293
    %v1632 = vpop.f32.mrf.mxu0
    %v1633 = vadd.f32 0.0, %v1632
    %1634 = vdwg.mxu0
    %v1635 = vadd.f32 %v1614, %v1633
    %s1636 = scalar_lea.vmem [#allocation4], 112
    %v1637 = vld [vmem:[%s1636 + $0x8] sm:$0xff]
    %1638 = vmatpush.msra.mxu0 0.0
    %1639 = vmatpush.msra.mxu0 0.0
    %1640 = vmatpush.msra.mxu0 0.0
    %1641 = vmatpush.msra.mxu0 0.0
    %1642 = vmatpush.msra.mxu0 0.0
    %1643 = vmatpush.msra.mxu0 0.0
    %1644 = vmatpush.msra.mxu0 0.0
    %1645 = vmatpush.msra.mxu0 0.0
    %1646 = vmatpush.msra.mxu0 0.0
    %1647 = vmatpush.msra.mxu0 0.0
    %1648 = vmatpush.msra.mxu0 0.0
    %1649 = vmatpush.msra.mxu0 0.0
    %1650 = vmatpush.msra.mxu0 %v1613
    %1651 = vmatpush.msra.mxu0 %v1612
    %1652 = vmatpush.msra.mxu0 %v1611
    %1653 = vmatpush.msra.mxu0 %v1610
    %1654 = vmatmul.f32.gmra.mxu0 %v293
    %v1655 = vpop.f32.mrf.mxu0
    %v1656 = vadd.f32 0.0, %v1655
    %1657 = vdwg.mxu0
    %v1658 = vadd.f32 %v1637, %v1656
    %v1659 = vxor.u32 %v1635, 2147483648
    %v1660 = vmul.f32 %v1659, 1.442695
    %v1661 = vpow.pop %v1660
    %v1662 = vadd.f32 %v1661, 1.0
    %v1663 = vrcp.pop %v1662
    %v1664 = vmul.f32 %v1662, %v1663
    %v1665 = vsub.f32 1.0, %v1664
    %v1666 = vmul.f32 %v1663, %v1665
    %v1667 = vadd.f32 %v1663, %v1666
    %vm1668 = vweird.f32 %v1662
    %vm1669 = vweird.f32 %v1663
    %vm1670 = vmor %vm1668, %vm1669
    %v1671 = vsel %vm1670, %v1663, %v1667
    %v1672 = vand.u32 2147483647, %v1662
    %vm1673 = vcmp.eq.f32.partialorder %v1672, 8.507059e+37
    %v1674 = vand.u32 %v1662, 2147483648
    %v1675 = vor.u32 1.1754944e-38, %v1674
    %v1676 = vsel %vm1673, %v1675, %v1671
    %v1677 = vmul.f32 1.0, %v1676
    %v1678 = vtanh.pop %v1635
    %v1679 = vmul.f32 %v1677, 0.0
    %1681 = vrot.lane.b32.xlu0 %v1678, 64
    %v1682 = vpop.permute.xlu0 %1681
    %v1684 = vmul.f32 %v1677, %v1682
    %1686 = vrot.lane.b32.xlu0 %v1684, 32
    %v1687 = vpop.permute.xlu0 %1686
    %v1689 = vadd.f32 %v1679, %v1687
    %v1690 = vtanh.pop %v1689
    %1692 = vrot.lane.b32.xlu0 %v1690, 64
    %v1693 = vpop.permute.xlu0 %1692
    %v1695 = vmul.f32 %v1677, %v1693
    %v1696 = vxor.u32 %v1658, 2147483648
    %v1697 = vmul.f32 %v1696, 1.442695
    %v1698 = vpow.pop %v1697
    %v1699 = vadd.f32 %v1698, 1.0
    %v1700 = vrcp.pop %v1699
    %v1701 = vmul.f32 %v1699, %v1700
    %v1702 = vsub.f32 1.0, %v1701
    %v1703 = vmul.f32 %v1700, %v1702
    %v1704 = vadd.f32 %v1700, %v1703
    %vm1705 = vweird.f32 %v1699
    %vm1706 = vweird.f32 %v1700
    %vm1707 = vmor %vm1705, %vm1706
    %v1708 = vsel %vm1707, %v1700, %v1704
    %v1709 = vand.u32 2147483647, %v1699
    %vm1710 = vcmp.eq.f32.partialorder %v1709, 8.507059e+37
    %v1711 = vand.u32 %v1699, 2147483648
    %v1712 = vor.u32 1.1754944e-38, %v1711
    %v1713 = vsel %vm1710, %v1712, %v1708
    %v1714 = vmul.f32 1.0, %v1713
    %v1715 = vtanh.pop %v1658
    %v1716 = vmul.f32 %v1714, 0.0
    %1718 = vrot.lane.b32.xlu0 %v1715, 64
    %v1719 = vpop.permute.xlu0 %1718
    %v1721 = vmul.f32 %v1714, %v1719
    %1723 = vrot.lane.b32.xlu0 %v1721, 32
    %v1724 = vpop.permute.xlu0 %1723
    %v1726 = vadd.f32 %v1716, %v1724
    %v1727 = vtanh.pop %v1726
    %1729 = vrot.lane.b32.xlu0 %v1727, 64
    %v1730 = vpop.permute.xlu0 %1729
    %v1732 = vmul.f32 %v1714, %v1730
    %v1733 = vsel %vm419, %v1695, 0.0
    %v1734 = vsel %vm419, %v1689, 0.0
    %v1735 = vsel %vm426, %v1732, 0.0
    %v1736 = vsel %vm426, %v1726, 0.0
    %s1737 = scalar_lea.vmem [#allocation4], 16
    %v1738 = vld [vmem:[%s1737] sm:$0xff]
    %1740 = vrot.lane.b32.xlu0 %v1733, 32
    %v1741 = vpop.permute.xlu0 %1740
    %v1742 = vsel %vm291, %v1741, 0
    %1744 = vmatpush.msra.mxu0 0.0
    %1745 = vmatpush.msra.mxu0 0.0
    %1746 = vmatpush.msra.mxu0 0.0
    %1747 = vmatpush.msra.mxu0 0.0
    %1748 = vmatpush.msra.mxu0 0.0
    %1749 = vmatpush.msra.mxu0 0.0
    %1750 = vmatpush.msra.mxu0 0.0
    %1751 = vmatpush.msra.mxu0 0.0
    %1752 = vmatpush.msra.mxu0 0.0
    %1753 = vmatpush.msra.mxu0 0.0
    %1754 = vmatpush.msra.mxu0 0.0
    %1755 = vmatpush.msra.mxu0 0.0
    %1756 = vmatpush.msra.mxu0 %v1609
    %1757 = vmatpush.msra.mxu0 %v1608
    %1758 = vmatpush.msra.mxu0 %v1607
    %1759 = vmatpush.msra.mxu0 %v1606
    %1760 = vmatmul.f32.gmra.mxu0 %v1742
    %v1761 = vpop.f32.mrf.mxu0
    %v1762 = vadd.f32 0.0, %v1761
    %1763 = vdwg.mxu0
    %v1764 = vadd.f32 %v1738, %v1762
    %s1765 = scalar_lea.vmem [#allocation4], 96
    %v1766 = vld [vmem:[%s1765 + $0x8] sm:$0xff]
    %1768 = vrot.lane.b32.xlu0 %v1735, 32
    %v1769 = vpop.permute.xlu0 %1768
    %v1770 = vsel %vm291, %v1769, 0
    %1772 = vmatpush.msra.mxu0 0.0
    %1773 = vmatpush.msra.mxu0 0.0
    %1774 = vmatpush.msra.mxu0 0.0
    %1775 = vmatpush.msra.mxu0 0.0
    %1776 = vmatpush.msra.mxu0 0.0
    %1777 = vmatpush.msra.mxu0 0.0
    %1778 = vmatpush.msra.mxu0 0.0
    %1779 = vmatpush.msra.mxu0 0.0
    %1780 = vmatpush.msra.mxu0 0.0
    %1781 = vmatpush.msra.mxu0 0.0
    %1782 = vmatpush.msra.mxu0 0.0
    %1783 = vmatpush.msra.mxu0 0.0
    %1784 = vmatpush.msra.mxu0 %v1613
    %1785 = vmatpush.msra.mxu0 %v1612
    %1786 = vmatpush.msra.mxu0 %v1611
    %1787 = vmatpush.msra.mxu0 %v1610
    %1788 = vmatmul.f32.gmra.mxu0 %v1770
    %v1789 = vpop.f32.mrf.mxu0
    %v1790 = vadd.f32 0.0, %v1789
    %1791 = vdwg.mxu0
    %v1792 = vadd.f32 %v1766, %v1790
    %v1793 = vxor.u32 %v1764, 2147483648
    %v1794 = vmul.f32 %v1793, 1.442695
    %v1795 = vpow.pop %v1794
    %v1796 = vadd.f32 %v1795, 1.0
    %v1797 = vrcp.pop %v1796
    %v1798 = vmul.f32 %v1796, %v1797
    %v1799 = vsub.f32 1.0, %v1798
    %v1800 = vmul.f32 %v1797, %v1799
    %v1801 = vadd.f32 %v1797, %v1800
    %vm1802 = vweird.f32 %v1796
    %vm1803 = vweird.f32 %v1797
    %vm1804 = vmor %vm1802, %vm1803
    %v1805 = vsel %vm1804, %v1797, %v1801
    %v1806 = vand.u32 2147483647, %v1796
    %vm1807 = vcmp.eq.f32.partialorder %v1806, 8.507059e+37
    %v1808 = vand.u32 %v1796, 2147483648
    %v1809 = vor.u32 1.1754944e-38, %v1808
    %v1810 = vsel %vm1807, %v1809, %v1805
    %v1811 = vmul.f32 1.0, %v1810
    %v1812 = vtanh.pop %v1764
    %v1813 = vmul.f32 %v1811, %v1734
    %1815 = vrot.lane.b32.xlu0 %v1812, 64
    %v1816 = vpop.permute.xlu0 %1815
    %v1818 = vmul.f32 %v1811, %v1816
    %1820 = vrot.lane.b32.xlu0 %v1818, 32
    %v1821 = vpop.permute.xlu0 %1820
    %v1823 = vadd.f32 %v1813, %v1821
    %v1824 = vtanh.pop %v1823
    %1826 = vrot.lane.b32.xlu0 %v1824, 64
    %v1827 = vpop.permute.xlu0 %1826
    %v1829 = vmul.f32 %v1811, %v1827
    %v1830 = vxor.u32 %v1792, 2147483648
    %v1831 = vmul.f32 %v1830, 1.442695
    %v1832 = vpow.pop %v1831
    %v1833 = vadd.f32 %v1832, 1.0
    %v1834 = vrcp.pop %v1833
    %v1835 = vmul.f32 %v1833, %v1834
    %v1836 = vsub.f32 1.0, %v1835
    %v1837 = vmul.f32 %v1834, %v1836
    %v1838 = vadd.f32 %v1834, %v1837
    %vm1839 = vweird.f32 %v1833
    %vm1840 = vweird.f32 %v1834
    %vm1841 = vmor %vm1839, %vm1840
    %v1842 = vsel %vm1841, %v1834, %v1838
    %v1843 = vand.u32 2147483647, %v1833
    %vm1844 = vcmp.eq.f32.partialorder %v1843, 8.507059e+37
    %v1845 = vand.u32 %v1833, 2147483648
    %v1846 = vor.u32 1.1754944e-38, %v1845
    %v1847 = vsel %vm1844, %v1846, %v1842
    %v1848 = vmul.f32 1.0, %v1847
    %v1849 = vtanh.pop %v1792
    %v1850 = vmul.f32 %v1848, %v1736
    %1852 = vrot.lane.b32.xlu0 %v1849, 64
    %v1853 = vpop.permute.xlu0 %1852
    %v1855 = vmul.f32 %v1848, %v1853
    %1857 = vrot.lane.b32.xlu0 %v1855, 32
    %v1858 = vpop.permute.xlu0 %1857
    %v1860 = vadd.f32 %v1850, %v1858
    %v1861 = vtanh.pop %v1860
    %1863 = vrot.lane.b32.xlu0 %v1861, 64
    %v1864 = vpop.permute.xlu0 %1863
    %v1866 = vmul.f32 %v1848, %v1864
    %v1867 = vsel %vm573, %v1829, %v1733
    %v1868 = vsel %vm573, %v1823, %v1734
    %v1869 = vsel %vm580, %v1866, %v1735
    %v1870 = vsel %vm580, %v1860, %v1736
    %s1871 = scalar_lea.vmem [#allocation4], 32
    %v1872 = vld [vmem:[%s1871] sm:$0xff]
    %1874 = vrot.lane.b32.xlu0 %v1867, 32
    %v1875 = vpop.permute.xlu0 %1874
    %v1876 = vsel %vm291, %v1875, 0
    %1878 = vmatpush.msra.mxu0 0.0
    %1879 = vmatpush.msra.mxu0 0.0
    %1880 = vmatpush.msra.mxu0 0.0
    %1881 = vmatpush.msra.mxu0 0.0
    %1882 = vmatpush.msra.mxu0 0.0
    %1883 = vmatpush.msra.mxu0 0.0
    %1884 = vmatpush.msra.mxu0 0.0
    %1885 = vmatpush.msra.mxu0 0.0
    %1886 = vmatpush.msra.mxu0 0.0
    %1887 = vmatpush.msra.mxu0 0.0
    %1888 = vmatpush.msra.mxu0 0.0
    %1889 = vmatpush.msra.mxu0 0.0
    %1890 = vmatpush.msra.mxu0 %v1609
    %1891 = vmatpush.msra.mxu0 %v1608
    %1892 = vmatpush.msra.mxu0 %v1607
    %1893 = vmatpush.msra.mxu0 %v1606
    %1894 = vmatmul.f32.gmra.mxu0 %v1876
    %v1895 = vpop.f32.mrf.mxu0
    %v1896 = vadd.f32 0.0, %v1895
    %1897 = vdwg.mxu0
    %v1898 = vadd.f32 %v1872, %v1896
    %s1899 = scalar_lea.vmem [#allocation4], 80
    %v1900 = vld [vmem:[%s1899 + $0x8] sm:$0xff]
    %1902 = vrot.lane.b32.xlu0 %v1869, 32
    %v1903 = vpop.permute.xlu0 %1902
    %v1904 = vsel %vm291, %v1903, 0
    %1906 = vmatpush.msra.mxu0 0.0
    %1907 = vmatpush.msra.mxu0 0.0
    %1908 = vmatpush.msra.mxu0 0.0
    %1909 = vmatpush.msra.mxu0 0.0
    %1910 = vmatpush.msra.mxu0 0.0
    %1911 = vmatpush.msra.mxu0 0.0
    %1912 = vmatpush.msra.mxu0 0.0
    %1913 = vmatpush.msra.mxu0 0.0
    %1914 = vmatpush.msra.mxu0 0.0
    %1915 = vmatpush.msra.mxu0 0.0
    %1916 = vmatpush.msra.mxu0 0.0
    %1917 = vmatpush.msra.mxu0 0.0
    %1918 = vmatpush.msra.mxu0 %v1613
    %1919 = vmatpush.msra.mxu0 %v1612
    %1920 = vmatpush.msra.mxu0 %v1611
    %1921 = vmatpush.msra.mxu0 %v1610
    %1922 = vmatmul.f32.gmra.mxu0 %v1904
    %v1923 = vpop.f32.mrf.mxu0
    %v1924 = vadd.f32 0.0, %v1923
    %1925 = vdwg.mxu0
    %v1926 = vadd.f32 %v1900, %v1924
    %v1927 = vxor.u32 %v1898, 2147483648
    %v1928 = vmul.f32 %v1927, 1.442695
    %v1929 = vpow.pop %v1928
    %v1930 = vadd.f32 %v1929, 1.0
    %v1931 = vrcp.pop %v1930
    %v1932 = vmul.f32 %v1930, %v1931
    %v1933 = vsub.f32 1.0, %v1932
    %v1934 = vmul.f32 %v1931, %v1933
    %v1935 = vadd.f32 %v1931, %v1934
    %vm1936 = vweird.f32 %v1930
    %vm1937 = vweird.f32 %v1931
    %vm1938 = vmor %vm1936, %vm1937
    %v1939 = vsel %vm1938, %v1931, %v1935
    %v1940 = vand.u32 2147483647, %v1930
    %vm1941 = vcmp.eq.f32.partialorder %v1940, 8.507059e+37
    %v1942 = vand.u32 %v1930, 2147483648
    %v1943 = vor.u32 1.1754944e-38, %v1942
    %v1944 = vsel %vm1941, %v1943, %v1939
    %v1945 = vmul.f32 1.0, %v1944
    %v1946 = vtanh.pop %v1898
    %v1947 = vmul.f32 %v1945, %v1868
    %1949 = vrot.lane.b32.xlu0 %v1946, 64
    %v1950 = vpop.permute.xlu0 %1949
    %v1952 = vmul.f32 %v1945, %v1950
    %1954 = vrot.lane.b32.xlu0 %v1952, 32
    %v1955 = vpop.permute.xlu0 %1954
    %v1957 = vadd.f32 %v1947, %v1955
    %v1958 = vtanh.pop %v1957
    %1960 = vrot.lane.b32.xlu0 %v1958, 64
    %v1961 = vpop.permute.xlu0 %1960
    %v1963 = vmul.f32 %v1945, %v1961
    %v1964 = vxor.u32 %v1926, 2147483648
    %v1965 = vmul.f32 %v1964, 1.442695
    %v1966 = vpow.pop %v1965
    %v1967 = vadd.f32 %v1966, 1.0
    %v1968 = vrcp.pop %v1967
    %v1969 = vmul.f32 %v1967, %v1968
    %v1970 = vsub.f32 1.0, %v1969
    %v1971 = vmul.f32 %v1968, %v1970
    %v1972 = vadd.f32 %v1968, %v1971
    %vm1973 = vweird.f32 %v1967
    %vm1974 = vweird.f32 %v1968
    %vm1975 = vmor %vm1973, %vm1974
    %v1976 = vsel %vm1975, %v1968, %v1972
    %v1977 = vand.u32 2147483647, %v1967
    %vm1978 = vcmp.eq.f32.partialorder %v1977, 8.507059e+37
    %v1979 = vand.u32 %v1967, 2147483648
    %v1980 = vor.u32 1.1754944e-38, %v1979
    %v1981 = vsel %vm1978, %v1980, %v1976
    %v1982 = vmul.f32 1.0, %v1981
    %v1983 = vtanh.pop %v1926
    %v1984 = vmul.f32 %v1982, %v1870
    %1986 = vrot.lane.b32.xlu0 %v1983, 64
    %v1987 = vpop.permute.xlu0 %1986
    %v1989 = vmul.f32 %v1982, %v1987
    %1991 = vrot.lane.b32.xlu0 %v1989, 32
    %v1992 = vpop.permute.xlu0 %1991
    %v1994 = vadd.f32 %v1984, %v1992
    %v1995 = vtanh.pop %v1994
    %1997 = vrot.lane.b32.xlu0 %v1995, 64
    %v1998 = vpop.permute.xlu0 %1997
    %v2000 = vmul.f32 %v1982, %v1998
    %v2001 = vsel %vm727, %v1963, %v1867
    %v2002 = vsel %vm727, %v1957, %v1868
    %v2003 = vsel %vm734, %v2000, %v1869
    %v2004 = vsel %vm734, %v1994, %v1870
    %s2005 = scalar_lea.vmem [#allocation4], 48
    %v2006 = vld [vmem:[%s2005] sm:$0xff]
    %2008 = vrot.lane.b32.xlu0 %v2001, 32
    %v2009 = vpop.permute.xlu0 %2008
    %v2010 = vsel %vm291, %v2009, 0
    %2012 = vmatpush.msra.mxu0 0.0
    %2013 = vmatpush.msra.mxu0 0.0
    %2014 = vmatpush.msra.mxu0 0.0
    %2015 = vmatpush.msra.mxu0 0.0
    %2016 = vmatpush.msra.mxu0 0.0
    %2017 = vmatpush.msra.mxu0 0.0
    %2018 = vmatpush.msra.mxu0 0.0
    %2019 = vmatpush.msra.mxu0 0.0
    %2020 = vmatpush.msra.mxu0 0.0
    %2021 = vmatpush.msra.mxu0 0.0
    %2022 = vmatpush.msra.mxu0 0.0
    %2023 = vmatpush.msra.mxu0 0.0
    %2024 = vmatpush.msra.mxu0 %v1609
    %2025 = vmatpush.msra.mxu0 %v1608
    %2026 = vmatpush.msra.mxu0 %v1607
    %2027 = vmatpush.msra.mxu0 %v1606
    %2028 = vmatmul.f32.gmra.mxu0 %v2010
    %v2029 = vpop.f32.mrf.mxu0
    %v2030 = vadd.f32 0.0, %v2029
    %2031 = vdwg.mxu0
    %v2032 = vadd.f32 %v2006, %v2030
    %s2033 = scalar_lea.vmem [#allocation4], 64
    %v2034 = vld [vmem:[%s2033 + $0x8] sm:$0xff]
    %2036 = vrot.lane.b32.xlu0 %v2003, 32
    %v2037 = vpop.permute.xlu0 %2036
    %v2038 = vsel %vm291, %v2037, 0
    %2040 = vmatpush.msra.mxu0 0.0
    %2041 = vmatpush.msra.mxu0 0.0
    %2042 = vmatpush.msra.mxu0 0.0
    %2043 = vmatpush.msra.mxu0 0.0
    %2044 = vmatpush.msra.mxu0 0.0
    %2045 = vmatpush.msra.mxu0 0.0
    %2046 = vmatpush.msra.mxu0 0.0
    %2047 = vmatpush.msra.mxu0 0.0
    %2048 = vmatpush.msra.mxu0 0.0
    %2049 = vmatpush.msra.mxu0 0.0
    %2050 = vmatpush.msra.mxu0 0.0
    %2051 = vmatpush.msra.mxu0 0.0
    %2052 = vmatpush.msra.mxu0 %v1613
    %2053 = vmatpush.msra.mxu0 %v1612
    %2054 = vmatpush.msra.mxu0 %v1611
    %2055 = vmatpush.msra.mxu0 %v1610
    %2056 = vmatmul.f32.gmra.mxu0 %v2038
    %v2057 = vpop.f32.mrf.mxu0
    %v2058 = vadd.f32 0.0, %v2057
    %2059 = vdwg.mxu0
    %v2060 = vadd.f32 %v2034, %v2058
    %v2061 = vxor.u32 %v2032, 2147483648
    %v2062 = vmul.f32 %v2061, 1.442695
    %v2063 = vpow.pop %v2062
    %v2064 = vadd.f32 %v2063, 1.0
    %v2065 = vrcp.pop %v2064
    %v2066 = vmul.f32 %v2064, %v2065
    %v2067 = vsub.f32 1.0, %v2066
    %v2068 = vmul.f32 %v2065, %v2067
    %v2069 = vadd.f32 %v2065, %v2068
    %vm2070 = vweird.f32 %v2064
    %vm2071 = vweird.f32 %v2065
    %vm2072 = vmor %vm2070, %vm2071
    %v2073 = vsel %vm2072, %v2065, %v2069
    %v2074 = vand.u32 2147483647, %v2064
    %vm2075 = vcmp.eq.f32.partialorder %v2074, 8.507059e+37
    %v2076 = vand.u32 %v2064, 2147483648
    %v2077 = vor.u32 1.1754944e-38, %v2076
    %v2078 = vsel %vm2075, %v2077, %v2073
    %v2079 = vmul.f32 1.0, %v2078
    %v2080 = vtanh.pop %v2032
    %v2081 = vmul.f32 %v2079, %v2002
    %2083 = vrot.lane.b32.xlu0 %v2080, 64
    %v2084 = vpop.permute.xlu0 %2083
    %v2086 = vmul.f32 %v2079, %v2084
    %2088 = vrot.lane.b32.xlu0 %v2086, 32
    %v2089 = vpop.permute.xlu0 %2088
    %v2091 = vadd.f32 %v2081, %v2089
    %v2092 = vtanh.pop %v2091
    %2094 = vrot.lane.b32.xlu0 %v2092, 64
    %v2095 = vpop.permute.xlu0 %2094
    %v2097 = vmul.f32 %v2079, %v2095
    %v2098 = vxor.u32 %v2060, 2147483648
    %v2099 = vmul.f32 %v2098, 1.442695
    %v2100 = vpow.pop %v2099
    %v2101 = vadd.f32 %v2100, 1.0
    %v2102 = vrcp.pop %v2101
    %v2103 = vmul.f32 %v2101, %v2102
    %v2104 = vsub.f32 1.0, %v2103
    %v2105 = vmul.f32 %v2102, %v2104
    %v2106 = vadd.f32 %v2102, %v2105
    %vm2107 = vweird.f32 %v2101
    %vm2108 = vweird.f32 %v2102
    %vm2109 = vmor %vm2107, %vm2108
    %v2110 = vsel %vm2109, %v2102, %v2106
    %v2111 = vand.u32 2147483647, %v2101
    %vm2112 = vcmp.eq.f32.partialorder %v2111, 8.507059e+37
    %v2113 = vand.u32 %v2101, 2147483648
    %v2114 = vor.u32 1.1754944e-38, %v2113
    %v2115 = vsel %vm2112, %v2114, %v2110
    %v2116 = vmul.f32 1.0, %v2115
    %v2117 = vtanh.pop %v2060
    %v2118 = vmul.f32 %v2116, %v2004
    %2120 = vrot.lane.b32.xlu0 %v2117, 64
    %v2121 = vpop.permute.xlu0 %2120
    %v2123 = vmul.f32 %v2116, %v2121
    %2125 = vrot.lane.b32.xlu0 %v2123, 32
    %v2126 = vpop.permute.xlu0 %2125
    %v2128 = vadd.f32 %v2118, %v2126
    %v2129 = vtanh.pop %v2128
    %2131 = vrot.lane.b32.xlu0 %v2129, 64
    %v2132 = vpop.permute.xlu0 %2131
    %v2134 = vmul.f32 %v2116, %v2132
    %v2135 = vsel %vm881, %v2097, %v2001
    %v2136 = vsel %vm881, %v2091, %v2002
    %v2137 = vsel %vm888, %v2134, %v2003
    %v2138 = vsel %vm888, %v2128, %v2004
    %v2139 = vld [vmem:[%s2033] sm:$0xff]
    %2141 = vrot.lane.b32.xlu0 %v2135, 32
    %v2142 = vpop.permute.xlu0 %2141
    %v2143 = vsel %vm291, %v2142, 0
    %2145 = vmatpush.msra.mxu0 0.0
    %2146 = vmatpush.msra.mxu0 0.0
    %2147 = vmatpush.msra.mxu0 0.0
    %2148 = vmatpush.msra.mxu0 0.0
    %2149 = vmatpush.msra.mxu0 0.0
    %2150 = vmatpush.msra.mxu0 0.0
    %2151 = vmatpush.msra.mxu0 0.0
    %2152 = vmatpush.msra.mxu0 0.0
    %2153 = vmatpush.msra.mxu0 0.0
    %2154 = vmatpush.msra.mxu0 0.0
    %2155 = vmatpush.msra.mxu0 0.0
    %2156 = vmatpush.msra.mxu0 0.0
    %2157 = vmatpush.msra.mxu0 %v1609
    %2158 = vmatpush.msra.mxu0 %v1608
    %2159 = vmatpush.msra.mxu0 %v1607
    %2160 = vmatpush.msra.mxu0 %v1606
    %2161 = vmatmul.f32.gmra.mxu0 %v2143
    %v2162 = vpop.f32.mrf.mxu0
    %v2163 = vadd.f32 0.0, %v2162
    %2164 = vdwg.mxu0
    %v2165 = vadd.f32 %v2139, %v2163
    %v2166 = vld [vmem:[%s2005 + $0x8] sm:$0xff]
    %2168 = vrot.lane.b32.xlu0 %v2137, 32
    %v2169 = vpop.permute.xlu0 %2168
    %v2170 = vsel %vm291, %v2169, 0
    %2172 = vmatpush.msra.mxu0 0.0
    %2173 = vmatpush.msra.mxu0 0.0
    %2174 = vmatpush.msra.mxu0 0.0
    %2175 = vmatpush.msra.mxu0 0.0
    %2176 = vmatpush.msra.mxu0 0.0
    %2177 = vmatpush.msra.mxu0 0.0
    %2178 = vmatpush.msra.mxu0 0.0
    %2179 = vmatpush.msra.mxu0 0.0
    %2180 = vmatpush.msra.mxu0 0.0
    %2181 = vmatpush.msra.mxu0 0.0
    %2182 = vmatpush.msra.mxu0 0.0
    %2183 = vmatpush.msra.mxu0 0.0
    %2184 = vmatpush.msra.mxu0 %v1613
    %2185 = vmatpush.msra.mxu0 %v1612
    %2186 = vmatpush.msra.mxu0 %v1611
    %2187 = vmatpush.msra.mxu0 %v1610
    %2188 = vmatmul.f32.gmra.mxu0 %v2170
    %v2189 = vpop.f32.mrf.mxu0
    %v2190 = vadd.f32 0.0, %v2189
    %2191 = vdwg.mxu0
    %v2192 = vadd.f32 %v2166, %v2190
    %v2193 = vxor.u32 %v2165, 2147483648
    %v2194 = vmul.f32 %v2193, 1.442695
    %v2195 = vpow.pop %v2194
    %v2196 = vadd.f32 %v2195, 1.0
    %v2197 = vrcp.pop %v2196
    %v2198 = vmul.f32 %v2196, %v2197
    %v2199 = vsub.f32 1.0, %v2198
    %v2200 = vmul.f32 %v2197, %v2199
    %v2201 = vadd.f32 %v2197, %v2200
    %vm2202 = vweird.f32 %v2196
    %vm2203 = vweird.f32 %v2197
    %vm2204 = vmor %vm2202, %vm2203
    %v2205 = vsel %vm2204, %v2197, %v2201
    %v2206 = vand.u32 2147483647, %v2196
    %vm2207 = vcmp.eq.f32.partialorder %v2206, 8.507059e+37
    %v2208 = vand.u32 %v2196, 2147483648
    %v2209 = vor.u32 1.1754944e-38, %v2208
    %v2210 = vsel %vm2207, %v2209, %v2205
    %v2211 = vmul.f32 1.0, %v2210
    %v2212 = vtanh.pop %v2165
    %v2213 = vmul.f32 %v2211, %v2136
    %2215 = vrot.lane.b32.xlu0 %v2212, 64
    %v2216 = vpop.permute.xlu0 %2215
    %v2218 = vmul.f32 %v2211, %v2216
    %2220 = vrot.lane.b32.xlu0 %v2218, 32
    %v2221 = vpop.permute.xlu0 %2220
    %v2223 = vadd.f32 %v2213, %v2221
    %v2224 = vtanh.pop %v2223
    %2226 = vrot.lane.b32.xlu0 %v2224, 64
    %v2227 = vpop.permute.xlu0 %2226
    %v2229 = vmul.f32 %v2211, %v2227
    %v2230 = vxor.u32 %v2192, 2147483648
    %v2231 = vmul.f32 %v2230, 1.442695
    %v2232 = vpow.pop %v2231
    %v2233 = vadd.f32 %v2232, 1.0
    %v2234 = vrcp.pop %v2233
    %v2235 = vmul.f32 %v2233, %v2234
    %v2236 = vsub.f32 1.0, %v2235
    %v2237 = vmul.f32 %v2234, %v2236
    %v2238 = vadd.f32 %v2234, %v2237
    %vm2239 = vweird.f32 %v2233
    %vm2240 = vweird.f32 %v2234
    %vm2241 = vmor %vm2239, %vm2240
    %v2242 = vsel %vm2241, %v2234, %v2238
    %v2243 = vand.u32 2147483647, %v2233
    %vm2244 = vcmp.eq.f32.partialorder %v2243, 8.507059e+37
    %v2245 = vand.u32 %v2233, 2147483648
    %v2246 = vor.u32 1.1754944e-38, %v2245
    %v2247 = vsel %vm2244, %v2246, %v2242
    %v2248 = vmul.f32 1.0, %v2247
    %v2249 = vtanh.pop %v2192
    %v2250 = vmul.f32 %v2248, %v2138
    %2252 = vrot.lane.b32.xlu0 %v2249, 64
    %v2253 = vpop.permute.xlu0 %2252
    %v2255 = vmul.f32 %v2248, %v2253
    %2257 = vrot.lane.b32.xlu0 %v2255, 32
    %v2258 = vpop.permute.xlu0 %2257
    %v2260 = vadd.f32 %v2250, %v2258
    %v2261 = vtanh.pop %v2260
    %2263 = vrot.lane.b32.xlu0 %v2261, 64
    %v2264 = vpop.permute.xlu0 %2263
    %v2266 = vmul.f32 %v2248, %v2264
    %v2267 = vsel %vm888, %v2229, %v2135
    %v2268 = vsel %vm888, %v2223, %v2136
    %v2269 = vsel %vm881, %v2266, %v2137
    %v2270 = vsel %vm881, %v2260, %v2138
    %v2271 = vld [vmem:[%s1899] sm:$0xff]
    %2273 = vrot.lane.b32.xlu0 %v2267, 32
    %v2274 = vpop.permute.xlu0 %2273
    %v2275 = vsel %vm291, %v2274, 0
    %2277 = vmatpush.msra.mxu0 0.0
    %2278 = vmatpush.msra.mxu0 0.0
    %2279 = vmatpush.msra.mxu0 0.0
    %2280 = vmatpush.msra.mxu0 0.0
    %2281 = vmatpush.msra.mxu0 0.0
    %2282 = vmatpush.msra.mxu0 0.0
    %2283 = vmatpush.msra.mxu0 0.0
    %2284 = vmatpush.msra.mxu0 0.0
    %2285 = vmatpush.msra.mxu0 0.0
    %2286 = vmatpush.msra.mxu0 0.0
    %2287 = vmatpush.msra.mxu0 0.0
    %2288 = vmatpush.msra.mxu0 0.0
    %2289 = vmatpush.msra.mxu0 %v1609
    %2290 = vmatpush.msra.mxu0 %v1608
    %2291 = vmatpush.msra.mxu0 %v1607
    %2292 = vmatpush.msra.mxu0 %v1606
    %2293 = vmatmul.f32.gmra.mxu0 %v2275
    %v2294 = vpop.f32.mrf.mxu0
    %v2295 = vadd.f32 0.0, %v2294
    %2296 = vdwg.mxu0
    %v2297 = vadd.f32 %v2271, %v2295
    %v2298 = vld [vmem:[%s1871 + $0x8] sm:$0xff]
    %2300 = vrot.lane.b32.xlu0 %v2269, 32
    %v2301 = vpop.permute.xlu0 %2300
    %v2302 = vsel %vm291, %v2301, 0
    %2304 = vmatpush.msra.mxu0 0.0
    %2305 = vmatpush.msra.mxu0 0.0
    %2306 = vmatpush.msra.mxu0 0.0
    %2307 = vmatpush.msra.mxu0 0.0
    %2308 = vmatpush.msra.mxu0 0.0
    %2309 = vmatpush.msra.mxu0 0.0
    %2310 = vmatpush.msra.mxu0 0.0
    %2311 = vmatpush.msra.mxu0 0.0
    %2312 = vmatpush.msra.mxu0 0.0
    %2313 = vmatpush.msra.mxu0 0.0
    %2314 = vmatpush.msra.mxu0 0.0
    %2315 = vmatpush.msra.mxu0 0.0
    %2316 = vmatpush.msra.mxu0 %v1613
    %2317 = vmatpush.msra.mxu0 %v1612
    %2318 = vmatpush.msra.mxu0 %v1611
    %2319 = vmatpush.msra.mxu0 %v1610
    %2320 = vmatmul.f32.gmra.mxu0 %v2302
    %v2321 = vpop.f32.mrf.mxu0
    %v2322 = vadd.f32 0.0, %v2321
    %2323 = vdwg.mxu0
    %v2324 = vadd.f32 %v2298, %v2322
    %v2325 = vxor.u32 %v2297, 2147483648
    %v2326 = vmul.f32 %v2325, 1.442695
    %v2327 = vpow.pop %v2326
    %v2328 = vadd.f32 %v2327, 1.0
    %v2329 = vrcp.pop %v2328
    %v2330 = vmul.f32 %v2328, %v2329
    %v2331 = vsub.f32 1.0, %v2330
    %v2332 = vmul.f32 %v2329, %v2331
    %v2333 = vadd.f32 %v2329, %v2332
    %vm2334 = vweird.f32 %v2328
    %vm2335 = vweird.f32 %v2329
    %vm2336 = vmor %vm2334, %vm2335
    %v2337 = vsel %vm2336, %v2329, %v2333
    %v2338 = vand.u32 2147483647, %v2328
    %vm2339 = vcmp.eq.f32.partialorder %v2338, 8.507059e+37
    %v2340 = vand.u32 %v2328, 2147483648
    %v2341 = vor.u32 1.1754944e-38, %v2340
    %v2342 = vsel %vm2339, %v2341, %v2337
    %v2343 = vmul.f32 1.0, %v2342
    %v2344 = vtanh.pop %v2297
    %v2345 = vmul.f32 %v2343, %v2268
    %2347 = vrot.lane.b32.xlu0 %v2344, 64
    %v2348 = vpop.permute.xlu0 %2347
    %v2350 = vmul.f32 %v2343, %v2348
    %2352 = vrot.lane.b32.xlu0 %v2350, 32
    %v2353 = vpop.permute.xlu0 %2352
    %v2355 = vadd.f32 %v2345, %v2353
    %v2356 = vtanh.pop %v2355
    %2358 = vrot.lane.b32.xlu0 %v2356, 64
    %v2359 = vpop.permute.xlu0 %2358
    %v2361 = vmul.f32 %v2343, %v2359
    %v2362 = vxor.u32 %v2324, 2147483648
    %v2363 = vmul.f32 %v2362, 1.442695
    %v2364 = vpow.pop %v2363
    %v2365 = vadd.f32 %v2364, 1.0
    %v2366 = vrcp.pop %v2365
    %v2367 = vmul.f32 %v2365, %v2366
    %v2368 = vsub.f32 1.0, %v2367
    %v2369 = vmul.f32 %v2366, %v2368
    %v2370 = vadd.f32 %v2366, %v2369
    %vm2371 = vweird.f32 %v2365
    %vm2372 = vweird.f32 %v2366
    %vm2373 = vmor %vm2371, %vm2372
    %v2374 = vsel %vm2373, %v2366, %v2370
    %v2375 = vand.u32 2147483647, %v2365
    %vm2376 = vcmp.eq.f32.partialorder %v2375, 8.507059e+37
    %v2377 = vand.u32 %v2365, 2147483648
    %v2378 = vor.u32 1.1754944e-38, %v2377
    %v2379 = vsel %vm2376, %v2378, %v2374
    %v2380 = vmul.f32 1.0, %v2379
    %v2381 = vtanh.pop %v2324
    %v2382 = vmul.f32 %v2380, %v2270
    %2384 = vrot.lane.b32.xlu0 %v2381, 64
    %v2385 = vpop.permute.xlu0 %2384
    %v2387 = vmul.f32 %v2380, %v2385
    %2389 = vrot.lane.b32.xlu0 %v2387, 32
    %v2390 = vpop.permute.xlu0 %2389
    %v2392 = vadd.f32 %v2382, %v2390
    %v2393 = vtanh.pop %v2392
    %2395 = vrot.lane.b32.xlu0 %v2393, 64
    %v2396 = vpop.permute.xlu0 %2395
    %v2398 = vmul.f32 %v2380, %v2396
    %v2399 = vsel %vm734, %v2361, %v2267
    %v2400 = vsel %vm734, %v2355, %v2268
    %v2401 = vsel %vm727, %v2398, %v2269
    %v2402 = vsel %vm727, %v2392, %v2270
    %v2403 = vld [vmem:[%s1765] sm:$0xff]
    %2405 = vrot.lane.b32.xlu0 %v2399, 32
    %v2406 = vpop.permute.xlu0 %2405
    %v2407 = vsel %vm291, %v2406, 0
    %2409 = vmatpush.msra.mxu0 0.0
    %2410 = vmatpush.msra.mxu0 0.0
    %2411 = vmatpush.msra.mxu0 0.0
    %2412 = vmatpush.msra.mxu0 0.0
    %2413 = vmatpush.msra.mxu0 0.0
    %2414 = vmatpush.msra.mxu0 0.0
    %2415 = vmatpush.msra.mxu0 0.0
    %2416 = vmatpush.msra.mxu0 0.0
    %2417 = vmatpush.msra.mxu0 0.0
    %2418 = vmatpush.msra.mxu0 0.0
    %2419 = vmatpush.msra.mxu0 0.0
    %2420 = vmatpush.msra.mxu0 0.0
    %2421 = vmatpush.msra.mxu0 %v1609
    %2422 = vmatpush.msra.mxu0 %v1608
    %2423 = vmatpush.msra.mxu0 %v1607
    %2424 = vmatpush.msra.mxu0 %v1606
    %2425 = vmatmul.f32.gmra.mxu0 %v2407
    %v2426 = vpop.f32.mrf.mxu0
    %v2427 = vadd.f32 0.0, %v2426
    %2428 = vdwg.mxu0
    %v2429 = vadd.f32 %v2403, %v2427
    %v2430 = vld [vmem:[%s1737 + $0x8] sm:$0xff]
    %2432 = vrot.lane.b32.xlu0 %v2401, 32
    %v2433 = vpop.permute.xlu0 %2432
    %v2434 = vsel %vm291, %v2433, 0
    %2436 = vmatpush.msra.mxu0 0.0
    %2437 = vmatpush.msra.mxu0 0.0
    %2438 = vmatpush.msra.mxu0 0.0
    %2439 = vmatpush.msra.mxu0 0.0
    %2440 = vmatpush.msra.mxu0 0.0
    %2441 = vmatpush.msra.mxu0 0.0
    %2442 = vmatpush.msra.mxu0 0.0
    %2443 = vmatpush.msra.mxu0 0.0
    %2444 = vmatpush.msra.mxu0 0.0
    %2445 = vmatpush.msra.mxu0 0.0
    %2446 = vmatpush.msra.mxu0 0.0
    %2447 = vmatpush.msra.mxu0 0.0
    %2448 = vmatpush.msra.mxu0 %v1613
    %2449 = vmatpush.msra.mxu0 %v1612
    %2450 = vmatpush.msra.mxu0 %v1611
    %2451 = vmatpush.msra.mxu0 %v1610
    %2452 = vmatmul.f32.gmra.mxu0 %v2434
    %v2453 = vpop.f32.mrf.mxu0
    %v2454 = vadd.f32 0.0, %v2453
    %2455 = vdwg.mxu0
    %v2456 = vadd.f32 %v2430, %v2454
    %v2457 = vxor.u32 %v2429, 2147483648
    %v2458 = vmul.f32 %v2457, 1.442695
    %v2459 = vpow.pop %v2458
    %v2460 = vadd.f32 %v2459, 1.0
    %v2461 = vrcp.pop %v2460
    %v2462 = vmul.f32 %v2460, %v2461
    %v2463 = vsub.f32 1.0, %v2462
    %v2464 = vmul.f32 %v2461, %v2463
    %v2465 = vadd.f32 %v2461, %v2464
    %vm2466 = vweird.f32 %v2460
    %vm2467 = vweird.f32 %v2461
    %vm2468 = vmor %vm2466, %vm2467
    %v2469 = vsel %vm2468, %v2461, %v2465
    %v2470 = vand.u32 2147483647, %v2460
    %vm2471 = vcmp.eq.f32.partialorder %v2470, 8.507059e+37
    %v2472 = vand.u32 %v2460, 2147483648
    %v2473 = vor.u32 1.1754944e-38, %v2472
    %v2474 = vsel %vm2471, %v2473, %v2469
    %v2475 = vmul.f32 1.0, %v2474
    %v2476 = vtanh.pop %v2429
    %v2477 = vmul.f32 %v2475, %v2400
    %2479 = vrot.lane.b32.xlu0 %v2476, 64
    %v2480 = vpop.permute.xlu0 %2479
    %v2482 = vmul.f32 %v2475, %v2480
    %2484 = vrot.lane.b32.xlu0 %v2482, 32
    %v2485 = vpop.permute.xlu0 %2484
    %v2487 = vadd.f32 %v2477, %v2485
    %v2488 = vtanh.pop %v2487
    %2490 = vrot.lane.b32.xlu0 %v2488, 64
    %v2491 = vpop.permute.xlu0 %2490
    %v2493 = vmul.f32 %v2475, %v2491
    %v2494 = vxor.u32 %v2456, 2147483648
    %v2495 = vmul.f32 %v2494, 1.442695
    %v2496 = vpow.pop %v2495
    %v2497 = vadd.f32 %v2496, 1.0
    %v2498 = vrcp.pop %v2497
    %v2499 = vmul.f32 %v2497, %v2498
    %v2500 = vsub.f32 1.0, %v2499
    %v2501 = vmul.f32 %v2498, %v2500
    %v2502 = vadd.f32 %v2498, %v2501
    %vm2503 = vweird.f32 %v2497
    %vm2504 = vweird.f32 %v2498
    %vm2505 = vmor %vm2503, %vm2504
    %v2506 = vsel %vm2505, %v2498, %v2502
    %v2507 = vand.u32 2147483647, %v2497
    %vm2508 = vcmp.eq.f32.partialorder %v2507, 8.507059e+37
    %v2509 = vand.u32 %v2497, 2147483648
    %v2510 = vor.u32 1.1754944e-38, %v2509
    %v2511 = vsel %vm2508, %v2510, %v2506
    %v2512 = vmul.f32 1.0, %v2511
    %v2513 = vtanh.pop %v2456
    %v2514 = vmul.f32 %v2512, %v2402
    %2516 = vrot.lane.b32.xlu0 %v2513, 64
    %v2517 = vpop.permute.xlu0 %2516
    %v2519 = vmul.f32 %v2512, %v2517
    %2521 = vrot.lane.b32.xlu0 %v2519, 32
    %v2522 = vpop.permute.xlu0 %2521
    %v2524 = vadd.f32 %v2514, %v2522
    %v2525 = vtanh.pop %v2524
    %2527 = vrot.lane.b32.xlu0 %v2525, 64
    %v2528 = vpop.permute.xlu0 %2527
    %v2530 = vmul.f32 %v2512, %v2528
    %v2531 = vsel %vm580, %v2493, %v2399
    %v2532 = vsel %vm580, %v2487, %v2400
    %v2533 = vsel %vm573, %v2530, %v2401
    %v2534 = vsel %vm573, %v2524, %v2402
    %v2535 = vld [vmem:[%s1636] sm:$0xff]
    %2537 = vrot.lane.b32.xlu0 %v2531, 32
    %v2538 = vpop.permute.xlu0 %2537
    %v2539 = vsel %vm291, %v2538, 0
    %2541 = vmatpush.msra.mxu0 0.0
    %2542 = vmatpush.msra.mxu0 0.0
    %2543 = vmatpush.msra.mxu0 0.0
    %2544 = vmatpush.msra.mxu0 0.0
    %2545 = vmatpush.msra.mxu0 0.0
    %2546 = vmatpush.msra.mxu0 0.0
    %2547 = vmatpush.msra.mxu0 0.0
    %2548 = vmatpush.msra.mxu0 0.0
    %2549 = vmatpush.msra.mxu0 0.0
    %2550 = vmatpush.msra.mxu0 0.0
    %2551 = vmatpush.msra.mxu0 0.0
    %2552 = vmatpush.msra.mxu0 0.0
    %2553 = vmatpush.msra.mxu0 %v1609
    %2554 = vmatpush.msra.mxu0 %v1608
    %2555 = vmatpush.msra.mxu0 %v1607
    %2556 = vmatpush.msra.mxu0 %v1606
    %2557 = vmatmul.f32.gmra.mxu0 %v2539
    %v2558 = vpop.f32.mrf.mxu0
    %v2559 = vadd.f32 0.0, %v2558
    %2560 = vdwg.mxu0
    %v2561 = vadd.f32 %v2535, %v2559
    %v2562 = vld [vmem:[#allocation4 + $0x8] sm:$0xff]
    %2564 = vrot.lane.b32.xlu0 %v2533, 32
    %v2565 = vpop.permute.xlu0 %2564
    %v2566 = vsel %vm291, %v2565, 0
    %2568 = vmatpush.msra.mxu0 0.0
    %2569 = vmatpush.msra.mxu0 0.0
    %2570 = vmatpush.msra.mxu0 0.0
    %2571 = vmatpush.msra.mxu0 0.0
    %2572 = vmatpush.msra.mxu0 0.0
    %2573 = vmatpush.msra.mxu0 0.0
    %2574 = vmatpush.msra.mxu0 0.0
    %2575 = vmatpush.msra.mxu0 0.0
    %2576 = vmatpush.msra.mxu0 0.0
    %2577 = vmatpush.msra.mxu0 0.0
    %2578 = vmatpush.msra.mxu0 0.0
    %2579 = vmatpush.msra.mxu0 0.0
    %2580 = vmatpush.msra.mxu0 %v1613
    %2581 = vmatpush.msra.mxu0 %v1612
    %2582 = vmatpush.msra.mxu0 %v1611
    %2583 = vmatpush.msra.mxu0 %v1610
    %2584 = vmatmul.f32.gmra.mxu0 %v2566
    %v2585 = vpop.f32.mrf.mxu0
    %v2586 = vadd.f32 0.0, %v2585
    %2587 = vdwg.mxu0
    %v2588 = vadd.f32 %v2562, %v2586
    %v2589 = vxor.u32 %v2561, 2147483648
    %v2590 = vmul.f32 %v2589, 1.442695
    %v2591 = vpow.pop %v2590
    %v2592 = vadd.f32 %v2591, 1.0
    %v2593 = vrcp.pop %v2592
    %v2594 = vmul.f32 %v2592, %v2593
    %v2595 = vsub.f32 1.0, %v2594
    %v2596 = vmul.f32 %v2593, %v2595
    %v2597 = vadd.f32 %v2593, %v2596
    %vm2598 = vweird.f32 %v2592
    %vm2599 = vweird.f32 %v2593
    %vm2600 = vmor %vm2598, %vm2599
    %v2601 = vsel %vm2600, %v2593, %v2597
    %v2602 = vand.u32 2147483647, %v2592
    %vm2603 = vcmp.eq.f32.partialorder %v2602, 8.507059e+37
    %v2604 = vand.u32 %v2592, 2147483648
    %v2605 = vor.u32 1.1754944e-38, %v2604
    %v2606 = vsel %vm2603, %v2605, %v2601
    %v2607 = vmul.f32 1.0, %v2606
    %v2608 = vtanh.pop %v2561
    %v2609 = vmul.f32 %v2607, %v2532
    %2611 = vrot.lane.b32.xlu0 %v2608, 64
    %v2612 = vpop.permute.xlu0 %2611
    %v2614 = vmul.f32 %v2607, %v2612
    %2616 = vrot.lane.b32.xlu0 %v2614, 32
    %v2617 = vpop.permute.xlu0 %2616
    %v2619 = vadd.f32 %v2609, %v2617
    %v2620 = vtanh.pop %v2619
    %2622 = vrot.lane.b32.xlu0 %v2620, 64
    %v2623 = vpop.permute.xlu0 %2622
    %v2625 = vmul.f32 %v2607, %v2623
    %v2626 = vxor.u32 %v2588, 2147483648
    %v2627 = vmul.f32 %v2626, 1.442695
    %v2628 = vpow.pop %v2627
    %v2629 = vadd.f32 %v2628, 1.0
    %v2630 = vrcp.pop %v2629
    %v2631 = vmul.f32 %v2629, %v2630
    %v2632 = vsub.f32 1.0, %v2631
    %v2633 = vmul.f32 %v2630, %v2632
    %v2634 = vadd.f32 %v2630, %v2633
    %vm2635 = vweird.f32 %v2629
    %vm2636 = vweird.f32 %v2630
    %vm2637 = vmor %vm2635, %vm2636
    %v2638 = vsel %vm2637, %v2630, %v2634
    %v2639 = vand.u32 2147483647, %v2629
    %vm2640 = vcmp.eq.f32.partialorder %v2639, 8.507059e+37
    %v2641 = vand.u32 %v2629, 2147483648
    %v2642 = vor.u32 1.1754944e-38, %v2641
    %v2643 = vsel %vm2640, %v2642, %v2638
    %v2644 = vmul.f32 1.0, %v2643
    %v2645 = vtanh.pop %v2588
    %v2646 = vmul.f32 %v2644, %v2534
    %2648 = vrot.lane.b32.xlu0 %v2645, 64
    %v2649 = vpop.permute.xlu0 %2648
    %v2651 = vmul.f32 %v2644, %v2649
    %2653 = vrot.lane.b32.xlu0 %v2651, 32
    %v2654 = vpop.permute.xlu0 %2653
    %v2656 = vadd.f32 %v2646, %v2654
    %v2657 = vtanh.pop %v2656
    %2659 = vrot.lane.b32.xlu0 %v2657, 64
    %v2660 = vpop.permute.xlu0 %2659
    %v2662 = vmul.f32 %v2644, %v2660
    %v2663 = vsel %vm426, %v2625, %v2531
    %v2664 = vsel %vm419, %v2662, %v2533
    %v2665 = vld [vmem:[%s10] sm:$0xff]
    %v2666 = vld [vmem:[%s10 + $0x8] sm:$0xff]
    %v2667 = vld [vmem:[%s10 + $0x10] sm:$0xff]
    %v2668 = vld [vmem:[%s10 + $0x18] sm:$0xff]
    %v2669 = vld [vmem:[%s11] sm:$0xff]
    %v2670 = vld [vmem:[%s11 + $0x8] sm:$0xff]
    %v2671 = vld [vmem:[%s11 + $0x10] sm:$0xff]
    %v2672 = vld [vmem:[%s11 + $0x18] sm:$0xff]
    %2674 = vrot.lane.b32.xlu0 %v2664, 32
    %v2675 = vpop.permute.xlu0 %2674
    %v2676 = vsel %vm291, %v2675, 0
    %2678 = vmatpush.msra.mxu0 0.0
    %2679 = vmatpush.msra.mxu0 0.0
    %2680 = vmatpush.msra.mxu0 0.0
    %2681 = vmatpush.msra.mxu0 0.0
    %2682 = vmatpush.msra.mxu0 0.0
    %2683 = vmatpush.msra.mxu0 0.0
    %2684 = vmatpush.msra.mxu0 0.0
    %2685 = vmatpush.msra.mxu0 0.0
    %2686 = vmatpush.msra.mxu0 0.0
    %2687 = vmatpush.msra.mxu0 0.0
    %2688 = vmatpush.msra.mxu0 0.0
    %2689 = vmatpush.msra.mxu0 0.0
    %2690 = vmatpush.msra.mxu0 %v2672
    %2691 = vmatpush.msra.mxu0 %v2671
    %2692 = vmatpush.msra.mxu0 %v2670
    %2693 = vmatpush.msra.mxu0 %v2669
    %2694 = vmatmul.f32.gmra.mxu0 %v2676
    %v2695 = vpop.f32.mrf.mxu0
    %v2696 = vadd.f32 0.0, %v2695
    %2697 = vdwg.mxu0
    %2699 = vrot.lane.b32.xlu0 %v2663, 32
    %v2700 = vpop.permute.xlu0 %2699
    %v2701 = vsel %vm291, %v2700, 0
    %2703 = vmatpush.msra.mxu0 0.0
    %2704 = vmatpush.msra.mxu0 0.0
    %2705 = vmatpush.msra.mxu0 0.0
    %2706 = vmatpush.msra.mxu0 0.0
    %2707 = vmatpush.msra.mxu0 0.0
    %2708 = vmatpush.msra.mxu0 0.0
    %2709 = vmatpush.msra.mxu0 0.0
    %2710 = vmatpush.msra.mxu0 0.0
    %2711 = vmatpush.msra.mxu0 0.0
    %2712 = vmatpush.msra.mxu0 0.0
    %2713 = vmatpush.msra.mxu0 0.0
    %2714 = vmatpush.msra.mxu0 0.0
    %2715 = vmatpush.msra.mxu0 %v2668
    %2716 = vmatpush.msra.mxu0 %v2667
    %2717 = vmatpush.msra.mxu0 %v2666
    %2718 = vmatpush.msra.mxu0 %v2665
    %2719 = vmatmul.f32.gmra.mxu0 %v2701
    %v2720 = vpop.f32.mrf.mxu0
    %v2721 = vadd.f32 %v2696, %v2720
    %2722 = vdwg.mxu0
    %v2723 = vld [vmem:[#allocation5] sm:$0x1]
    %v2725 = vperm.slane %v2723, 0
    %v2727 = vadd.f32 %v2721, %v2725
    %v2728 = vxor.u32 %v2727, 2147483648
    %v2729 = vmul.f32 %v2728, 1.442695
    %v2730 = vpow.pop %v2729
    %v2731 = vadd.f32 %v2730, 1.0
    %v2732 = vrcp.pop %v2731
    %v2733 = vmul.f32 %v2731, %v2732
    %v2734 = vsub.f32 1.0, %v2733
    %v2735 = vmul.f32 %v2732, %v2734
    %v2736 = vadd.f32 %v2732, %v2735
    %vm2737 = vweird.f32 %v2731
    %vm2738 = vweird.f32 %v2732
    %vm2739 = vmor %vm2737, %vm2738
    %v2740 = vsel %vm2739, %v2732, %v2736
    %v2741 = vand.u32 2147483647, %v2731
    %vm2742 = vcmp.eq.f32.partialorder %v2741, 8.507059e+37
    %v2743 = vand.u32 %v2731, 2147483648
    %v2744 = vor.u32 1.1754944e-38, %v2743
    %v2745 = vsel %vm2742, %v2744, %v2740
    %v2746 = vmul.f32 1.0, %v2745
    %vm2747 = vcmask 7168
    %2748 = vst.msk [vmem:[%s13] sm:$0xff] %vm2747, %v2746
    // Predicated region
    $region78: #{tpu_custom_call.1} parent=1 // pred_check
      _
    $region79: #{tpu_custom_call.1} parent=1 // pred_check_branch
      %2750 = sbr.rel (0) target = $region81
    $region80: #{tpu_custom_call.1} parent=1 // pred_region
      _
    $region81: #{tpu_custom_call.1} parent=1 // pred_fallthru
      _
    // Predicated region
    $region82: #{tpu_custom_call.1} parent=1 // pred_check
      _
    $region83: #{tpu_custom_call.1} parent=1 // pred_check_branch
      %2752 = sbr.rel (0) target = $region85
    $region84: #{tpu_custom_call.1} parent=1 // pred_region
      _
    $region85: #{tpu_custom_call.1} parent=1 // pred_fallthru
      _
    %2753 = vsyncpa [#allocation7], 1
    %2754 = vsyncpa [#allocation9], 1
    %2755 = vsyncpa [#allocation12], 1
    %2756 = vsyncpa [#allocation15], 1

</llo_original>
